<compile_context>
chip_gen: v7x
topology: tpu7x:2x2x1
jax: 0.10.0
libtpu: 0.0.40
codegen_flags: <defaults>
</compile_context>

<pallas_src>
import math

import jax
import jax.numpy as jnp
from jax.experimental import pallas as pl
from jax.experimental.pallas import tpu as pltpu


_T = 8  # timesteps per vectorized scan chunk (one f32 sublane tile)


def bimamba_kernel(x_ref, w_in_x_ref, w_in_z_ref, conv_w_ref, conv_b_ref,
                   w_xp_dt_ref, w_xp_b_ref, w_xp_c_ref, w_dtp_ref,
                   dt_bias_ref, a_t_ref, d_row_ref, w_out_ref,
                   out_ref, pad_scr, h_scr, tail_scr):
    f32 = jnp.float32
    bf16 = jnp.bfloat16
    Lc = x_ref.shape[1]
    d_conv = conv_w_ref.shape[1]
    d_inner = conv_w_ref.shape[2]
    n_sc = Lc // _T

    def mm_t(a, b):   # a @ b.T (contract last dims); bf16 operands, f32 accum
        return jax.lax.dot_general(a, b, (((1,), (1,)), ((), ())),
                                   preferred_element_type=f32)

    def silu(v):
        return v * (1.0 / (1.0 + jnp.exp(-v)))

    def softplus(v):
        return jnp.maximum(v, 0.0) + jnp.log1p(jnp.exp(-jnp.abs(v)))

    # First L-chunk of this sequence: reset carried SSM state & conv history.
    @pl.when(pl.program_id(1) == 0)
    def _():
        h_scr[...] = jnp.zeros_like(h_scr)
        tail_scr[...] = jnp.zeros_like(tail_scr)

    x_bf = x_ref[0]                                       # (Lc, d_model) bf16

    y_sum = jnp.zeros((Lc, d_inner), f32)
    for d in range(2):                                    # 0 = fwd, 1 = rev
        # ---- tied in_proj (feature flip of the rev branch folded into W) ----
        xin = mm_t(x_bf, w_in_x_ref[d])                   # (Lc, d_inner) f32
        z = mm_t(x_bf, w_in_z_ref[d])                     # (Lc, d_inner) f32

        # ---- causal depthwise conv via shifted reads of an aligned pad ----
        pad_scr[0:8, :] = tail_scr[d]                     # history (zeros @ c==0)
        pad_scr[8:8 + Lc, :] = xin                        # sublane-aligned store
        tail_scr[d] = xin[Lc - 8:Lc, :]                   # carry for next chunk
        conv_w = conv_w_ref[d]                            # (d_conv, d_inner)
        base = 8 - (d_conv - 1)
        acc = pad_scr[base:base + Lc, :] * conv_w[0:1, :]
        for k in range(1, d_conv):
            acc = acc + pad_scr[base + k:base + k + Lc, :] * conv_w[k:k + 1, :]
        xc = silu(acc + conv_b_ref[d])                    # (Lc, d_inner) f32
        xc_bf = xc.astype(bf16)

        # ---- x_proj / dt_proj (bf16 MXU, f32 accumulation) ----
        dt_in = mm_t(xc_bf, w_xp_dt_ref[d])               # (Lc, dt_rank)
        b_all = mm_t(xc_bf, w_xp_b_ref[d])                # (Lc, d_state)
        c_all = mm_t(xc_bf, w_xp_c_ref[d])                # (Lc, d_state)
        delta = softplus(mm_t(dt_in.astype(bf16), w_dtp_ref[d])
                         + dt_bias_ref[d])                # (Lc, d_inner)
        du = delta * xc                                   # (Lc, d_inner)
        a_t = a_t_ref[d]                                  # (d_state, d_inner)

        # ---- chunked selective scan: vectorized dA/dBu precompute per _T steps,
        # pure-FMA recurrence, one (T, d_inner) output tile per chunk.
        h = h_scr[d]                                      # carried (d_state, d_inner)
        y_tiles = []
        for s in range(n_sc):
            t0 = s * _T
            d_sl = delta[t0:t0 + _T]                      # (T, d_inner)
            du_sl = du[t0:t0 + _T]
            b_sl = b_all[t0:t0 + _T]                      # (T, d_state)
            c_sl = c_all[t0:t0 + _T]
            dA = jnp.exp(d_sl[:, None, :] * a_t[None, :, :])   # (T, ds, di)
            dBu = du_sl[:, None, :] * b_sl[:, :, None]         # (T, ds, di)
            hs = []
            for t in range(_T):                           # unrolled VPU FMAs
                h = dA[t] * h + dBu[t]
                hs.append(h)
            H = jnp.stack(hs, axis=0)                     # (T, d_state, d_inner)
            y_tiles.append(jnp.sum(H * c_sl[:, :, None], axis=1))  # (T, d_inner)
        h_scr[d] = h
        ys = jnp.concatenate(y_tiles, axis=0)             # (Lc, d_inner)

        y_d = ys + xc * d_row_ref[d]
        y_sum = y_sum + y_d * silu(z)

    # ---- tied out_proj: fwd(x) + rev(flip x) == (y_fwd + y_rev) @ W_out^T ----
    out = mm_t(y_sum.astype(bf16), w_out_ref[...])        # (Lc, d_model) f32
    out_ref[0] = out.astype(out_ref.dtype)


def _prepare_kernel_params(fwd_p, rev_p):
    bf16 = jnp.bfloat16
    d_inner = fwd_p["w_dtp"].shape[0]
    dt_rank = fwd_p["w_dtp"].shape[1]
    d_state = fwd_p["a_t"].shape[0]

    # tied in_proj; the rev branch consumes x.flip(dims=[-1]) (feature flip),
    # folded into the weights:  flip(x, -1) @ W^T  ==  x @ flip(W, axis=1)^T
    w_in_f = fwd_p["w_in"]
    w_in_r = jnp.flip(w_in_f, axis=1)
    w_in_x = jnp.stack([w_in_f[:d_inner], w_in_r[:d_inner]], 0).astype(bf16)
    w_in_z = jnp.stack([w_in_f[d_inner:], w_in_r[d_inner:]], 0).astype(bf16)

    def stack(k):
        return jnp.stack([fwd_p[k], rev_p[k]], axis=0)

    w_xp = stack("w_xp")                                  # (2, dt_rank+2*ds, di)
    w_xp_dt = w_xp[:, :dt_rank].astype(bf16)
    w_xp_b = w_xp[:, dt_rank:dt_rank + d_state].astype(bf16)
    w_xp_c = w_xp[:, dt_rank + d_state:].astype(bf16)

    return [
        w_in_x,                      # (2, d_inner, d_model)   bf16
        w_in_z,                      # (2, d_inner, d_model)   bf16
        stack("conv_wt"),            # (2, d_conv, d_inner)    f32
        stack("conv_b"),             # (2, 1, d_inner)         f32
        w_xp_dt,                     # (2, dt_rank, d_inner)   bf16
        w_xp_b,                      # (2, d_state, d_inner)   bf16
        w_xp_c,                      # (2, d_state, d_inner)   bf16
        stack("w_dtp").astype(bf16), # (2, d_inner, dt_rank)   bf16
        stack("dt_bias"),            # (2, 1, d_inner)         f32
        stack("a_t"),                # (2, d_state, d_inner)   f32
        stack("d_row"),              # (2, 1, d_inner)         f32
        fwd_p["w_out"].astype(bf16), # (d_model, d_inner)      bf16 (tied)
    ]


def bimamba_pallas(x, fwd_p, rev_p, *, l_chunk=None):
    B, L, Dm = x.shape
    params = _prepare_kernel_params(fwd_p, rev_p)
    d_conv, d_inner = fwd_p["conv_wt"].shape
    d_state = fwd_p["a_t"].shape[0]
    dt_rank = fwd_p["w_dtp"].shape[1]

    if l_chunk is None:
        l_chunk = min(L, 128)
    # TODO(synk): pad / remainder handling for ragged L; demo assumes divisibility.
    assert L % l_chunk == 0 and l_chunk % _T == 0 and l_chunk >= 8
    n_lc = L // l_chunk

    x_bf = x.astype(jnp.bfloat16)          # bf16 MXU operands, halves x DMA

    in_specs = [pl.BlockSpec((1, l_chunk, Dm), lambda b, c: (b, c, 0))]
    # TODO(synk): weights could be single-buffered (pipeline_mode) since their
    # block index never changes; left at default — footprint is tiny vs activations.
    in_specs += [pl.BlockSpec(a.shape, lambda b, c, nd=a.ndim: (0,) * nd)
                 for a in params]
    out_specs = pl.BlockSpec((1, l_chunk, Dm), lambda b, c: (b, c, 0))

    # advisory cost estimate for the XLA scheduler
    mm = (2 * 2 * (2 * L * Dm * d_inner)                      # in_proj x/z, 2 dirs
          + 2 * (2 * L * d_inner * (dt_rank + 2 * d_state))   # x_proj
          + 2 * (2 * L * dt_rank * d_inner)                   # dt_proj
          + 2 * L * d_inner * Dm)                             # shared out_proj
    scan = 2 * 6 * L * d_state * d_inner
    transc = 2 * L * (d_state * d_inner + 4 * d_inner)
    bytes_acc = (x_bf.size * 2 + B * L * Dm * 4
                 + sum(int(a.size) * a.dtype.itemsize for a in params))

    fn = pl.pallas_call(
        bimamba_kernel,
        out_shape=jax.ShapeDtypeStruct((B, L, Dm), x.dtype),
        grid_spec=pltpu.PrefetchScalarGridSpec(
            num_scalar_prefetch=0,
            grid=(B, n_lc),
            in_specs=in_specs,
            out_specs=out_specs,
            scratch_shapes=[
                pltpu.VMEM((l_chunk + 8, d_inner), jnp.float32),  # aligned conv pad
                pltpu.VMEM((2, d_state, d_inner), jnp.float32),   # carried SSM state
                pltpu.VMEM((2, 8, d_inner), jnp.float32),         # carried conv tail
            ]),
        compiler_params=pltpu.CompilerParams(
            dimension_semantics=("parallel", "arbitrary"),
            vmem_limit_bytes=64 * 1024 * 1024),
        cost_estimate=pl.CostEstimate(flops=int(B * (mm + scan)),
                                      transcendentals=int(B * transc),
                                      bytes_accessed=int(bytes_acc)),
    )
    return fn(x_bf, *params)


# ----------------------- deterministic parameter setup -----------------------
def init_mamba_params(key, d_model, d_state, d_conv, expand, shared=None):
    d_inner = expand * d_model
    dt_rank = math.ceil(d_model / 16)
    ks = jax.random.split(key, 8)
    p = {}
    if shared is None:
        w_in = jax.random.normal(ks[0], (2 * d_inner, d_model), jnp.float32) * 0.1
        w_out = jax.random.normal(ks[1], (d_model, d_inner), jnp.float32) * 0.1
    else:
        w_in, w_out = shared
    p["w_in"] = w_in
    p["w_out"] = w_out
    conv_w = jax.random.normal(ks[2], (d_inner, d_conv), jnp.float32) / math.sqrt(d_conv)
    p["conv_wt"] = conv_w.T                                   # (d_conv, d_inner)
    p["conv_b"] = (jax.random.normal(ks[3], (d_inner,), jnp.float32) * 0.1
                   ).reshape(1, d_inner)
    p["w_xp"] = jax.random.normal(
        ks[4], (dt_rank + 2 * d_state, d_inner), jnp.float32) * 0.1
    p["w_dtp"] = jax.random.normal(
        ks[5], (d_inner, dt_rank), jnp.float32) * dt_rank ** -0.5
    dt = jnp.exp(jax.random.uniform(ks[6], (d_inner,), jnp.float32)
                 * (math.log(0.1) - math.log(1e-3)) + math.log(1e-3))
    dt = jnp.maximum(dt, 1e-4)
    p["dt_bias"] = (dt + jnp.log(-jnp.expm1(-dt))).reshape(1, d_inner)
    A = jnp.tile(jnp.arange(1, d_state + 1, dtype=jnp.float32)[None, :],
                 (d_inner, 1))
    p["a_t"] = (-A).T                                         # (d_state, d_inner)
    p["d_row"] = jnp.ones((1, d_inner), jnp.float32)
    return p, (w_in, w_out)


# ------------------------------ pure-JAX reference ----------------------------
def mamba_ref(x, p):
    B, L, Dm = x.shape
    d_inner = p["w_dtp"].shape[0]
    dt_rank = p["w_dtp"].shape[1]
    d_state = p["a_t"].shape[0]
    d_conv = p["conv_wt"].shape[0]

    xz = jnp.einsum("bld,ed->ble", x, p["w_in"])
    xin, z = xz[..., :d_inner], xz[..., d_inner:]

    xpad = jnp.pad(xin, ((0, 0), (d_conv - 1, 0), (0, 0)))
    conv = sum(xpad[:, k:k + L, :] * p["conv_wt"][k][None, None, :]
               for k in range(d_conv)) + p["conv_b"]
    xc = conv * jax.nn.sigmoid(conv)

    xdbc = jnp.einsum("ble,ne->bln", xc, p["w_xp"])
    dt_in = xdbc[..., :dt_rank]
    Bm = xdbc[..., dt_rank:dt_rank + d_state]
    Cm = xdbc[..., dt_rank + d_state:]
    delta = jax.nn.softplus(
        jnp.einsum("blr,er->ble", dt_in, p["w_dtp"]) + p["dt_bias"])

    A = p["a_t"].T                                            # (d_inner, d_state)
    dA = jnp.exp(jnp.einsum("ble,en->blen", delta, A))
    dBu = jnp.einsum("ble,bln,ble->blen", delta, Bm, xc)

    def step(h, inp):
        dA_l, dBu_l, C_l = inp
        h = dA_l * h + dBu_l
        return h, jnp.einsum("ben,bn->be", h, C_l)

    h0 = jnp.zeros((B, d_inner, d_state), jnp.float32)
    _, ys = jax.lax.scan(step, h0, (dA.transpose(1, 0, 2, 3),
                                    dBu.transpose(1, 0, 2, 3),
                                    Cm.transpose(1, 0, 2)))
    y = ys.transpose(1, 0, 2) + xc * p["d_row"]
    y = y * (z * jax.nn.sigmoid(z))
    return jnp.einsum("ble,de->bld", y, p["w_out"])


def bimamba_ref(x, fwd_p, rev_p):
    # BiMambaBlock.forward: fwd_mamba(x) + rev_mamba(x.flip(dims=[-1]))
    return mamba_ref(x, fwd_p) + mamba_ref(jnp.flip(x, axis=-1), rev_p)


if __name__ == "__main__":
    B, L, d_model = 2, 32, 32
    d_state, d_conv, expand = 16, 4, 2

    key = jax.random.PRNGKey(0)
    kx, kf, kr = jax.random.split(key, 3)
    x = jax.random.normal(kx, (B, L, d_model), jnp.float32)

    # fwd / rev Mamba share in_proj & out_proj (as in BiMambaBlock.__init__)
    fwd_p, shared = init_mamba_params(kf, d_model, d_state, d_conv, expand)
    rev_p, _ = init_mamba_params(kr, d_model, d_state, d_conv, expand,
                                 shared=shared)

    # l_chunk=16 -> 2 L-chunks per sequence and 2 scan chunks per L-chunk, so the
    # carried-state (h / conv tail) paths are exercised against the reference.
    out = bimamba_pallas(x, fwd_p, rev_p, l_chunk=16)
    jax.block_until_ready(out)

    ref = bimamba_ref(x, fwd_p, rev_p)
    assert out.shape == (B, L, d_model)
    err = float(jnp.max(jnp.abs(out - ref)))
    # bf16 MXU operands (f32 accumulation) vs an all-f32 reference -> looser tol.
    assert jnp.allclose(out, ref, rtol=5e-2, atol=1.5e-2), err
    print("KERNEL_OK")
</pallas_src>

<mosaic_0001>
module attributes {stable_mosaic.version = 11 : i64} {
  func.func @bimamba_kernel(%arg0: i32, %arg1: i32, %arg2: memref<1x16x32xbf16, #tpu.memory_space<vmem>>, %arg3: memref<2x64x32xbf16, #tpu.memory_space<vmem>>, %arg4: memref<2x64x32xbf16, #tpu.memory_space<vmem>>, %arg5: memref<2x4x64xf32, #tpu.memory_space<vmem>>, %arg6: memref<2x1x64xf32, #tpu.memory_space<vmem>>, %arg7: memref<2x2x64xbf16, #tpu.memory_space<vmem>>, %arg8: memref<2x16x64xbf16, #tpu.memory_space<vmem>>, %arg9: memref<2x16x64xbf16, #tpu.memory_space<vmem>>, %arg10: memref<2x64x2xbf16, #tpu.memory_space<vmem>>, %arg11: memref<2x1x64xf32, #tpu.memory_space<vmem>>, %arg12: memref<2x16x64xf32, #tpu.memory_space<vmem>>, %arg13: memref<2x1x64xf32, #tpu.memory_space<vmem>>, %arg14: memref<32x64xbf16, #tpu.memory_space<vmem>>, %arg15: memref<1x16x32xf32, #tpu.memory_space<vmem>>, %arg16: memref<24x64xf32, #tpu.memory_space<vmem>>, %arg17: memref<2x16x64xf32, #tpu.memory_space<vmem>>, %arg18: memref<2x8x64xf32, #tpu.memory_space<vmem>>) attributes {dimension_semantics = [#tpu.dimension_semantics<parallel>, #tpu.dimension_semantics<arbitrary>], iteration_bounds = array<i64: 2, 2>, scalar_prefetch = 0 : i64, scratch_operands = 3 : i64, tpu.core_type = #tpu.core_type<tc>, window_params = [{transform_indices = @transform_0, window_bounds = array<i64: 1, 16, 32>}, {pipeline_mode = #tpu.pipeline_mode<synchronous>, transform_indices = @transform_1, window_bounds = array<i64: 2, 64, 32>}, {pipeline_mode = #tpu.pipeline_mode<synchronous>, transform_indices = @transform_2, window_bounds = array<i64: 2, 64, 32>}, {pipeline_mode = #tpu.pipeline_mode<synchronous>, transform_indices = @transform_3, window_bounds = array<i64: 2, 4, 64>}, {pipeline_mode = #tpu.pipeline_mode<synchronous>, transform_indices = @transform_4, window_bounds = array<i64: 2, 1, 64>}, {pipeline_mode = #tpu.pipeline_mode<synchronous>, transform_indices = @transform_5, window_bounds = array<i64: 2, 2, 64>}, {pipeline_mode = #tpu.pipeline_mode<synchronous>, transform_indices = @transform_6, window_bounds = array<i64: 2, 16, 64>}, {pipeline_mode = #tpu.pipeline_mode<synchronous>, transform_indices = @transform_7, window_bounds = array<i64: 2, 16, 64>}, {pipeline_mode = #tpu.pipeline_mode<synchronous>, transform_indices = @transform_8, window_bounds = array<i64: 2, 64, 2>}, {pipeline_mode = #tpu.pipeline_mode<synchronous>, transform_indices = @transform_9, window_bounds = array<i64: 2, 1, 64>}, {pipeline_mode = #tpu.pipeline_mode<synchronous>, transform_indices = @transform_10, window_bounds = array<i64: 2, 16, 64>}, {pipeline_mode = #tpu.pipeline_mode<synchronous>, transform_indices = @transform_11, window_bounds = array<i64: 2, 1, 64>}, {pipeline_mode = #tpu.pipeline_mode<synchronous>, transform_indices = @transform_12, window_bounds = array<i64: 32, 64>}, {transform_indices = @transform_13, window_bounds = array<i64: 1, 16, 32>}]} {
    %c0_i32 = arith.constant 0 : i32
    %0 = arith.cmpi eq, %arg1, %c0_i32 : i32
    %1 = arith.extui %0 : i1 to i32
    %c0_i32_0 = arith.constant 0 : i32
    %2 = arith.cmpi ne, %1, %c0_i32_0 : i32
    scf.if %2 {
      %cst_150 = arith.constant 0.000000e+00 : f32
      %510 = vector.broadcast %cst_150 : f32 to vector<2x16x64xf32>
      %c0_151 = arith.constant 0 : index
      %c0_152 = arith.constant 0 : index
      %c0_153 = arith.constant 0 : index
      %511 = vector.load %arg17[%c0_151, %c0_152, %c0_153] : memref<2x16x64xf32, #tpu.memory_space<vmem>>, vector<2x16x64xf32>
      tpu.vector_store %arg17[%c0_151, %c0_152, %c0_153], %510 {strides = array<i32>} : memref<2x16x64xf32, #tpu.memory_space<vmem>>, vector<2x16x64xf32>,
      %cst_154 = arith.constant 0.000000e+00 : f32
      %512 = vector.broadcast %cst_154 : f32 to vector<2x8x64xf32>
      %c0_155 = arith.constant 0 : index
      %c0_156 = arith.constant 0 : index
      %c0_157 = arith.constant 0 : index
      %513 = vector.load %arg18[%c0_155, %c0_156, %c0_157] : memref<2x8x64xf32, #tpu.memory_space<vmem>>, vector<2x8x64xf32>
      tpu.vector_store %arg18[%c0_155, %c0_156, %c0_157], %512 {strides = array<i32>} : memref<2x8x64xf32, #tpu.memory_space<vmem>>, vector<2x8x64xf32>,
    } else {
    }
    %c0 = arith.constant 0 : index
    %c0_1 = arith.constant 0 : index
    %c0_2 = arith.constant 0 : index
    %3 = vector.load %arg2[%c0, %c0_1, %c0_2] : memref<1x16x32xbf16, #tpu.memory_space<vmem>>, vector<1x16x32xbf16>
    %4 = vector.shape_cast %3 : vector<1x16x32xbf16> to vector<16x32xbf16>
    %cst = arith.constant 0.000000e+00 : f32
    %5 = vector.broadcast %cst : f32 to vector<16x64xf32>
    %c0_3 = arith.constant 0 : index
    %c0_4 = arith.constant 0 : index
    %c0_5 = arith.constant 0 : index
    %6 = vector.load %arg3[%c0_3, %c0_4, %c0_5] : memref<2x64x32xbf16, #tpu.memory_space<vmem>>, vector<1x64x32xbf16>
    %7 = vector.shape_cast %6 : vector<1x64x32xbf16> to vector<64x32xbf16>
    %cst_6 = arith.constant dense<0.000000e+00> : vector<16x64xf32>
    %8 = tpu.matmul %4, %7, %cst_6 {dimension_numbers = #tpu.dot_dimension_numbers<[1], [1], [0], [0], [0, 0, 1, 0], [], []>} : vector<16x32xbf16>, vector<64x32xbf16>, vector<16x64xf32> -> vector<16x64xf32>
    %c0_7 = arith.constant 0 : index
    %c0_8 = arith.constant 0 : index
    %c0_9 = arith.constant 0 : index
    %9 = vector.load %arg4[%c0_7, %c0_8, %c0_9] : memref<2x64x32xbf16, #tpu.memory_space<vmem>>, vector<1x64x32xbf16>
    %10 = vector.shape_cast %9 : vector<1x64x32xbf16> to vector<64x32xbf16>
    %cst_10 = arith.constant dense<0.000000e+00> : vector<16x64xf32>
    %11 = tpu.matmul %4, %10, %cst_10 {dimension_numbers = #tpu.dot_dimension_numbers<[1], [1], [0], [0], [0, 0, 1, 0], [], []>} : vector<16x32xbf16>, vector<64x32xbf16>, vector<16x64xf32> -> vector<16x64xf32>
    %c0_11 = arith.constant 0 : index
    %c0_12 = arith.constant 0 : index
    %c0_13 = arith.constant 0 : index
    %12 = vector.load %arg18[%c0_11, %c0_12, %c0_13] : memref<2x8x64xf32, #tpu.memory_space<vmem>>, vector<1x8x64xf32>
    %13 = vector.shape_cast %12 : vector<1x8x64xf32> to vector<8x64xf32>
    %c0_14 = arith.constant 0 : index
    %c0_15 = arith.constant 0 : index
    %14 = vector.load %arg16[%c0_14, %c0_15] : memref<24x64xf32, #tpu.memory_space<vmem>>, vector<8x64xf32>
    tpu.vector_store %arg16[%c0_14, %c0_15], %13 {strides = array<i32>} : memref<24x64xf32, #tpu.memory_space<vmem>>, vector<8x64xf32>,
    %c8 = arith.constant 8 : index
    %c0_16 = arith.constant 0 : index
    %15 = vector.load %arg16[%c8, %c0_16] : memref<24x64xf32, #tpu.memory_space<vmem>>, vector<16x64xf32>
    tpu.vector_store %arg16[%c8, %c0_16], %8 {strides = array<i32>} : memref<24x64xf32, #tpu.memory_space<vmem>>, vector<16x64xf32>,
    %16 = vector.extract_strided_slice %8 {offsets = [8, 0], sizes = [8, 64], strides = [1, 1]} : vector<16x64xf32> to vector<8x64xf32>
    %c0_17 = arith.constant 0 : index
    %c0_18 = arith.constant 0 : index
    %c0_19 = arith.constant 0 : index
    %17 = vector.load %arg18[%c0_17, %c0_18, %c0_19] : memref<2x8x64xf32, #tpu.memory_space<vmem>>, vector<1x8x64xf32>
    %18 = vector.shape_cast %17 : vector<1x8x64xf32> to vector<8x64xf32>
    %19 = vector.shape_cast %16 : vector<8x64xf32> to vector<1x8x64xf32>
    tpu.vector_store %arg18[%c0_17, %c0_18, %c0_19], %19 {strides = array<i32>} : memref<2x8x64xf32, #tpu.memory_space<vmem>>, vector<1x8x64xf32>,
    %c0_20 = arith.constant 0 : index
    %c0_21 = arith.constant 0 : index
    %c0_22 = arith.constant 0 : index
    %20 = vector.load %arg5[%c0_20, %c0_21, %c0_22] : memref<2x4x64xf32, #tpu.memory_space<vmem>>, vector<1x4x64xf32>
    %21 = vector.shape_cast %20 : vector<1x4x64xf32> to vector<4x64xf32>
    %c5 = arith.constant 5 : index
    %c0_23 = arith.constant 0 : index
    %22 = vector.load %arg16[%c5, %c0_23] : memref<24x64xf32, #tpu.memory_space<vmem>>, vector<16x64xf32>
    %23 = vector.extract_strided_slice %21 {offsets = [0, 0], sizes = [1, 64], strides = [1, 1]} : vector<4x64xf32> to vector<1x64xf32>
    %24 = vector.broadcast %23 : vector<1x64xf32> to vector<16x64xf32>
    %25 = arith.mulf %22, %24 : vector<16x64xf32>
    %c6 = arith.constant 6 : index
    %c0_24 = arith.constant 0 : index
    %26 = vector.load %arg16[%c6, %c0_24] : memref<24x64xf32, #tpu.memory_space<vmem>>, vector<16x64xf32>
    %27 = vector.extract_strided_slice %21 {offsets = [1, 0], sizes = [1, 64], strides = [1, 1]} : vector<4x64xf32> to vector<1x64xf32>
    %28 = vector.broadcast %27 : vector<1x64xf32> to vector<16x64xf32>
    %29 = arith.mulf %26, %28 : vector<16x64xf32>
    %30 = arith.addf %25, %29 : vector<16x64xf32>
    %c7 = arith.constant 7 : index
    %c0_25 = arith.constant 0 : index
    %31 = vector.load %arg16[%c7, %c0_25] : memref<24x64xf32, #tpu.memory_space<vmem>>, vector<16x64xf32>
    %32 = vector.extract_strided_slice %21 {offsets = [2, 0], sizes = [1, 64], strides = [1, 1]} : vector<4x64xf32> to vector<1x64xf32>
    %33 = vector.broadcast %32 : vector<1x64xf32> to vector<16x64xf32>
    %34 = arith.mulf %31, %33 : vector<16x64xf32>
    %35 = arith.addf %30, %34 : vector<16x64xf32>
    %c8_26 = arith.constant 8 : index
    %c0_27 = arith.constant 0 : index
    %36 = vector.load %arg16[%c8_26, %c0_27] : memref<24x64xf32, #tpu.memory_space<vmem>>, vector<16x64xf32>
    %37 = vector.extract_strided_slice %21 {offsets = [3, 0], sizes = [1, 64], strides = [1, 1]} : vector<4x64xf32> to vector<1x64xf32>
    %38 = vector.broadcast %37 : vector<1x64xf32> to vector<16x64xf32>
    %39 = arith.mulf %36, %38 : vector<16x64xf32>
    %40 = arith.addf %35, %39 : vector<16x64xf32>
    %c0_28 = arith.constant 0 : index
    %c0_29 = arith.constant 0 : index
    %c0_30 = arith.constant 0 : index
    %41 = vector.load %arg6[%c0_28, %c0_29, %c0_30] : memref<2x1x64xf32, #tpu.memory_space<vmem>>, vector<1x1x64xf32>
    %42 = vector.shape_cast %41 : vector<1x1x64xf32> to vector<1x64xf32>
    %43 = vector.broadcast %42 : vector<1x64xf32> to vector<16x64xf32>
    %44 = arith.addf %40, %43 : vector<16x64xf32>
    %cst_31 = arith.constant 0.000000e+00 : f32
    %45 = vector.broadcast %cst_31 : f32 to vector<16x64xf32>
    %46 = arith.subf %45, %44 : vector<16x64xf32>
    %47 = math.exp %46 : vector<16x64xf32>
    %cst_32 = arith.constant 1.000000e+00 : f32
    %48 = vector.broadcast %cst_32 : f32 to vector<16x64xf32>
    %49 = arith.addf %48, %47 : vector<16x64xf32>
    %cst_33 = arith.constant 1.000000e+00 : f32
    %50 = vector.broadcast %cst_33 : f32 to vector<16x64xf32>
    %51 = arith.divf %50, %49 : vector<16x64xf32>
    %52 = arith.mulf %44, %51 : vector<16x64xf32>
    %53 = arith.truncf %52 : vector<16x64xf32> to vector<16x64xbf16>
    %c0_34 = arith.constant 0 : index
    %c0_35 = arith.constant 0 : index
    %c0_36 = arith.constant 0 : index
    %54 = vector.load %arg7[%c0_34, %c0_35, %c0_36] : memref<2x2x64xbf16, #tpu.memory_space<vmem>>, vector<1x2x64xbf16>
    %55 = vector.shape_cast %54 : vector<1x2x64xbf16> to vector<2x64xbf16>
    %cst_37 = arith.constant dense<0.000000e+00> : vector<16x2xf32>
    %56 = tpu.matmul %53, %55, %cst_37 {dimension_numbers = #tpu.dot_dimension_numbers<[1], [1], [0], [0], [0, 0, 1, 0], [], []>} : vector<16x64xbf16>, vector<2x64xbf16>, vector<16x2xf32> -> vector<16x2xf32>
    %c0_38 = arith.constant 0 : index
    %c0_39 = arith.constant 0 : index
    %c0_40 = arith.constant 0 : index
    %57 = vector.load %arg8[%c0_38, %c0_39, %c0_40] : memref<2x16x64xbf16, #tpu.memory_space<vmem>>, vector<1x16x64xbf16>
    %58 = vector.shape_cast %57 : vector<1x16x64xbf16> to vector<16x64xbf16>
    %cst_41 = arith.constant dense<0.000000e+00> : vector<16x16xf32>
    %59 = tpu.matmul %53, %58, %cst_41 {dimension_numbers = #tpu.dot_dimension_numbers<[1], [1], [0], [0], [0, 0, 1, 0], [], []>} : vector<16x64xbf16>, vector<16x64xbf16>, vector<16x16xf32> -> vector<16x16xf32>
    %c0_42 = arith.constant 0 : index
    %c0_43 = arith.constant 0 : index
    %c0_44 = arith.constant 0 : index
    %60 = vector.load %arg9[%c0_42, %c0_43, %c0_44] : memref<2x16x64xbf16, #tpu.memory_space<vmem>>, vector<1x16x64xbf16>
    %61 = vector.shape_cast %60 : vector<1x16x64xbf16> to vector<16x64xbf16>
    %cst_45 = arith.constant dense<0.000000e+00> : vector<16x16xf32>
    %62 = tpu.matmul %53, %61, %cst_45 {dimension_numbers = #tpu.dot_dimension_numbers<[1], [1], [0], [0], [0, 0, 1, 0], [], []>} : vector<16x64xbf16>, vector<16x64xbf16>, vector<16x16xf32> -> vector<16x16xf32>
    %63 = arith.truncf %56 : vector<16x2xf32> to vector<16x2xbf16>
    %c0_46 = arith.constant 0 : index
    %c0_47 = arith.constant 0 : index
    %c0_48 = arith.constant 0 : index
    %64 = vector.load %arg10[%c0_46, %c0_47, %c0_48] : memref<2x64x2xbf16, #tpu.memory_space<vmem>>, vector<1x64x2xbf16>
    %65 = vector.shape_cast %64 : vector<1x64x2xbf16> to vector<64x2xbf16>
    %cst_49 = arith.constant dense<0.000000e+00> : vector<16x64xf32>
    %66 = tpu.matmul %63, %65, %cst_49 {dimension_numbers = #tpu.dot_dimension_numbers<[1], [1], [0], [0], [0, 0, 1, 0], [], []>} : vector<16x2xbf16>, vector<64x2xbf16>, vector<16x64xf32> -> vector<16x64xf32>
    %c0_50 = arith.constant 0 : index
    %c0_51 = arith.constant 0 : index
    %c0_52 = arith.constant 0 : index
    %67 = vector.load %arg11[%c0_50, %c0_51, %c0_52] : memref<2x1x64xf32, #tpu.memory_space<vmem>>, vector<1x1x64xf32>
    %68 = vector.shape_cast %67 : vector<1x1x64xf32> to vector<1x64xf32>
    %69 = vector.broadcast %68 : vector<1x64xf32> to vector<16x64xf32>
    %70 = arith.addf %66, %69 : vector<16x64xf32>
    %cst_53 = arith.constant 0.000000e+00 : f32
    %71 = vector.broadcast %cst_53 : f32 to vector<16x64xf32>
    %72 = arith.maximumf %70, %71 : vector<16x64xf32>
    %73 = math.absf %70 : vector<16x64xf32>
    %cst_54 = arith.constant 0.000000e+00 : f32
    %74 = vector.broadcast %cst_54 : f32 to vector<16x64xf32>
    %75 = arith.subf %74, %73 : vector<16x64xf32>
    %76 = math.exp %75 : vector<16x64xf32>
    %77 = math.log1p %76 : vector<16x64xf32>
    %78 = arith.addf %72, %77 : vector<16x64xf32>
    %79 = arith.mulf %78, %52 : vector<16x64xf32>
    %c0_55 = arith.constant 0 : index
    %c0_56 = arith.constant 0 : index
    %c0_57 = arith.constant 0 : index
    %80 = vector.load %arg12[%c0_55, %c0_56, %c0_57] : memref<2x16x64xf32, #tpu.memory_space<vmem>>, vector<1x16x64xf32>
    %81 = vector.shape_cast %80 : vector<1x16x64xf32> to vector<16x64xf32>
    %c0_58 = arith.constant 0 : index
    %c0_59 = arith.constant 0 : index
    %c0_60 = arith.constant 0 : index
    %82 = vector.load %arg17[%c0_58, %c0_59, %c0_60] : memref<2x16x64xf32, #tpu.memory_space<vmem>>, vector<1x16x64xf32>
    %83 = vector.shape_cast %82 : vector<1x16x64xf32> to vector<16x64xf32>
    %84 = vector.extract_strided_slice %78 {offsets = [0, 0], sizes = [8, 64], strides = [1, 1]} : vector<16x64xf32> to vector<8x64xf32>
    %85 = vector.extract_strided_slice %79 {offsets = [0, 0], sizes = [8, 64], strides = [1, 1]} : vector<16x64xf32> to vector<8x64xf32>
    %86 = vector.extract_strided_slice %59 {offsets = [0, 0], sizes = [8, 16], strides = [1, 1]} : vector<16x16xf32> to vector<8x16xf32>
    %87 = vector.extract_strided_slice %62 {offsets = [0, 0], sizes = [8, 16], strides = [1, 1]} : vector<16x16xf32> to vector<8x16xf32>
    %88 = vector.shape_cast %84 : vector<8x64xf32> to vector<8x1x64xf32>
    %89 = vector.shape_cast %81 : vector<16x64xf32> to vector<1x16x64xf32>
    %90 = vector.broadcast %88 : vector<8x1x64xf32> to vector<8x16x64xf32>
    %91 = vector.broadcast %89 : vector<1x16x64xf32> to vector<8x16x64xf32>
    %92 = arith.mulf %90, %91 : vector<8x16x64xf32>
    %93 = math.exp %92 : vector<8x16x64xf32>
    %94 = vector.shape_cast %85 : vector<8x64xf32> to vector<8x1x64xf32>
    %95 = vector.shape_cast %86 : vector<8x16xf32> to vector<8x16x1xf32>
    %96 = vector.broadcast %94 : vector<8x1x64xf32> to vector<8x16x64xf32>
    %97 = vector.broadcast %95 : vector<8x16x1xf32> to vector<8x16x64xf32>
    %98 = arith.mulf %96, %97 : vector<8x16x64xf32>
    %99 = vector.extract_strided_slice %93 {offsets = [0, 0, 0], sizes = [1, 16, 64], strides = [1, 1, 1]} : vector<8x16x64xf32> to vector<1x16x64xf32>
    %100 = vector.shape_cast %99 : vector<1x16x64xf32> to vector<16x64xf32>
    %101 = arith.mulf %100, %83 : vector<16x64xf32>
    %102 = vector.extract_strided_slice %98 {offsets = [0, 0, 0], sizes = [1, 16, 64], strides = [1, 1, 1]} : vector<8x16x64xf32> to vector<1x16x64xf32>
    %103 = vector.shape_cast %102 : vector<1x16x64xf32> to vector<16x64xf32>
    %104 = arith.addf %101, %103 : vector<16x64xf32>
    %105 = vector.extract_strided_slice %93 {offsets = [1, 0, 0], sizes = [1, 16, 64], strides = [1, 1, 1]} : vector<8x16x64xf32> to vector<1x16x64xf32>
    %106 = vector.shape_cast %105 : vector<1x16x64xf32> to vector<16x64xf32>
    %107 = arith.mulf %106, %104 : vector<16x64xf32>
    %108 = vector.extract_strided_slice %98 {offsets = [1, 0, 0], sizes = [1, 16, 64], strides = [1, 1, 1]} : vector<8x16x64xf32> to vector<1x16x64xf32>
    %109 = vector.shape_cast %108 : vector<1x16x64xf32> to vector<16x64xf32>
    %110 = arith.addf %107, %109 : vector<16x64xf32>
    %111 = vector.extract_strided_slice %93 {offsets = [2, 0, 0], sizes = [1, 16, 64], strides = [1, 1, 1]} : vector<8x16x64xf32> to vector<1x16x64xf32>
    %112 = vector.shape_cast %111 : vector<1x16x64xf32> to vector<16x64xf32>
    %113 = arith.mulf %112, %110 : vector<16x64xf32>
    %114 = vector.extract_strided_slice %98 {offsets = [2, 0, 0], sizes = [1, 16, 64], strides = [1, 1, 1]} : vector<8x16x64xf32> to vector<1x16x64xf32>
    %115 = vector.shape_cast %114 : vector<1x16x64xf32> to vector<16x64xf32>
    %116 = arith.addf %113, %115 : vector<16x64xf32>
    %117 = vector.extract_strided_slice %93 {offsets = [3, 0, 0], sizes = [1, 16, 64], strides = [1, 1, 1]} : vector<8x16x64xf32> to vector<1x16x64xf32>
    %118 = vector.shape_cast %117 : vector<1x16x64xf32> to vector<16x64xf32>
    %119 = arith.mulf %118, %116 : vector<16x64xf32>
    %120 = vector.extract_strided_slice %98 {offsets = [3, 0, 0], sizes = [1, 16, 64], strides = [1, 1, 1]} : vector<8x16x64xf32> to vector<1x16x64xf32>
    %121 = vector.shape_cast %120 : vector<1x16x64xf32> to vector<16x64xf32>
    %122 = arith.addf %119, %121 : vector<16x64xf32>
    %123 = vector.extract_strided_slice %93 {offsets = [4, 0, 0], sizes = [1, 16, 64], strides = [1, 1, 1]} : vector<8x16x64xf32> to vector<1x16x64xf32>
    %124 = vector.shape_cast %123 : vector<1x16x64xf32> to vector<16x64xf32>
    %125 = arith.mulf %124, %122 : vector<16x64xf32>
    %126 = vector.extract_strided_slice %98 {offsets = [4, 0, 0], sizes = [1, 16, 64], strides = [1, 1, 1]} : vector<8x16x64xf32> to vector<1x16x64xf32>
    %127 = vector.shape_cast %126 : vector<1x16x64xf32> to vector<16x64xf32>
    %128 = arith.addf %125, %127 : vector<16x64xf32>
    %129 = vector.extract_strided_slice %93 {offsets = [5, 0, 0], sizes = [1, 16, 64], strides = [1, 1, 1]} : vector<8x16x64xf32> to vector<1x16x64xf32>
    %130 = vector.shape_cast %129 : vector<1x16x64xf32> to vector<16x64xf32>
    %131 = arith.mulf %130, %128 : vector<16x64xf32>
    %132 = vector.extract_strided_slice %98 {offsets = [5, 0, 0], sizes = [1, 16, 64], strides = [1, 1, 1]} : vector<8x16x64xf32> to vector<1x16x64xf32>
    %133 = vector.shape_cast %132 : vector<1x16x64xf32> to vector<16x64xf32>
    %134 = arith.addf %131, %133 : vector<16x64xf32>
    %135 = vector.extract_strided_slice %93 {offsets = [6, 0, 0], sizes = [1, 16, 64], strides = [1, 1, 1]} : vector<8x16x64xf32> to vector<1x16x64xf32>
    %136 = vector.shape_cast %135 : vector<1x16x64xf32> to vector<16x64xf32>
    %137 = arith.mulf %136, %134 : vector<16x64xf32>
    %138 = vector.extract_strided_slice %98 {offsets = [6, 0, 0], sizes = [1, 16, 64], strides = [1, 1, 1]} : vector<8x16x64xf32> to vector<1x16x64xf32>
    %139 = vector.shape_cast %138 : vector<1x16x64xf32> to vector<16x64xf32>
    %140 = arith.addf %137, %139 : vector<16x64xf32>
    %141 = vector.extract_strided_slice %93 {offsets = [7, 0, 0], sizes = [1, 16, 64], strides = [1, 1, 1]} : vector<8x16x64xf32> to vector<1x16x64xf32>
    %142 = vector.shape_cast %141 : vector<1x16x64xf32> to vector<16x64xf32>
    %143 = arith.mulf %142, %140 : vector<16x64xf32>
    %144 = vector.extract_strided_slice %98 {offsets = [7, 0, 0], sizes = [1, 16, 64], strides = [1, 1, 1]} : vector<8x16x64xf32> to vector<1x16x64xf32>
    %145 = vector.shape_cast %144 : vector<1x16x64xf32> to vector<16x64xf32>
    %146 = arith.addf %143, %145 : vector<16x64xf32>
    %147 = vector.shape_cast %104 : vector<16x64xf32> to vector<1x16x64xf32>
    %148 = vector.shape_cast %110 : vector<16x64xf32> to vector<1x16x64xf32>
    %149 = vector.shape_cast %116 : vector<16x64xf32> to vector<1x16x64xf32>
    %150 = vector.shape_cast %122 : vector<16x64xf32> to vector<1x16x64xf32>
    %151 = vector.shape_cast %128 : vector<16x64xf32> to vector<1x16x64xf32>
    %152 = vector.shape_cast %134 : vector<16x64xf32> to vector<1x16x64xf32>
    %153 = vector.shape_cast %140 : vector<16x64xf32> to vector<1x16x64xf32>
    %154 = vector.shape_cast %146 : vector<16x64xf32> to vector<1x16x64xf32>
    %155 = tpu.concatenate %147, %148, %149, %150, %151, %152, %153, %154 in 0 : vector<1x16x64xf32>, vector<1x16x64xf32>, vector<1x16x64xf32>, vector<1x16x64xf32>, vector<1x16x64xf32>, vector<1x16x64xf32>, vector<1x16x64xf32>, vector<1x16x64xf32> -> vector<8x16x64xf32>
    %156 = vector.shape_cast %87 : vector<8x16xf32> to vector<8x16x1xf32>
    %157 = vector.broadcast %156 : vector<8x16x1xf32> to vector<8x16x64xf32>
    %158 = arith.mulf %155, %157 : vector<8x16x64xf32>
    %cst_61 = arith.constant dense<0.000000e+00> : vector<8x64xf32>
    %159 = vector.multi_reduction <add>, %158, %cst_61 [1] : vector<8x16x64xf32> to vector<8x64xf32>
    %160 = vector.extract_strided_slice %78 {offsets = [8, 0], sizes = [8, 64], strides = [1, 1]} : vector<16x64xf32> to vector<8x64xf32>
    %161 = vector.extract_strided_slice %79 {offsets = [8, 0], sizes = [8, 64], strides = [1, 1]} : vector<16x64xf32> to vector<8x64xf32>
    %162 = vector.extract_strided_slice %59 {offsets = [8, 0], sizes = [8, 16], strides = [1, 1]} : vector<16x16xf32> to vector<8x16xf32>
    %163 = vector.extract_strided_slice %62 {offsets = [8, 0], sizes = [8, 16], strides = [1, 1]} : vector<16x16xf32> to vector<8x16xf32>
    %164 = vector.shape_cast %160 : vector<8x64xf32> to vector<8x1x64xf32>
    %165 = vector.shape_cast %81 : vector<16x64xf32> to vector<1x16x64xf32>
    %166 = vector.broadcast %164 : vector<8x1x64xf32> to vector<8x16x64xf32>
    %167 = vector.broadcast %165 : vector<1x16x64xf32> to vector<8x16x64xf32>
    %168 = arith.mulf %166, %167 : vector<8x16x64xf32>
    %169 = math.exp %168 : vector<8x16x64xf32>
    %170 = vector.shape_cast %161 : vector<8x64xf32> to vector<8x1x64xf32>
    %171 = vector.shape_cast %162 : vector<8x16xf32> to vector<8x16x1xf32>
    %172 = vector.broadcast %170 : vector<8x1x64xf32> to vector<8x16x64xf32>
    %173 = vector.broadcast %171 : vector<8x16x1xf32> to vector<8x16x64xf32>
    %174 = arith.mulf %172, %173 : vector<8x16x64xf32>
    %175 = vector.extract_strided_slice %169 {offsets = [0, 0, 0], sizes = [1, 16, 64], strides = [1, 1, 1]} : vector<8x16x64xf32> to vector<1x16x64xf32>
    %176 = vector.shape_cast %175 : vector<1x16x64xf32> to vector<16x64xf32>
    %177 = arith.mulf %176, %146 : vector<16x64xf32>
    %178 = vector.extract_strided_slice %174 {offsets = [0, 0, 0], sizes = [1, 16, 64], strides = [1, 1, 1]} : vector<8x16x64xf32> to vector<1x16x64xf32>
    %179 = vector.shape_cast %178 : vector<1x16x64xf32> to vector<16x64xf32>
    %180 = arith.addf %177, %179 : vector<16x64xf32>
    %181 = vector.extract_strided_slice %169 {offsets = [1, 0, 0], sizes = [1, 16, 64], strides = [1, 1, 1]} : vector<8x16x64xf32> to vector<1x16x64xf32>
    %182 = vector.shape_cast %181 : vector<1x16x64xf32> to vector<16x64xf32>
    %183 = arith.mulf %182, %180 : vector<16x64xf32>
    %184 = vector.extract_strided_slice %174 {offsets = [1, 0, 0], sizes = [1, 16, 64], strides = [1, 1, 1]} : vector<8x16x64xf32> to vector<1x16x64xf32>
    %185 = vector.shape_cast %184 : vector<1x16x64xf32> to vector<16x64xf32>
    %186 = arith.addf %183, %185 : vector<16x64xf32>
    %187 = vector.extract_strided_slice %169 {offsets = [2, 0, 0], sizes = [1, 16, 64], strides = [1, 1, 1]} : vector<8x16x64xf32> to vector<1x16x64xf32>
    %188 = vector.shape_cast %187 : vector<1x16x64xf32> to vector<16x64xf32>
    %189 = arith.mulf %188, %186 : vector<16x64xf32>
    %190 = vector.extract_strided_slice %174 {offsets = [2, 0, 0], sizes = [1, 16, 64], strides = [1, 1, 1]} : vector<8x16x64xf32> to vector<1x16x64xf32>
    %191 = vector.shape_cast %190 : vector<1x16x64xf32> to vector<16x64xf32>
    %192 = arith.addf %189, %191 : vector<16x64xf32>
    %193 = vector.extract_strided_slice %169 {offsets = [3, 0, 0], sizes = [1, 16, 64], strides = [1, 1, 1]} : vector<8x16x64xf32> to vector<1x16x64xf32>
    %194 = vector.shape_cast %193 : vector<1x16x64xf32> to vector<16x64xf32>
    %195 = arith.mulf %194, %192 : vector<16x64xf32>
    %196 = vector.extract_strided_slice %174 {offsets = [3, 0, 0], sizes = [1, 16, 64], strides = [1, 1, 1]} : vector<8x16x64xf32> to vector<1x16x64xf32>
    %197 = vector.shape_cast %196 : vector<1x16x64xf32> to vector<16x64xf32>
    %198 = arith.addf %195, %197 : vector<16x64xf32>
    %199 = vector.extract_strided_slice %169 {offsets = [4, 0, 0], sizes = [1, 16, 64], strides = [1, 1, 1]} : vector<8x16x64xf32> to vector<1x16x64xf32>
    %200 = vector.shape_cast %199 : vector<1x16x64xf32> to vector<16x64xf32>
    %201 = arith.mulf %200, %198 : vector<16x64xf32>
    %202 = vector.extract_strided_slice %174 {offsets = [4, 0, 0], sizes = [1, 16, 64], strides = [1, 1, 1]} : vector<8x16x64xf32> to vector<1x16x64xf32>
    %203 = vector.shape_cast %202 : vector<1x16x64xf32> to vector<16x64xf32>
    %204 = arith.addf %201, %203 : vector<16x64xf32>
    %205 = vector.extract_strided_slice %169 {offsets = [5, 0, 0], sizes = [1, 16, 64], strides = [1, 1, 1]} : vector<8x16x64xf32> to vector<1x16x64xf32>
    %206 = vector.shape_cast %205 : vector<1x16x64xf32> to vector<16x64xf32>
    %207 = arith.mulf %206, %204 : vector<16x64xf32>
    %208 = vector.extract_strided_slice %174 {offsets = [5, 0, 0], sizes = [1, 16, 64], strides = [1, 1, 1]} : vector<8x16x64xf32> to vector<1x16x64xf32>
    %209 = vector.shape_cast %208 : vector<1x16x64xf32> to vector<16x64xf32>
    %210 = arith.addf %207, %209 : vector<16x64xf32>
    %211 = vector.extract_strided_slice %169 {offsets = [6, 0, 0], sizes = [1, 16, 64], strides = [1, 1, 1]} : vector<8x16x64xf32> to vector<1x16x64xf32>
    %212 = vector.shape_cast %211 : vector<1x16x64xf32> to vector<16x64xf32>
    %213 = arith.mulf %212, %210 : vector<16x64xf32>
    %214 = vector.extract_strided_slice %174 {offsets = [6, 0, 0], sizes = [1, 16, 64], strides = [1, 1, 1]} : vector<8x16x64xf32> to vector<1x16x64xf32>
    %215 = vector.shape_cast %214 : vector<1x16x64xf32> to vector<16x64xf32>
    %216 = arith.addf %213, %215 : vector<16x64xf32>
    %217 = vector.extract_strided_slice %169 {offsets = [7, 0, 0], sizes = [1, 16, 64], strides = [1, 1, 1]} : vector<8x16x64xf32> to vector<1x16x64xf32>
    %218 = vector.shape_cast %217 : vector<1x16x64xf32> to vector<16x64xf32>
    %219 = arith.mulf %218, %216 : vector<16x64xf32>
    %220 = vector.extract_strided_slice %174 {offsets = [7, 0, 0], sizes = [1, 16, 64], strides = [1, 1, 1]} : vector<8x16x64xf32> to vector<1x16x64xf32>
    %221 = vector.shape_cast %220 : vector<1x16x64xf32> to vector<16x64xf32>
    %222 = arith.addf %219, %221 : vector<16x64xf32>
    %223 = vector.shape_cast %180 : vector<16x64xf32> to vector<1x16x64xf32>
    %224 = vector.shape_cast %186 : vector<16x64xf32> to vector<1x16x64xf32>
    %225 = vector.shape_cast %192 : vector<16x64xf32> to vector<1x16x64xf32>
    %226 = vector.shape_cast %198 : vector<16x64xf32> to vector<1x16x64xf32>
    %227 = vector.shape_cast %204 : vector<16x64xf32> to vector<1x16x64xf32>
    %228 = vector.shape_cast %210 : vector<16x64xf32> to vector<1x16x64xf32>
    %229 = vector.shape_cast %216 : vector<16x64xf32> to vector<1x16x64xf32>
    %230 = vector.shape_cast %222 : vector<16x64xf32> to vector<1x16x64xf32>
    %231 = tpu.concatenate %223, %224, %225, %226, %227, %228, %229, %230 in 0 : vector<1x16x64xf32>, vector<1x16x64xf32>, vector<1x16x64xf32>, vector<1x16x64xf32>, vector<1x16x64xf32>, vector<1x16x64xf32>, vector<1x16x64xf32>, vector<1x16x64xf32> -> vector<8x16x64xf32>
    %232 = vector.shape_cast %163 : vector<8x16xf32> to vector<8x16x1xf32>
    %233 = vector.broadcast %232 : vector<8x16x1xf32> to vector<8x16x64xf32>
    %234 = arith.mulf %231, %233 : vector<8x16x64xf32>
    %cst_62 = arith.constant dense<0.000000e+00> : vector<8x64xf32>
    %235 = vector.multi_reduction <add>, %234, %cst_62 [1] : vector<8x16x64xf32> to vector<8x64xf32>
    %c0_63 = arith.constant 0 : index
    %c0_64 = arith.constant 0 : index
    %c0_65 = arith.constant 0 : index
    %236 = vector.load %arg17[%c0_63, %c0_64, %c0_65] : memref<2x16x64xf32, #tpu.memory_space<vmem>>, vector<1x16x64xf32>
    %237 = vector.shape_cast %236 : vector<1x16x64xf32> to vector<16x64xf32>
    %238 = vector.shape_cast %222 : vector<16x64xf32> to vector<1x16x64xf32>
    tpu.vector_store %arg17[%c0_63, %c0_64, %c0_65], %238 {strides = array<i32>} : memref<2x16x64xf32, #tpu.memory_space<vmem>>, vector<1x16x64xf32>,
    %239 = tpu.concatenate %159, %235 in 0 : vector<8x64xf32>, vector<8x64xf32> -> vector<16x64xf32>
    %c0_66 = arith.constant 0 : index
    %c0_67 = arith.constant 0 : index
    %c0_68 = arith.constant 0 : index
    %240 = vector.load %arg13[%c0_66, %c0_67, %c0_68] : memref<2x1x64xf32, #tpu.memory_space<vmem>>, vector<1x1x64xf32>
    %241 = vector.shape_cast %240 : vector<1x1x64xf32> to vector<1x64xf32>
    %242 = vector.broadcast %241 : vector<1x64xf32> to vector<16x64xf32>
    %243 = arith.mulf %52, %242 : vector<16x64xf32>
    %244 = arith.addf %239, %243 : vector<16x64xf32>
    %cst_69 = arith.constant 0.000000e+00 : f32
    %245 = vector.broadcast %cst_69 : f32 to vector<16x64xf32>
    %246 = arith.subf %245, %11 : vector<16x64xf32>
    %247 = math.exp %246 : vector<16x64xf32>
    %cst_70 = arith.constant 1.000000e+00 : f32
    %248 = vector.broadcast %cst_70 : f32 to vector<16x64xf32>
    %249 = arith.addf %248, %247 : vector<16x64xf32>
    %cst_71 = arith.constant 1.000000e+00 : f32
    %250 = vector.broadcast %cst_71 : f32 to vector<16x64xf32>
    %251 = arith.divf %250, %249 : vector<16x64xf32>
    %252 = arith.mulf %11, %251 : vector<16x64xf32>
    %253 = arith.mulf %244, %252 : vector<16x64xf32>
    %254 = arith.addf %5, %253 : vector<16x64xf32>
    %c1 = arith.constant 1 : index
    %c0_72 = arith.constant 0 : index
    %c0_73 = arith.constant 0 : index
    %255 = vector.load %arg3[%c1, %c0_72, %c0_73] : memref<2x64x32xbf16, #tpu.memory_space<vmem>>, vector<1x64x32xbf16>
    %256 = vector.shape_cast %255 : vector<1x64x32xbf16> to vector<64x32xbf16>
    %cst_74 = arith.constant dense<0.000000e+00> : vector<16x64xf32>
    %257 = tpu.matmul %4, %256, %cst_74 {dimension_numbers = #tpu.dot_dimension_numbers<[1], [1], [0], [0], [0, 0, 1, 0], [], []>} : vector<16x32xbf16>, vector<64x32xbf16>, vector<16x64xf32> -> vector<16x64xf32>
    %c1_75 = arith.constant 1 : index
    %c0_76 = arith.constant 0 : index
    %c0_77 = arith.constant 0 : index
    %258 = vector.load %arg4[%c1_75, %c0_76, %c0_77] : memref<2x64x32xbf16, #tpu.memory_space<vmem>>, vector<1x64x32xbf16>
    %259 = vector.shape_cast %258 : vector<1x64x32xbf16> to vector<64x32xbf16>
    %cst_78 = arith.constant dense<0.000000e+00> : vector<16x64xf32>
    %260 = tpu.matmul %4, %259, %cst_78 {dimension_numbers = #tpu.dot_dimension_numbers<[1], [1], [0], [0], [0, 0, 1, 0], [], []>} : vector<16x32xbf16>, vector<64x32xbf16>, vector<16x64xf32> -> vector<16x64xf32>
    %c1_79 = arith.constant 1 : index
    %c0_80 = arith.constant 0 : index
    %c0_81 = arith.constant 0 : index
    %261 = vector.load %arg18[%c1_79, %c0_80, %c0_81] : memref<2x8x64xf32, #tpu.memory_space<vmem>>, vector<1x8x64xf32>
    %262 = vector.shape_cast %261 : vector<1x8x64xf32> to vector<8x64xf32>
    %c0_82 = arith.constant 0 : index
    %c0_83 = arith.constant 0 : index
    %263 = vector.load %arg16[%c0_82, %c0_83] : memref<24x64xf32, #tpu.memory_space<vmem>>, vector<8x64xf32>
    tpu.vector_store %arg16[%c0_82, %c0_83], %262 {strides = array<i32>} : memref<24x64xf32, #tpu.memory_space<vmem>>, vector<8x64xf32>,
    %c8_84 = arith.constant 8 : index
    %c0_85 = arith.constant 0 : index
    %264 = vector.load %arg16[%c8_84, %c0_85] : memref<24x64xf32, #tpu.memory_space<vmem>>, vector<16x64xf32>
    tpu.vector_store %arg16[%c8_84, %c0_85], %257 {strides = array<i32>} : memref<24x64xf32, #tpu.memory_space<vmem>>, vector<16x64xf32>,
    %265 = vector.extract_strided_slice %257 {offsets = [8, 0], sizes = [8, 64], strides = [1, 1]} : vector<16x64xf32> to vector<8x64xf32>
    %c1_86 = arith.constant 1 : index
    %c0_87 = arith.constant 0 : index
    %c0_88 = arith.constant 0 : index
    %266 = vector.load %arg18[%c1_86, %c0_87, %c0_88] : memref<2x8x64xf32, #tpu.memory_space<vmem>>, vector<1x8x64xf32>
    %267 = vector.shape_cast %266 : vector<1x8x64xf32> to vector<8x64xf32>
    %268 = vector.shape_cast %265 : vector<8x64xf32> to vector<1x8x64xf32>
    tpu.vector_store %arg18[%c1_86, %c0_87, %c0_88], %268 {strides = array<i32>} : memref<2x8x64xf32, #tpu.memory_space<vmem>>, vector<1x8x64xf32>,
    %c1_89 = arith.constant 1 : index
    %c0_90 = arith.constant 0 : index
    %c0_91 = arith.constant 0 : index
    %269 = vector.load %arg5[%c1_89, %c0_90, %c0_91] : memref<2x4x64xf32, #tpu.memory_space<vmem>>, vector<1x4x64xf32>
    %270 = vector.shape_cast %269 : vector<1x4x64xf32> to vector<4x64xf32>
    %c5_92 = arith.constant 5 : index
    %c0_93 = arith.constant 0 : index
    %271 = vector.load %arg16[%c5_92, %c0_93] : memref<24x64xf32, #tpu.memory_space<vmem>>, vector<16x64xf32>
    %272 = vector.extract_strided_slice %270 {offsets = [0, 0], sizes = [1, 64], strides = [1, 1]} : vector<4x64xf32> to vector<1x64xf32>
    %273 = vector.broadcast %272 : vector<1x64xf32> to vector<16x64xf32>
    %274 = arith.mulf %271, %273 : vector<16x64xf32>
    %c6_94 = arith.constant 6 : index
    %c0_95 = arith.constant 0 : index
    %275 = vector.load %arg16[%c6_94, %c0_95] : memref<24x64xf32, #tpu.memory_space<vmem>>, vector<16x64xf32>
    %276 = vector.extract_strided_slice %270 {offsets = [1, 0], sizes = [1, 64], strides = [1, 1]} : vector<4x64xf32> to vector<1x64xf32>
    %277 = vector.broadcast %276 : vector<1x64xf32> to vector<16x64xf32>
    %278 = arith.mulf %275, %277 : vector<16x64xf32>
    %279 = arith.addf %274, %278 : vector<16x64xf32>
    %c7_96 = arith.constant 7 : index
    %c0_97 = arith.constant 0 : index
    %280 = vector.load %arg16[%c7_96, %c0_97] : memref<24x64xf32, #tpu.memory_space<vmem>>, vector<16x64xf32>
    %281 = vector.extract_strided_slice %270 {offsets = [2, 0], sizes = [1, 64], strides = [1, 1]} : vector<4x64xf32> to vector<1x64xf32>
    %282 = vector.broadcast %281 : vector<1x64xf32> to vector<16x64xf32>
    %283 = arith.mulf %280, %282 : vector<16x64xf32>
    %284 = arith.addf %279, %283 : vector<16x64xf32>
    %c8_98 = arith.constant 8 : index
    %c0_99 = arith.constant 0 : index
    %285 = vector.load %arg16[%c8_98, %c0_99] : memref<24x64xf32, #tpu.memory_space<vmem>>, vector<16x64xf32>
    %286 = vector.extract_strided_slice %270 {offsets = [3, 0], sizes = [1, 64], strides = [1, 1]} : vector<4x64xf32> to vector<1x64xf32>
    %287 = vector.broadcast %286 : vector<1x64xf32> to vector<16x64xf32>
    %288 = arith.mulf %285, %287 : vector<16x64xf32>
    %289 = arith.addf %284, %288 : vector<16x64xf32>
    %c1_100 = arith.constant 1 : index
    %c0_101 = arith.constant 0 : index
    %c0_102 = arith.constant 0 : index
    %290 = vector.load %arg6[%c1_100, %c0_101, %c0_102] : memref<2x1x64xf32, #tpu.memory_space<vmem>>, vector<1x1x64xf32>
    %291 = vector.shape_cast %290 : vector<1x1x64xf32> to vector<1x64xf32>
    %292 = vector.broadcast %291 : vector<1x64xf32> to vector<16x64xf32>
    %293 = arith.addf %289, %292 : vector<16x64xf32>
    %cst_103 = arith.constant 0.000000e+00 : f32
    %294 = vector.broadcast %cst_103 : f32 to vector<16x64xf32>
    %295 = arith.subf %294, %293 : vector<16x64xf32>
    %296 = math.exp %295 : vector<16x64xf32>
    %cst_104 = arith.constant 1.000000e+00 : f32
    %297 = vector.broadcast %cst_104 : f32 to vector<16x64xf32>
    %298 = arith.addf %297, %296 : vector<16x64xf32>
    %cst_105 = arith.constant 1.000000e+00 : f32
    %299 = vector.broadcast %cst_105 : f32 to vector<16x64xf32>
    %300 = arith.divf %299, %298 : vector<16x64xf32>
    %301 = arith.mulf %293, %300 : vector<16x64xf32>
    %302 = arith.truncf %301 : vector<16x64xf32> to vector<16x64xbf16>
    %c1_106 = arith.constant 1 : index
    %c0_107 = arith.constant 0 : index
    %c0_108 = arith.constant 0 : index
    %303 = vector.load %arg7[%c1_106, %c0_107, %c0_108] : memref<2x2x64xbf16, #tpu.memory_space<vmem>>, vector<1x2x64xbf16>
    %304 = vector.shape_cast %303 : vector<1x2x64xbf16> to vector<2x64xbf16>
    %cst_109 = arith.constant dense<0.000000e+00> : vector<16x2xf32>
    %305 = tpu.matmul %302, %304, %cst_109 {dimension_numbers = #tpu.dot_dimension_numbers<[1], [1], [0], [0], [0, 0, 1, 0], [], []>} : vector<16x64xbf16>, vector<2x64xbf16>, vector<16x2xf32> -> vector<16x2xf32>
    %c1_110 = arith.constant 1 : index
    %c0_111 = arith.constant 0 : index
    %c0_112 = arith.constant 0 : index
    %306 = vector.load %arg8[%c1_110, %c0_111, %c0_112] : memref<2x16x64xbf16, #tpu.memory_space<vmem>>, vector<1x16x64xbf16>
    %307 = vector.shape_cast %306 : vector<1x16x64xbf16> to vector<16x64xbf16>
    %cst_113 = arith.constant dense<0.000000e+00> : vector<16x16xf32>
    %308 = tpu.matmul %302, %307, %cst_113 {dimension_numbers = #tpu.dot_dimension_numbers<[1], [1], [0], [0], [0, 0, 1, 0], [], []>} : vector<16x64xbf16>, vector<16x64xbf16>, vector<16x16xf32> -> vector<16x16xf32>
    %c1_114 = arith.constant 1 : index
    %c0_115 = arith.constant 0 : index
    %c0_116 = arith.constant 0 : index
    %309 = vector.load %arg9[%c1_114, %c0_115, %c0_116] : memref<2x16x64xbf16, #tpu.memory_space<vmem>>, vector<1x16x64xbf16>
    %310 = vector.shape_cast %309 : vector<1x16x64xbf16> to vector<16x64xbf16>
    %cst_117 = arith.constant dense<0.000000e+00> : vector<16x16xf32>
    %311 = tpu.matmul %302, %310, %cst_117 {dimension_numbers = #tpu.dot_dimension_numbers<[1], [1], [0], [0], [0, 0, 1, 0], [], []>} : vector<16x64xbf16>, vector<16x64xbf16>, vector<16x16xf32> -> vector<16x16xf32>
    %312 = arith.truncf %305 : vector<16x2xf32> to vector<16x2xbf16>
    %c1_118 = arith.constant 1 : index
    %c0_119 = arith.constant 0 : index
    %c0_120 = arith.constant 0 : index
    %313 = vector.load %arg10[%c1_118, %c0_119, %c0_120] : memref<2x64x2xbf16, #tpu.memory_space<vmem>>, vector<1x64x2xbf16>
    %314 = vector.shape_cast %313 : vector<1x64x2xbf16> to vector<64x2xbf16>
    %cst_121 = arith.constant dense<0.000000e+00> : vector<16x64xf32>
    %315 = tpu.matmul %312, %314, %cst_121 {dimension_numbers = #tpu.dot_dimension_numbers<[1], [1], [0], [0], [0, 0, 1, 0], [], []>} : vector<16x2xbf16>, vector<64x2xbf16>, vector<16x64xf32> -> vector<16x64xf32>
    %c1_122 = arith.constant 1 : index
    %c0_123 = arith.constant 0 : index
    %c0_124 = arith.constant 0 : index
    %316 = vector.load %arg11[%c1_122, %c0_123, %c0_124] : memref<2x1x64xf32, #tpu.memory_space<vmem>>, vector<1x1x64xf32>
    %317 = vector.shape_cast %316 : vector<1x1x64xf32> to vector<1x64xf32>
    %318 = vector.broadcast %317 : vector<1x64xf32> to vector<16x64xf32>
    %319 = arith.addf %315, %318 : vector<16x64xf32>
    %cst_125 = arith.constant 0.000000e+00 : f32
    %320 = vector.broadcast %cst_125 : f32 to vector<16x64xf32>
    %321 = arith.maximumf %319, %320 : vector<16x64xf32>
    %322 = math.absf %319 : vector<16x64xf32>
    %cst_126 = arith.constant 0.000000e+00 : f32
    %323 = vector.broadcast %cst_126 : f32 to vector<16x64xf32>
    %324 = arith.subf %323, %322 : vector<16x64xf32>
    %325 = math.exp %324 : vector<16x64xf32>
    %326 = math.log1p %325 : vector<16x64xf32>
    %327 = arith.addf %321, %326 : vector<16x64xf32>
    %328 = arith.mulf %327, %301 : vector<16x64xf32>
    %c1_127 = arith.constant 1 : index
    %c0_128 = arith.constant 0 : index
    %c0_129 = arith.constant 0 : index
    %329 = vector.load %arg12[%c1_127, %c0_128, %c0_129] : memref<2x16x64xf32, #tpu.memory_space<vmem>>, vector<1x16x64xf32>
    %330 = vector.shape_cast %329 : vector<1x16x64xf32> to vector<16x64xf32>
    %c1_130 = arith.constant 1 : index
    %c0_131 = arith.constant 0 : index
    %c0_132 = arith.constant 0 : index
    %331 = vector.load %arg17[%c1_130, %c0_131, %c0_132] : memref<2x16x64xf32, #tpu.memory_space<vmem>>, vector<1x16x64xf32>
    %332 = vector.shape_cast %331 : vector<1x16x64xf32> to vector<16x64xf32>
    %333 = vector.extract_strided_slice %327 {offsets = [0, 0], sizes = [8, 64], strides = [1, 1]} : vector<16x64xf32> to vector<8x64xf32>
    %334 = vector.extract_strided_slice %328 {offsets = [0, 0], sizes = [8, 64], strides = [1, 1]} : vector<16x64xf32> to vector<8x64xf32>
    %335 = vector.extract_strided_slice %308 {offsets = [0, 0], sizes = [8, 16], strides = [1, 1]} : vector<16x16xf32> to vector<8x16xf32>
    %336 = vector.extract_strided_slice %311 {offsets = [0, 0], sizes = [8, 16], strides = [1, 1]} : vector<16x16xf32> to vector<8x16xf32>
    %337 = vector.shape_cast %333 : vector<8x64xf32> to vector<8x1x64xf32>
    %338 = vector.shape_cast %330 : vector<16x64xf32> to vector<1x16x64xf32>
    %339 = vector.broadcast %337 : vector<8x1x64xf32> to vector<8x16x64xf32>
    %340 = vector.broadcast %338 : vector<1x16x64xf32> to vector<8x16x64xf32>
    %341 = arith.mulf %339, %340 : vector<8x16x64xf32>
    %342 = math.exp %341 : vector<8x16x64xf32>
    %343 = vector.shape_cast %334 : vector<8x64xf32> to vector<8x1x64xf32>
    %344 = vector.shape_cast %335 : vector<8x16xf32> to vector<8x16x1xf32>
    %345 = vector.broadcast %343 : vector<8x1x64xf32> to vector<8x16x64xf32>
    %346 = vector.broadcast %344 : vector<8x16x1xf32> to vector<8x16x64xf32>
    %347 = arith.mulf %345, %346 : vector<8x16x64xf32>
    %348 = vector.extract_strided_slice %342 {offsets = [0, 0, 0], sizes = [1, 16, 64], strides = [1, 1, 1]} : vector<8x16x64xf32> to vector<1x16x64xf32>
    %349 = vector.shape_cast %348 : vector<1x16x64xf32> to vector<16x64xf32>
    %350 = arith.mulf %349, %332 : vector<16x64xf32>
    %351 = vector.extract_strided_slice %347 {offsets = [0, 0, 0], sizes = [1, 16, 64], strides = [1, 1, 1]} : vector<8x16x64xf32> to vector<1x16x64xf32>
    %352 = vector.shape_cast %351 : vector<1x16x64xf32> to vector<16x64xf32>
    %353 = arith.addf %350, %352 : vector<16x64xf32>
    %354 = vector.extract_strided_slice %342 {offsets = [1, 0, 0], sizes = [1, 16, 64], strides = [1, 1, 1]} : vector<8x16x64xf32> to vector<1x16x64xf32>
    %355 = vector.shape_cast %354 : vector<1x16x64xf32> to vector<16x64xf32>
    %356 = arith.mulf %355, %353 : vector<16x64xf32>
    %357 = vector.extract_strided_slice %347 {offsets = [1, 0, 0], sizes = [1, 16, 64], strides = [1, 1, 1]} : vector<8x16x64xf32> to vector<1x16x64xf32>
    %358 = vector.shape_cast %357 : vector<1x16x64xf32> to vector<16x64xf32>
    %359 = arith.addf %356, %358 : vector<16x64xf32>
    %360 = vector.extract_strided_slice %342 {offsets = [2, 0, 0], sizes = [1, 16, 64], strides = [1, 1, 1]} : vector<8x16x64xf32> to vector<1x16x64xf32>
    %361 = vector.shape_cast %360 : vector<1x16x64xf32> to vector<16x64xf32>
    %362 = arith.mulf %361, %359 : vector<16x64xf32>
    %363 = vector.extract_strided_slice %347 {offsets = [2, 0, 0], sizes = [1, 16, 64], strides = [1, 1, 1]} : vector<8x16x64xf32> to vector<1x16x64xf32>
    %364 = vector.shape_cast %363 : vector<1x16x64xf32> to vector<16x64xf32>
    %365 = arith.addf %362, %364 : vector<16x64xf32>
    %366 = vector.extract_strided_slice %342 {offsets = [3, 0, 0], sizes = [1, 16, 64], strides = [1, 1, 1]} : vector<8x16x64xf32> to vector<1x16x64xf32>
    %367 = vector.shape_cast %366 : vector<1x16x64xf32> to vector<16x64xf32>
    %368 = arith.mulf %367, %365 : vector<16x64xf32>
    %369 = vector.extract_strided_slice %347 {offsets = [3, 0, 0], sizes = [1, 16, 64], strides = [1, 1, 1]} : vector<8x16x64xf32> to vector<1x16x64xf32>
    %370 = vector.shape_cast %369 : vector<1x16x64xf32> to vector<16x64xf32>
    %371 = arith.addf %368, %370 : vector<16x64xf32>
    %372 = vector.extract_strided_slice %342 {offsets = [4, 0, 0], sizes = [1, 16, 64], strides = [1, 1, 1]} : vector<8x16x64xf32> to vector<1x16x64xf32>
    %373 = vector.shape_cast %372 : vector<1x16x64xf32> to vector<16x64xf32>
    %374 = arith.mulf %373, %371 : vector<16x64xf32>
    %375 = vector.extract_strided_slice %347 {offsets = [4, 0, 0], sizes = [1, 16, 64], strides = [1, 1, 1]} : vector<8x16x64xf32> to vector<1x16x64xf32>
    %376 = vector.shape_cast %375 : vector<1x16x64xf32> to vector<16x64xf32>
    %377 = arith.addf %374, %376 : vector<16x64xf32>
    %378 = vector.extract_strided_slice %342 {offsets = [5, 0, 0], sizes = [1, 16, 64], strides = [1, 1, 1]} : vector<8x16x64xf32> to vector<1x16x64xf32>
    %379 = vector.shape_cast %378 : vector<1x16x64xf32> to vector<16x64xf32>
    %380 = arith.mulf %379, %377 : vector<16x64xf32>
    %381 = vector.extract_strided_slice %347 {offsets = [5, 0, 0], sizes = [1, 16, 64], strides = [1, 1, 1]} : vector<8x16x64xf32> to vector<1x16x64xf32>
    %382 = vector.shape_cast %381 : vector<1x16x64xf32> to vector<16x64xf32>
    %383 = arith.addf %380, %382 : vector<16x64xf32>
    %384 = vector.extract_strided_slice %342 {offsets = [6, 0, 0], sizes = [1, 16, 64], strides = [1, 1, 1]} : vector<8x16x64xf32> to vector<1x16x64xf32>
    %385 = vector.shape_cast %384 : vector<1x16x64xf32> to vector<16x64xf32>
    %386 = arith.mulf %385, %383 : vector<16x64xf32>
    %387 = vector.extract_strided_slice %347 {offsets = [6, 0, 0], sizes = [1, 16, 64], strides = [1, 1, 1]} : vector<8x16x64xf32> to vector<1x16x64xf32>
    %388 = vector.shape_cast %387 : vector<1x16x64xf32> to vector<16x64xf32>
    %389 = arith.addf %386, %388 : vector<16x64xf32>
    %390 = vector.extract_strided_slice %342 {offsets = [7, 0, 0], sizes = [1, 16, 64], strides = [1, 1, 1]} : vector<8x16x64xf32> to vector<1x16x64xf32>
    %391 = vector.shape_cast %390 : vector<1x16x64xf32> to vector<16x64xf32>
    %392 = arith.mulf %391, %389 : vector<16x64xf32>
    %393 = vector.extract_strided_slice %347 {offsets = [7, 0, 0], sizes = [1, 16, 64], strides = [1, 1, 1]} : vector<8x16x64xf32> to vector<1x16x64xf32>
    %394 = vector.shape_cast %393 : vector<1x16x64xf32> to vector<16x64xf32>
    %395 = arith.addf %392, %394 : vector<16x64xf32>
    %396 = vector.shape_cast %353 : vector<16x64xf32> to vector<1x16x64xf32>
    %397 = vector.shape_cast %359 : vector<16x64xf32> to vector<1x16x64xf32>
    %398 = vector.shape_cast %365 : vector<16x64xf32> to vector<1x16x64xf32>
    %399 = vector.shape_cast %371 : vector<16x64xf32> to vector<1x16x64xf32>
    %400 = vector.shape_cast %377 : vector<16x64xf32> to vector<1x16x64xf32>
    %401 = vector.shape_cast %383 : vector<16x64xf32> to vector<1x16x64xf32>
    %402 = vector.shape_cast %389 : vector<16x64xf32> to vector<1x16x64xf32>
    %403 = vector.shape_cast %395 : vector<16x64xf32> to vector<1x16x64xf32>
    %404 = tpu.concatenate %396, %397, %398, %399, %400, %401, %402, %403 in 0 : vector<1x16x64xf32>, vector<1x16x64xf32>, vector<1x16x64xf32>, vector<1x16x64xf32>, vector<1x16x64xf32>, vector<1x16x64xf32>, vector<1x16x64xf32>, vector<1x16x64xf32> -> vector<8x16x64xf32>
    %405 = vector.shape_cast %336 : vector<8x16xf32> to vector<8x16x1xf32>
    %406 = vector.broadcast %405 : vector<8x16x1xf32> to vector<8x16x64xf32>
    %407 = arith.mulf %404, %406 : vector<8x16x64xf32>
    %cst_133 = arith.constant dense<0.000000e+00> : vector<8x64xf32>
    %408 = vector.multi_reduction <add>, %407, %cst_133 [1] : vector<8x16x64xf32> to vector<8x64xf32>
    %409 = vector.extract_strided_slice %327 {offsets = [8, 0], sizes = [8, 64], strides = [1, 1]} : vector<16x64xf32> to vector<8x64xf32>
    %410 = vector.extract_strided_slice %328 {offsets = [8, 0], sizes = [8, 64], strides = [1, 1]} : vector<16x64xf32> to vector<8x64xf32>
    %411 = vector.extract_strided_slice %308 {offsets = [8, 0], sizes = [8, 16], strides = [1, 1]} : vector<16x16xf32> to vector<8x16xf32>
    %412 = vector.extract_strided_slice %311 {offsets = [8, 0], sizes = [8, 16], strides = [1, 1]} : vector<16x16xf32> to vector<8x16xf32>
    %413 = vector.shape_cast %409 : vector<8x64xf32> to vector<8x1x64xf32>
    %414 = vector.shape_cast %330 : vector<16x64xf32> to vector<1x16x64xf32>
    %415 = vector.broadcast %413 : vector<8x1x64xf32> to vector<8x16x64xf32>
    %416 = vector.broadcast %414 : vector<1x16x64xf32> to vector<8x16x64xf32>
    %417 = arith.mulf %415, %416 : vector<8x16x64xf32>
    %418 = math.exp %417 : vector<8x16x64xf32>
    %419 = vector.shape_cast %410 : vector<8x64xf32> to vector<8x1x64xf32>
    %420 = vector.shape_cast %411 : vector<8x16xf32> to vector<8x16x1xf32>
    %421 = vector.broadcast %419 : vector<8x1x64xf32> to vector<8x16x64xf32>
    %422 = vector.broadcast %420 : vector<8x16x1xf32> to vector<8x16x64xf32>
    %423 = arith.mulf %421, %422 : vector<8x16x64xf32>
    %424 = vector.extract_strided_slice %418 {offsets = [0, 0, 0], sizes = [1, 16, 64], strides = [1, 1, 1]} : vector<8x16x64xf32> to vector<1x16x64xf32>
    %425 = vector.shape_cast %424 : vector<1x16x64xf32> to vector<16x64xf32>
    %426 = arith.mulf %425, %395 : vector<16x64xf32>
    %427 = vector.extract_strided_slice %423 {offsets = [0, 0, 0], sizes = [1, 16, 64], strides = [1, 1, 1]} : vector<8x16x64xf32> to vector<1x16x64xf32>
    %428 = vector.shape_cast %427 : vector<1x16x64xf32> to vector<16x64xf32>
    %429 = arith.addf %426, %428 : vector<16x64xf32>
    %430 = vector.extract_strided_slice %418 {offsets = [1, 0, 0], sizes = [1, 16, 64], strides = [1, 1, 1]} : vector<8x16x64xf32> to vector<1x16x64xf32>
    %431 = vector.shape_cast %430 : vector<1x16x64xf32> to vector<16x64xf32>
    %432 = arith.mulf %431, %429 : vector<16x64xf32>
    %433 = vector.extract_strided_slice %423 {offsets = [1, 0, 0], sizes = [1, 16, 64], strides = [1, 1, 1]} : vector<8x16x64xf32> to vector<1x16x64xf32>
    %434 = vector.shape_cast %433 : vector<1x16x64xf32> to vector<16x64xf32>
    %435 = arith.addf %432, %434 : vector<16x64xf32>
    %436 = vector.extract_strided_slice %418 {offsets = [2, 0, 0], sizes = [1, 16, 64], strides = [1, 1, 1]} : vector<8x16x64xf32> to vector<1x16x64xf32>
    %437 = vector.shape_cast %436 : vector<1x16x64xf32> to vector<16x64xf32>
    %438 = arith.mulf %437, %435 : vector<16x64xf32>
    %439 = vector.extract_strided_slice %423 {offsets = [2, 0, 0], sizes = [1, 16, 64], strides = [1, 1, 1]} : vector<8x16x64xf32> to vector<1x16x64xf32>
    %440 = vector.shape_cast %439 : vector<1x16x64xf32> to vector<16x64xf32>
    %441 = arith.addf %438, %440 : vector<16x64xf32>
    %442 = vector.extract_strided_slice %418 {offsets = [3, 0, 0], sizes = [1, 16, 64], strides = [1, 1, 1]} : vector<8x16x64xf32> to vector<1x16x64xf32>
    %443 = vector.shape_cast %442 : vector<1x16x64xf32> to vector<16x64xf32>
    %444 = arith.mulf %443, %441 : vector<16x64xf32>
    %445 = vector.extract_strided_slice %423 {offsets = [3, 0, 0], sizes = [1, 16, 64], strides = [1, 1, 1]} : vector<8x16x64xf32> to vector<1x16x64xf32>
    %446 = vector.shape_cast %445 : vector<1x16x64xf32> to vector<16x64xf32>
    %447 = arith.addf %444, %446 : vector<16x64xf32>
    %448 = vector.extract_strided_slice %418 {offsets = [4, 0, 0], sizes = [1, 16, 64], strides = [1, 1, 1]} : vector<8x16x64xf32> to vector<1x16x64xf32>
    %449 = vector.shape_cast %448 : vector<1x16x64xf32> to vector<16x64xf32>
    %450 = arith.mulf %449, %447 : vector<16x64xf32>
    %451 = vector.extract_strided_slice %423 {offsets = [4, 0, 0], sizes = [1, 16, 64], strides = [1, 1, 1]} : vector<8x16x64xf32> to vector<1x16x64xf32>
    %452 = vector.shape_cast %451 : vector<1x16x64xf32> to vector<16x64xf32>
    %453 = arith.addf %450, %452 : vector<16x64xf32>
    %454 = vector.extract_strided_slice %418 {offsets = [5, 0, 0], sizes = [1, 16, 64], strides = [1, 1, 1]} : vector<8x16x64xf32> to vector<1x16x64xf32>
    %455 = vector.shape_cast %454 : vector<1x16x64xf32> to vector<16x64xf32>
    %456 = arith.mulf %455, %453 : vector<16x64xf32>
    %457 = vector.extract_strided_slice %423 {offsets = [5, 0, 0], sizes = [1, 16, 64], strides = [1, 1, 1]} : vector<8x16x64xf32> to vector<1x16x64xf32>
    %458 = vector.shape_cast %457 : vector<1x16x64xf32> to vector<16x64xf32>
    %459 = arith.addf %456, %458 : vector<16x64xf32>
    %460 = vector.extract_strided_slice %418 {offsets = [6, 0, 0], sizes = [1, 16, 64], strides = [1, 1, 1]} : vector<8x16x64xf32> to vector<1x16x64xf32>
    %461 = vector.shape_cast %460 : vector<1x16x64xf32> to vector<16x64xf32>
    %462 = arith.mulf %461, %459 : vector<16x64xf32>
    %463 = vector.extract_strided_slice %423 {offsets = [6, 0, 0], sizes = [1, 16, 64], strides = [1, 1, 1]} : vector<8x16x64xf32> to vector<1x16x64xf32>
    %464 = vector.shape_cast %463 : vector<1x16x64xf32> to vector<16x64xf32>
    %465 = arith.addf %462, %464 : vector<16x64xf32>
    %466 = vector.extract_strided_slice %418 {offsets = [7, 0, 0], sizes = [1, 16, 64], strides = [1, 1, 1]} : vector<8x16x64xf32> to vector<1x16x64xf32>
    %467 = vector.shape_cast %466 : vector<1x16x64xf32> to vector<16x64xf32>
    %468 = arith.mulf %467, %465 : vector<16x64xf32>
    %469 = vector.extract_strided_slice %423 {offsets = [7, 0, 0], sizes = [1, 16, 64], strides = [1, 1, 1]} : vector<8x16x64xf32> to vector<1x16x64xf32>
    %470 = vector.shape_cast %469 : vector<1x16x64xf32> to vector<16x64xf32>
    %471 = arith.addf %468, %470 : vector<16x64xf32>
    %472 = vector.shape_cast %429 : vector<16x64xf32> to vector<1x16x64xf32>
    %473 = vector.shape_cast %435 : vector<16x64xf32> to vector<1x16x64xf32>
    %474 = vector.shape_cast %441 : vector<16x64xf32> to vector<1x16x64xf32>
    %475 = vector.shape_cast %447 : vector<16x64xf32> to vector<1x16x64xf32>
    %476 = vector.shape_cast %453 : vector<16x64xf32> to vector<1x16x64xf32>
    %477 = vector.shape_cast %459 : vector<16x64xf32> to vector<1x16x64xf32>
    %478 = vector.shape_cast %465 : vector<16x64xf32> to vector<1x16x64xf32>
    %479 = vector.shape_cast %471 : vector<16x64xf32> to vector<1x16x64xf32>
    %480 = tpu.concatenate %472, %473, %474, %475, %476, %477, %478, %479 in 0 : vector<1x16x64xf32>, vector<1x16x64xf32>, vector<1x16x64xf32>, vector<1x16x64xf32>, vector<1x16x64xf32>, vector<1x16x64xf32>, vector<1x16x64xf32>, vector<1x16x64xf32> -> vector<8x16x64xf32>
    %481 = vector.shape_cast %412 : vector<8x16xf32> to vector<8x16x1xf32>
    %482 = vector.broadcast %481 : vector<8x16x1xf32> to vector<8x16x64xf32>
    %483 = arith.mulf %480, %482 : vector<8x16x64xf32>
    %cst_134 = arith.constant dense<0.000000e+00> : vector<8x64xf32>
    %484 = vector.multi_reduction <add>, %483, %cst_134 [1] : vector<8x16x64xf32> to vector<8x64xf32>
    %c1_135 = arith.constant 1 : index
    %c0_136 = arith.constant 0 : index
    %c0_137 = arith.constant 0 : index
    %485 = vector.load %arg17[%c1_135, %c0_136, %c0_137] : memref<2x16x64xf32, #tpu.memory_space<vmem>>, vector<1x16x64xf32>
    %486 = vector.shape_cast %485 : vector<1x16x64xf32> to vector<16x64xf32>
    %487 = vector.shape_cast %471 : vector<16x64xf32> to vector<1x16x64xf32>
    tpu.vector_store %arg17[%c1_135, %c0_136, %c0_137], %487 {strides = array<i32>} : memref<2x16x64xf32, #tpu.memory_space<vmem>>, vector<1x16x64xf32>,
    %488 = tpu.concatenate %408, %484 in 0 : vector<8x64xf32>, vector<8x64xf32> -> vector<16x64xf32>
    %c1_138 = arith.constant 1 : index
    %c0_139 = arith.constant 0 : index
    %c0_140 = arith.constant 0 : index
    %489 = vector.load %arg13[%c1_138, %c0_139, %c0_140] : memref<2x1x64xf32, #tpu.memory_space<vmem>>, vector<1x1x64xf32>
    %490 = vector.shape_cast %489 : vector<1x1x64xf32> to vector<1x64xf32>
    %491 = vector.broadcast %490 : vector<1x64xf32> to vector<16x64xf32>
    %492 = arith.mulf %301, %491 : vector<16x64xf32>
    %493 = arith.addf %488, %492 : vector<16x64xf32>
    %cst_141 = arith.constant 0.000000e+00 : f32
    %494 = vector.broadcast %cst_141 : f32 to vector<16x64xf32>
    %495 = arith.subf %494, %260 : vector<16x64xf32>
    %496 = math.exp %495 : vector<16x64xf32>
    %cst_142 = arith.constant 1.000000e+00 : f32
    %497 = vector.broadcast %cst_142 : f32 to vector<16x64xf32>
    %498 = arith.addf %497, %496 : vector<16x64xf32>
    %cst_143 = arith.constant 1.000000e+00 : f32
    %499 = vector.broadcast %cst_143 : f32 to vector<16x64xf32>
    %500 = arith.divf %499, %498 : vector<16x64xf32>
    %501 = arith.mulf %260, %500 : vector<16x64xf32>
    %502 = arith.mulf %493, %501 : vector<16x64xf32>
    %503 = arith.addf %254, %502 : vector<16x64xf32>
    %504 = arith.truncf %503 : vector<16x64xf32> to vector<16x64xbf16>
    %c0_144 = arith.constant 0 : index
    %c0_145 = arith.constant 0 : index
    %505 = vector.load %arg14[%c0_144, %c0_145] : memref<32x64xbf16, #tpu.memory_space<vmem>>, vector<32x64xbf16>
    %cst_146 = arith.constant dense<0.000000e+00> : vector<16x32xf32>
    %506 = tpu.matmul %504, %505, %cst_146 {dimension_numbers = #tpu.dot_dimension_numbers<[1], [1], [0], [0], [0, 0, 1, 0], [], []>} : vector<16x64xbf16>, vector<32x64xbf16>, vector<16x32xf32> -> vector<16x32xf32>
    %c0_147 = arith.constant 0 : index
    %c0_148 = arith.constant 0 : index
    %c0_149 = arith.constant 0 : index
    %507 = vector.load %arg15[%c0_147, %c0_148, %c0_149] : memref<1x16x32xf32, #tpu.memory_space<vmem>>, vector<1x16x32xf32>
    %508 = vector.shape_cast %507 : vector<1x16x32xf32> to vector<16x32xf32>
    %509 = vector.shape_cast %506 : vector<16x32xf32> to vector<1x16x32xf32>
    tpu.vector_store %arg15[%c0_147, %c0_148, %c0_149], %509 {strides = array<i32>} : memref<1x16x32xf32, #tpu.memory_space<vmem>>, vector<1x16x32xf32>,
    return
  }
  func.func @transform_0(%arg0: i32, %arg1: i32) -> (i32, i32, i32) {
    %c0_i32 = arith.constant 0 : i32
    %c0_i32_0 = arith.constant 0 : i32
    return %arg0, %arg1, %c0_i32 : i32, i32, i32
  }
  func.func @transform_1(%arg0: i32, %arg1: i32) -> (i32, i32, i32) {
    %c0_i32 = arith.constant 0 : i32
    %c0_i32_0 = arith.constant 0 : i32
    %c0_i32_1 = arith.constant 0 : i32
    %c0_i32_2 = arith.constant 0 : i32
    return %c0_i32, %c0_i32_0, %c0_i32_1 : i32, i32, i32
  }
  func.func @transform_2(%arg0: i32, %arg1: i32) -> (i32, i32, i32) {
    %c0_i32 = arith.constant 0 : i32
    %c0_i32_0 = arith.constant 0 : i32
    %c0_i32_1 = arith.constant 0 : i32
    %c0_i32_2 = arith.constant 0 : i32
    return %c0_i32, %c0_i32_0, %c0_i32_1 : i32, i32, i32
  }
  func.func @transform_3(%arg0: i32, %arg1: i32) -> (i32, i32, i32) {
    %c0_i32 = arith.constant 0 : i32
    %c0_i32_0 = arith.constant 0 : i32
    %c0_i32_1 = arith.constant 0 : i32
    %c0_i32_2 = arith.constant 0 : i32
    return %c0_i32, %c0_i32_0, %c0_i32_1 : i32, i32, i32
  }
  func.func @transform_4(%arg0: i32, %arg1: i32) -> (i32, i32, i32) {
    %c0_i32 = arith.constant 0 : i32
    %c0_i32_0 = arith.constant 0 : i32
    %c0_i32_1 = arith.constant 0 : i32
    %c0_i32_2 = arith.constant 0 : i32
    return %c0_i32, %c0_i32_0, %c0_i32_1 : i32, i32, i32
  }
  func.func @transform_5(%arg0: i32, %arg1: i32) -> (i32, i32, i32) {
    %c0_i32 = arith.constant 0 : i32
    %c0_i32_0 = arith.constant 0 : i32
    %c0_i32_1 = arith.constant 0 : i32
    %c0_i32_2 = arith.constant 0 : i32
    return %c0_i32, %c0_i32_0, %c0_i32_1 : i32, i32, i32
  }
  func.func @transform_6(%arg0: i32, %arg1: i32) -> (i32, i32, i32) {
    %c0_i32 = arith.constant 0 : i32
    %c0_i32_0 = arith.constant 0 : i32
    %c0_i32_1 = arith.constant 0 : i32
    %c0_i32_2 = arith.constant 0 : i32
    return %c0_i32, %c0_i32_0, %c0_i32_1 : i32, i32, i32
  }
  func.func @transform_7(%arg0: i32, %arg1: i32) -> (i32, i32, i32) {
    %c0_i32 = arith.constant 0 : i32
    %c0_i32_0 = arith.constant 0 : i32
    %c0_i32_1 = arith.constant 0 : i32
    %c0_i32_2 = arith.constant 0 : i32
    return %c0_i32, %c0_i32_0, %c0_i32_1 : i32, i32, i32
  }
  func.func @transform_8(%arg0: i32, %arg1: i32) -> (i32, i32, i32) {
    %c0_i32 = arith.constant 0 : i32
    %c0_i32_0 = arith.constant 0 : i32
    %c0_i32_1 = arith.constant 0 : i32
    %c0_i32_2 = arith.constant 0 : i32
    return %c0_i32, %c0_i32_0, %c0_i32_1 : i32, i32, i32
  }
  func.func @transform_9(%arg0: i32, %arg1: i32) -> (i32, i32, i32) {
    %c0_i32 = arith.constant 0 : i32
    %c0_i32_0 = arith.constant 0 : i32
    %c0_i32_1 = arith.constant 0 : i32
    %c0_i32_2 = arith.constant 0 : i32
    return %c0_i32, %c0_i32_0, %c0_i32_1 : i32, i32, i32
  }
  func.func @transform_10(%arg0: i32, %arg1: i32) -> (i32, i32, i32) {
    %c0_i32 = arith.constant 0 : i32
    %c0_i32_0 = arith.constant 0 : i32
    %c0_i32_1 = arith.constant 0 : i32
    %c0_i32_2 = arith.constant 0 : i32
    return %c0_i32, %c0_i32_0, %c0_i32_1 : i32, i32, i32
  }
  func.func @transform_11(%arg0: i32, %arg1: i32) -> (i32, i32, i32) {
    %c0_i32 = arith.constant 0 : i32
    %c0_i32_0 = arith.constant 0 : i32
    %c0_i32_1 = arith.constant 0 : i32
    %c0_i32_2 = arith.constant 0 : i32
    return %c0_i32, %c0_i32_0, %c0_i32_1 : i32, i32, i32
  }
  func.func @transform_12(%arg0: i32, %arg1: i32) -> (i32, i32) {
    %c0_i32 = arith.constant 0 : i32
    %c0_i32_0 = arith.constant 0 : i32
    %c0_i32_1 = arith.constant 0 : i32
    return %c0_i32, %c0_i32_0 : i32, i32
  }
  func.func @transform_13(%arg0: i32, %arg1: i32) -> (i32, i32, i32) {
    %c0_i32 = arith.constant 0 : i32
    %c0_i32_0 = arith.constant 0 : i32
    return %arg0, %arg1, %c0_i32 : i32, i32, i32
  }
}

</mosaic_0001>

<llo_original>
// kernel: tpu_custom_call.1
$region0: #{tpu_custom_call.1}
  #allocation0 [shape = 'u32[]', space=smem, size = 0x4, offset = 0x4, fixed_abs, tag = 'smem constant byte address 0x4 - core index']
  #allocation1 [shape = 'u32[144,128]{1,0:T(1,128)}', space=vmem, size = 0x12000, scoped, tag = 'internal scratch']
  #allocation2 [shape = 'f32[24,64]{1,0:T(8,128)}', space=vmem, size = 0x3000, scoped, tag = 'scratch operand']
  #allocation3 [shape = 'f32[2,16,64]{2,1,0:T(8,128)}', space=vmem, size = 0x4000, scoped, tag = 'scratch operand']
  #allocation4 [shape = 'f32[2,8,64]{2,1,0:T(8,128)}', space=vmem, size = 0x2000, scoped, tag = 'scratch operand']
  %s0 = inlined_call_operand.hbm [shape: bf16[2,32,32], index: 0, kind: input, shape index: {}]
  %s1 = inlined_call_operand.hbm [shape: bf16[2,64,32], index: 1, kind: input, shape index: {}]
  %s2 = inlined_call_operand.hbm [shape: bf16[2,64,32], index: 2, kind: input, shape index: {}]
  %s3 = inlined_call_operand.hbm [shape: f32[2,4,64], index: 3, kind: input, shape index: {}]
  %s4 = inlined_call_operand.hbm [shape: f32[2,1,64], index: 4, kind: input, shape index: {}]
  %s5 = inlined_call_operand.hbm [shape: bf16[2,2,64], index: 5, kind: input, shape index: {}]
  %s6 = inlined_call_operand.hbm [shape: bf16[2,16,64], index: 6, kind: input, shape index: {}]
  %s7 = inlined_call_operand.hbm [shape: bf16[2,16,64], index: 7, kind: input, shape index: {}]
  %s8 = inlined_call_operand.hbm [shape: bf16[2,64,2], index: 8, kind: input, shape index: {}]
  %s9 = inlined_call_operand.hbm [shape: f32[2,1,64], index: 9, kind: input, shape index: {}]
  %s10 = inlined_call_operand.hbm [shape: f32[2,16,64], index: 10, kind: input, shape index: {}]
  %s11 = inlined_call_operand.hbm [shape: f32[2,1,64], index: 11, kind: input, shape index: {}]
  %s12 = inlined_call_operand.hbm [shape: bf16[32,64], index: 12, kind: input, shape index: {}]
  %s13 = inlined_call_operand.hbm [shape: f32[2,32,32], index: 13, kind: output, shape index: {}]
  %s14 = sld [smem:[#allocation0]]
  $region141: #{tpu_custom_call.1} parent=0
    _
  %s16 = ssub.s32 1, %s14
  %s17 = scalar_select 0, %s16, %s14
  $region1: #{tpu_custom_call.1} parent=0
    #allocation5 [shape = 'u8[8192]{0}', space=vmem, size = 0x2000, scoped, tag = 'input window, operand 0']
    #allocation6 [shape = 's32[2]{0}', space=sflag, size = 0x8, scoped, tag = 'scoped memory for tpu_custom_call.1']
    #allocation7 [shape = 's32[2]{0}', space=sflag, size = 0x8, scoped, tag = 'scoped memory for tpu_custom_call.1']
    #allocation8 [shape = 'u8[32768]{0}', space=vmem, size = 0x8000, scoped, tag = 'input window, operand 1, single buffered']
    #allocation9 [shape = 's32[1]{0}', space=sflag, size = 0x4, scoped, tag = 'scoped memory for tpu_custom_call.1']
    #allocation10 [shape = 'u8[32768]{0}', space=vmem, size = 0x8000, scoped, tag = 'input window, operand 2, single buffered']
    #allocation11 [shape = 'u8[4096]{0}', space=vmem, size = 0x1000, scoped, tag = 'input window, operand 3, single buffered']
    #allocation12 [shape = 's32[1]{0}', space=sflag, size = 0x4, scoped, tag = 'scoped memory for tpu_custom_call.1']
    #allocation13 [shape = 'u8[1024]{0}', space=vmem, size = 0x400, scoped, tag = 'input window, operand 4, single buffered']
    #allocation14 [shape = 'u8[1024]{0}', space=vmem, size = 0x400, scoped, tag = 'input window, operand 5, single buffered']
    #allocation15 [shape = 's32[1]{0}', space=sflag, size = 0x4, scoped, tag = 'scoped memory for tpu_custom_call.1']
    #allocation16 [shape = 'u8[8192]{0}', space=vmem, size = 0x2000, scoped, tag = 'input window, operand 6, single buffered']
    #allocation17 [shape = 'u8[8192]{0}', space=vmem, size = 0x2000, scoped, tag = 'input window, operand 7, single buffered']
    #allocation18 [shape = 's32[1]{0}', space=sflag, size = 0x4, scoped, tag = 'scoped memory for tpu_custom_call.1']
    #allocation19 [shape = 'u8[32768]{0}', space=vmem, size = 0x8000, scoped, tag = 'input window, operand 8, single buffered']
    #allocation20 [shape = 'u8[1024]{0}', space=vmem, size = 0x400, scoped, tag = 'input window, operand 9, single buffered']
    #allocation21 [shape = 's32[1]{0}', space=sflag, size = 0x4, scoped, tag = 'scoped memory for tpu_custom_call.1']
    #allocation22 [shape = 'u8[16384]{0}', space=vmem, size = 0x4000, scoped, tag = 'input window, operand 10, single buffered']
    #allocation23 [shape = 'u8[1024]{0}', space=vmem, size = 0x400, scoped, tag = 'input window, operand 11, single buffered']
    #allocation24 [shape = 's32[1]{0}', space=sflag, size = 0x4, scoped, tag = 'scoped memory for tpu_custom_call.1']
    #allocation25 [shape = 'u8[8192]{0}', space=vmem, size = 0x2000, scoped, tag = 'input window, operand 12, single buffered']
    #allocation26 [shape = 'u8[16384]{0}', space=vmem, size = 0x4000, scoped, tag = 'output window, operand 0']
    %18 = vsyncpa [#allocation6], 0
    %s19 = scalar_lea.sflag [#allocation6], 1
    %20 = vsyncpa %s19, 0
    %21 = vsyncpa [#allocation9], 0
    %22 = vsyncpa [#allocation12], 0
    %23 = vsyncpa [#allocation15], 0
    %24 = vsyncpa [#allocation18], 0
    %25 = vsyncpa [#allocation21], 0
    %26 = vsyncpa [#allocation24], 0
    %27 = vsyncpa [#allocation7], 0
    %s28 = scalar_lea.sflag [#allocation7], 1
    %29 = vsyncpa %s28, 0
    loop: start=0, step=1, limit=6
    $region2: #{tpu_custom_call.1} parent=1 // loop_pre_header
      _
    $region3: #{tpu_custom_call.1} parent=1 // loop_header
      %s31 = sphi 0, %s35
      %p32 = scmp.ge.s32.totalorder %s31, 6
      %s38 = sphi 0, %s50
      %s39 = sphi 0, %s46
      %s40 = sphi 0, %s38
      %s41 = sphi 0, %s39
      %s42 = sphi 0, %s40
      %s43 = sphi 0, %s41
      %s55 = sphi 0, %s57
      %s58 = sphi 0, %s55
      %s59 = sphi 0, %s58
      %s75 = sphi 0, %s59
      %s79 = sphi 0, %s79
      %s81 = sphi 0, %s79
      %s82 = sphi 0, %s81
      %s96 = sphi 0, %s82
      %s100 = sphi 0, %s100
      %s102 = sphi 0, %s100
      %s103 = sphi 0, %s102
      %s117 = sphi 0, %s103
      %s121 = sphi 0, %s121
      %s123 = sphi 0, %s121
      %s124 = sphi 0, %s123
      %s138 = sphi 0, %s124
      %s142 = sphi 0, %s142
      %s144 = sphi 0, %s142
      %s145 = sphi 0, %s144
      %s159 = sphi 0, %s145
      %s163 = sphi 0, %s163
      %s165 = sphi 0, %s163
      %s166 = sphi 0, %s165
      %s180 = sphi 0, %s166
      %s184 = sphi 0, %s184
      %s186 = sphi 0, %s184
      %s187 = sphi 0, %s186
      %s201 = sphi 0, %s187
      %s205 = sphi 0, %s205
      %s207 = sphi 0, %s205
      %s208 = sphi 0, %s207
      %s222 = sphi 0, %s208
      %s226 = sphi 0, %s226
      %s228 = sphi 0, %s226
      %s229 = sphi 0, %s228
      %s243 = sphi 0, %s229
      %s247 = sphi 0, %s247
      %s249 = sphi 0, %s247
      %s250 = sphi 0, %s249
      %s264 = sphi 0, %s250
      %s268 = sphi 0, %s268
      %s270 = sphi 0, %s268
      %s271 = sphi 0, %s270
      %s285 = sphi 0, %s271
      %s289 = sphi 0, %s289
      %s291 = sphi 0, %s289
      %s292 = sphi 0, %s291
      %s306 = sphi 0, %s292
      %s310 = sphi 0, %s310
      %s312 = sphi 0, %s310
      %s313 = sphi 0, %s312
      %s327 = sphi 0, %s313
      %s335 = sphi 0, %s337
      %s338 = sphi 0, %s335
      %s339 = sphi 0, %s338
      %s355 = sphi 0, %s339
    $region4: #{tpu_custom_call.1} parent=1 // loop_header_branch
      %34 = sbr.rel (%p32) target = $region8
    $region5: #{tpu_custom_call.1} parent=1 // loop_body
      %s36 = ssub.s32 %s31, 1
      %s37 = ssub.s32 %s31, 2
      %s44 = sadd.s32 1, %s39
      %p45 = scmp.ge.s32.totalorder %s44, 2
      %s46 = scalar_select %p45, 0, %s44
      %s47 = sadd.s32 1, %s38
      %s48 = scalar_select %p45, %s47, %s38
      %p49 = scmp.ge.s32.totalorder %s48, 2
      %s50 = scalar_select %p49, 0, %s48
      %s51 = ssub.s32 %s38, %s50
      %s52 = ssub.s32 %s39, %s46
      %s53 = sor.u32 %s51, %s52
      %p54 = scmp.eq.s32.totalorder %s53, 0
      %s56 = sadd.s32 %s55, 1
      %s57 = scalar_select %p54, %s55, %s56
      %p60 = pneg %p54
      %p61 = scmp.eq.s32.totalorder %s31, 3
      %p62 = por %p60, %p61
      %p63 = scmp.ne.s32.totalorder %s55, %s58
      %p64 = scmp.eq.s32.totalorder %s31, 0
      %p65 = por %p63, %p64
      %p66 = scmp.ne.s32.totalorder %s55, %s58
      %p67 = scmp.eq.s32.totalorder %s36, 3
      %p68 = por %p66, %p67
      %p69 = scmp.ne.s32.totalorder %s58, %s59
      %p70 = scmp.eq.s32.totalorder %s36, 0
      %p71 = por %p69, %p70
      %p72 = scmp.ne.s32.totalorder %s58, %s59
      %p73 = scmp.eq.s32.totalorder %s37, 3
      %p74 = por %p72, %p73
      %p76 = scmp.ne.s32.totalorder %s59, %s75
      %p77 = scmp.eq.s32.totalorder %s37, 0
      %p78 = por %p76, %p77
      %s80 = sadd.s32 %s79, 1
      %p83 = scmp.eq.s32.totalorder %s31, 3
      %p84 = scmp.ne.s32.totalorder %s79, %s81
      %p85 = scmp.eq.s32.totalorder %s31, 0
      %p86 = por %p84, %p85
      %p87 = scmp.ne.s32.totalorder %s79, %s81
      %p88 = scmp.eq.s32.totalorder %s36, 3
      %p89 = por %p87, %p88
      %p90 = scmp.ne.s32.totalorder %s81, %s82
      %p91 = scmp.eq.s32.totalorder %s36, 0
      %p92 = por %p90, %p91
      %p93 = scmp.ne.s32.totalorder %s81, %s82
      %p94 = scmp.eq.s32.totalorder %s37, 3
      %p95 = por %p93, %p94
      %p97 = scmp.ne.s32.totalorder %s82, %s96
      %p98 = scmp.eq.s32.totalorder %s37, 0
      %p99 = por %p97, %p98
      %s101 = sadd.s32 %s100, 1
      %p104 = scmp.eq.s32.totalorder %s31, 3
      %p105 = scmp.ne.s32.totalorder %s100, %s102
      %p106 = scmp.eq.s32.totalorder %s31, 0
      %p107 = por %p105, %p106
      %p108 = scmp.ne.s32.totalorder %s100, %s102
      %p109 = scmp.eq.s32.totalorder %s36, 3
      %p110 = por %p108, %p109
      %p111 = scmp.ne.s32.totalorder %s102, %s103
      %p112 = scmp.eq.s32.totalorder %s36, 0
      %p113 = por %p111, %p112
      %p114 = scmp.ne.s32.totalorder %s102, %s103
      %p115 = scmp.eq.s32.totalorder %s37, 3
      %p116 = por %p114, %p115
      %p118 = scmp.ne.s32.totalorder %s103, %s117
      %p119 = scmp.eq.s32.totalorder %s37, 0
      %p120 = por %p118, %p119
      %s122 = sadd.s32 %s121, 1
      %p125 = scmp.eq.s32.totalorder %s31, 3
      %p126 = scmp.ne.s32.totalorder %s121, %s123
      %p127 = scmp.eq.s32.totalorder %s31, 0
      %p128 = por %p126, %p127
      %p129 = scmp.ne.s32.totalorder %s121, %s123
      %p130 = scmp.eq.s32.totalorder %s36, 3
      %p131 = por %p129, %p130
      %p132 = scmp.ne.s32.totalorder %s123, %s124
      %p133 = scmp.eq.s32.totalorder %s36, 0
      %p134 = por %p132, %p133
      %p135 = scmp.ne.s32.totalorder %s123, %s124
      %p136 = scmp.eq.s32.totalorder %s37, 3
      %p137 = por %p135, %p136
      %p139 = scmp.ne.s32.totalorder %s124, %s138
      %p140 = scmp.eq.s32.totalorder %s37, 0
      %p141 = por %p139, %p140
      %s143 = sadd.s32 %s142, 1
      %p146 = scmp.eq.s32.totalorder %s31, 3
      %p147 = scmp.ne.s32.totalorder %s142, %s144
      %p148 = scmp.eq.s32.totalorder %s31, 0
      %p149 = por %p147, %p148
      %p150 = scmp.ne.s32.totalorder %s142, %s144
      %p151 = scmp.eq.s32.totalorder %s36, 3
      %p152 = por %p150, %p151
      %p153 = scmp.ne.s32.totalorder %s144, %s145
      %p154 = scmp.eq.s32.totalorder %s36, 0
      %p155 = por %p153, %p154
      %p156 = scmp.ne.s32.totalorder %s144, %s145
      %p157 = scmp.eq.s32.totalorder %s37, 3
      %p158 = por %p156, %p157
      %p160 = scmp.ne.s32.totalorder %s145, %s159
      %p161 = scmp.eq.s32.totalorder %s37, 0
      %p162 = por %p160, %p161
      %s164 = sadd.s32 %s163, 1
      %p167 = scmp.eq.s32.totalorder %s31, 3
      %p168 = scmp.ne.s32.totalorder %s163, %s165
      %p169 = scmp.eq.s32.totalorder %s31, 0
      %p170 = por %p168, %p169
      %p171 = scmp.ne.s32.totalorder %s163, %s165
      %p172 = scmp.eq.s32.totalorder %s36, 3
      %p173 = por %p171, %p172
      %p174 = scmp.ne.s32.totalorder %s165, %s166
      %p175 = scmp.eq.s32.totalorder %s36, 0
      %p176 = por %p174, %p175
      %p177 = scmp.ne.s32.totalorder %s165, %s166
      %p178 = scmp.eq.s32.totalorder %s37, 3
      %p179 = por %p177, %p178
      %p181 = scmp.ne.s32.totalorder %s166, %s180
      %p182 = scmp.eq.s32.totalorder %s37, 0
      %p183 = por %p181, %p182
      %s185 = sadd.s32 %s184, 1
      %p188 = scmp.eq.s32.totalorder %s31, 3
      %p189 = scmp.ne.s32.totalorder %s184, %s186
      %p190 = scmp.eq.s32.totalorder %s31, 0
      %p191 = por %p189, %p190
      %p192 = scmp.ne.s32.totalorder %s184, %s186
      %p193 = scmp.eq.s32.totalorder %s36, 3
      %p194 = por %p192, %p193
      %p195 = scmp.ne.s32.totalorder %s186, %s187
      %p196 = scmp.eq.s32.totalorder %s36, 0
      %p197 = por %p195, %p196
      %p198 = scmp.ne.s32.totalorder %s186, %s187
      %p199 = scmp.eq.s32.totalorder %s37, 3
      %p200 = por %p198, %p199
      %p202 = scmp.ne.s32.totalorder %s187, %s201
      %p203 = scmp.eq.s32.totalorder %s37, 0
      %p204 = por %p202, %p203
      %s206 = sadd.s32 %s205, 1
      %p209 = scmp.eq.s32.totalorder %s31, 3
      %p210 = scmp.ne.s32.totalorder %s205, %s207
      %p211 = scmp.eq.s32.totalorder %s31, 0
      %p212 = por %p210, %p211
      %p213 = scmp.ne.s32.totalorder %s205, %s207
      %p214 = scmp.eq.s32.totalorder %s36, 3
      %p215 = por %p213, %p214
      %p216 = scmp.ne.s32.totalorder %s207, %s208
      %p217 = scmp.eq.s32.totalorder %s36, 0
      %p218 = por %p216, %p217
      %p219 = scmp.ne.s32.totalorder %s207, %s208
      %p220 = scmp.eq.s32.totalorder %s37, 3
      %p221 = por %p219, %p220
      %p223 = scmp.ne.s32.totalorder %s208, %s222
      %p224 = scmp.eq.s32.totalorder %s37, 0
      %p225 = por %p223, %p224
      %s227 = sadd.s32 %s226, 1
      %p230 = scmp.eq.s32.totalorder %s31, 3
      %p231 = scmp.ne.s32.totalorder %s226, %s228
      %p232 = scmp.eq.s32.totalorder %s31, 0
      %p233 = por %p231, %p232
      %p234 = scmp.ne.s32.totalorder %s226, %s228
      %p235 = scmp.eq.s32.totalorder %s36, 3
      %p236 = por %p234, %p235
      %p237 = scmp.ne.s32.totalorder %s228, %s229
      %p238 = scmp.eq.s32.totalorder %s36, 0
      %p239 = por %p237, %p238
      %p240 = scmp.ne.s32.totalorder %s228, %s229
      %p241 = scmp.eq.s32.totalorder %s37, 3
      %p242 = por %p240, %p241
      %p244 = scmp.ne.s32.totalorder %s229, %s243
      %p245 = scmp.eq.s32.totalorder %s37, 0
      %p246 = por %p244, %p245
      %s248 = sadd.s32 %s247, 1
      %p251 = scmp.eq.s32.totalorder %s31, 3
      %p252 = scmp.ne.s32.totalorder %s247, %s249
      %p253 = scmp.eq.s32.totalorder %s31, 0
      %p254 = por %p252, %p253
      %p255 = scmp.ne.s32.totalorder %s247, %s249
      %p256 = scmp.eq.s32.totalorder %s36, 3
      %p257 = por %p255, %p256
      %p258 = scmp.ne.s32.totalorder %s249, %s250
      %p259 = scmp.eq.s32.totalorder %s36, 0
      %p260 = por %p258, %p259
      %p261 = scmp.ne.s32.totalorder %s249, %s250
      %p262 = scmp.eq.s32.totalorder %s37, 3
      %p263 = por %p261, %p262
      %p265 = scmp.ne.s32.totalorder %s250, %s264
      %p266 = scmp.eq.s32.totalorder %s37, 0
      %p267 = por %p265, %p266
      %s269 = sadd.s32 %s268, 1
      %p272 = scmp.eq.s32.totalorder %s31, 3
      %p273 = scmp.ne.s32.totalorder %s268, %s270
      %p274 = scmp.eq.s32.totalorder %s31, 0
      %p275 = por %p273, %p274
      %p276 = scmp.ne.s32.totalorder %s268, %s270
      %p277 = scmp.eq.s32.totalorder %s36, 3
      %p278 = por %p276, %p277
      %p279 = scmp.ne.s32.totalorder %s270, %s271
      %p280 = scmp.eq.s32.totalorder %s36, 0
      %p281 = por %p279, %p280
      %p282 = scmp.ne.s32.totalorder %s270, %s271
      %p283 = scmp.eq.s32.totalorder %s37, 3
      %p284 = por %p282, %p283
      %p286 = scmp.ne.s32.totalorder %s271, %s285
      %p287 = scmp.eq.s32.totalorder %s37, 0
      %p288 = por %p286, %p287
      %s290 = sadd.s32 %s289, 1
      %p293 = scmp.eq.s32.totalorder %s31, 3
      %p294 = scmp.ne.s32.totalorder %s289, %s291
      %p295 = scmp.eq.s32.totalorder %s31, 0
      %p296 = por %p294, %p295
      %p297 = scmp.ne.s32.totalorder %s289, %s291
      %p298 = scmp.eq.s32.totalorder %s36, 3
      %p299 = por %p297, %p298
      %p300 = scmp.ne.s32.totalorder %s291, %s292
      %p301 = scmp.eq.s32.totalorder %s36, 0
      %p302 = por %p300, %p301
      %p303 = scmp.ne.s32.totalorder %s291, %s292
      %p304 = scmp.eq.s32.totalorder %s37, 3
      %p305 = por %p303, %p304
      %p307 = scmp.ne.s32.totalorder %s292, %s306
      %p308 = scmp.eq.s32.totalorder %s37, 0
      %p309 = por %p307, %p308
      %s311 = sadd.s32 %s310, 1
      %p314 = scmp.eq.s32.totalorder %s31, 3
      %p315 = scmp.ne.s32.totalorder %s310, %s312
      %p316 = scmp.eq.s32.totalorder %s31, 0
      %p317 = por %p315, %p316
      %p318 = scmp.ne.s32.totalorder %s310, %s312
      %p319 = scmp.eq.s32.totalorder %s36, 3
      %p320 = por %p318, %p319
      %p321 = scmp.ne.s32.totalorder %s312, %s313
      %p322 = scmp.eq.s32.totalorder %s36, 0
      %p323 = por %p321, %p322
      %p324 = scmp.ne.s32.totalorder %s312, %s313
      %p325 = scmp.eq.s32.totalorder %s37, 3
      %p326 = por %p324, %p325
      %p328 = scmp.ne.s32.totalorder %s313, %s327
      %p329 = scmp.eq.s32.totalorder %s37, 0
      %p330 = por %p328, %p329
      %s331 = ssub.s32 %s38, %s50
      %s332 = ssub.s32 %s39, %s46
      %s333 = sor.u32 %s331, %s332
      %p334 = scmp.eq.s32.totalorder %s333, 0
      %s336 = sadd.s32 %s335, 1
      %s337 = scalar_select %p334, %s335, %s336
      %p340 = pneg %p334
      %p341 = scmp.eq.s32.totalorder %s31, 3
      %p342 = por %p340, %p341
      %p343 = scmp.ne.s32.totalorder %s335, %s338
      %p344 = scmp.eq.s32.totalorder %s31, 0
      %p345 = por %p343, %p344
      %p346 = scmp.ne.s32.totalorder %s335, %s338
      %p347 = scmp.eq.s32.totalorder %s36, 3
      %p348 = por %p346, %p347
      %p349 = scmp.ne.s32.totalorder %s338, %s339
      %p350 = scmp.eq.s32.totalorder %s36, 0
      %p351 = por %p349, %p350
      %p352 = scmp.ne.s32.totalorder %s338, %s339
      %p353 = scmp.eq.s32.totalorder %s37, 3
      %p354 = por %p352, %p353
      %p356 = scmp.ne.s32.totalorder %s339, %s355
      %p357 = scmp.eq.s32.totalorder %s37, 0
      %p358 = por %p356, %p357
      %p359 = scmp.le.s32.totalorder 1, %s31
      %p360 = scmp.lt.s32.totalorder %s31, 5
      %p361 = pnand %p359, %p360
      %p362 = pneg %p361
      // Predicated region
      $region9: #{tpu_custom_call.1} parent=5 // pred_check
        _
      $region10: #{tpu_custom_call.1} parent=5 // pred_check_branch
        %364 = sbr.rel (%p361) target = $region12
      $region11: #{tpu_custom_call.1} parent=5 // pred_region
        %s365 = ssub.s32 %s31, 1
        // Predicated region
        $region13: #{tpu_custom_call.1} parent=11 // pred_check
          %p366 = pneg %p92
        $region14: #{tpu_custom_call.1} parent=11 // pred_check_branch
          %368 = sbr.rel (%p366) target = $region16
        $region15: #{tpu_custom_call.1} parent=11 // pred_region
          %s370 = ssub.s32 1024, 1024
          %371 = vsyncadd [#allocation9], %s370
          %s372 = sshll.u32 [#allocation8], 4
          %s373 = int_to_ptr.vmem [resolvable:$true] %s372
          %378 = dma.hbm_to_vmem [thread:$0]  %s1, 1024, %s373, [#allocation9], 64, 64, 4
        $region16: #{tpu_custom_call.1} parent=11 // pred_fallthru
          _
        // Predicated region
        $region17: #{tpu_custom_call.1} parent=11 // pred_check
          %p379 = pneg %p113
        $region18: #{tpu_custom_call.1} parent=11 // pred_check_branch
          %381 = sbr.rel (%p379) target = $region20
        $region19: #{tpu_custom_call.1} parent=11 // pred_region
          %s383 = ssub.s32 1024, 1024
          %384 = vsyncadd [#allocation9], %s383
          %s385 = sshll.u32 [#allocation10], 4
          %s386 = int_to_ptr.vmem [resolvable:$true] %s385
          %391 = dma.hbm_to_vmem [thread:$0]  %s2, 1024, %s386, [#allocation9], 64, 64, 4
        $region20: #{tpu_custom_call.1} parent=11 // pred_fallthru
          _
        // Predicated region
        $region21: #{tpu_custom_call.1} parent=11 // pred_check
          %p392 = pneg %p134
        $region22: #{tpu_custom_call.1} parent=11 // pred_check_branch
          %394 = sbr.rel (%p392) target = $region24
        $region23: #{tpu_custom_call.1} parent=11 // pred_region
          %s396 = ssub.s32 128, 128
          %397 = vsyncadd [#allocation12], %s396
          %s398 = sshll.u32 [#allocation11], 4
          %s399 = int_to_ptr.vmem [resolvable:$true] %s398
          %404 = dma.hbm_to_vmem [thread:$0]  %s3, 128, %s399, [#allocation12], 64, 64, 4
        $region24: #{tpu_custom_call.1} parent=11 // pred_fallthru
          _
        // Predicated region
        $region25: #{tpu_custom_call.1} parent=11 // pred_check
          %p405 = pneg %p155
        $region26: #{tpu_custom_call.1} parent=11 // pred_check_branch
          %407 = sbr.rel (%p405) target = $region28
        $region27: #{tpu_custom_call.1} parent=11 // pred_region
          %s409 = ssub.s32 32, 32
          %410 = vsyncadd [#allocation12], %s409
          %s411 = sshll.u32 [#allocation13], 4
          %s412 = int_to_ptr.vmem [resolvable:$true] %s411
          %417 = dma.hbm_to_vmem [thread:$0]  %s4, 32, %s412, [#allocation12], 16, 16, 1
        $region28: #{tpu_custom_call.1} parent=11 // pred_fallthru
          _
        // Predicated region
        $region29: #{tpu_custom_call.1} parent=11 // pred_check
          %p418 = pneg %p176
        $region30: #{tpu_custom_call.1} parent=11 // pred_check_branch
          %420 = sbr.rel (%p418) target = $region32
        $region31: #{tpu_custom_call.1} parent=11 // pred_region
          %s422 = ssub.s32 32, 32
          %423 = vsyncadd [#allocation15], %s422
          %s424 = sshll.u32 [#allocation14], 4
          %s425 = int_to_ptr.vmem [resolvable:$true] %s424
          %430 = dma.hbm_to_vmem [thread:$0]  %s5, 32, %s425, [#allocation15], 16, 16, 1
        $region32: #{tpu_custom_call.1} parent=11 // pred_fallthru
          _
        // Predicated region
        $region33: #{tpu_custom_call.1} parent=11 // pred_check
          %p431 = pneg %p197
        $region34: #{tpu_custom_call.1} parent=11 // pred_check_branch
          %433 = sbr.rel (%p431) target = $region36
        $region35: #{tpu_custom_call.1} parent=11 // pred_region
          %s435 = ssub.s32 256, 256
          %436 = vsyncadd [#allocation15], %s435
          %s437 = sshll.u32 [#allocation16], 4
          %s438 = int_to_ptr.vmem [resolvable:$true] %s437
          %443 = dma.hbm_to_vmem [thread:$0]  %s6, 256, %s438, [#allocation15], 64, 64, 4
        $region36: #{tpu_custom_call.1} parent=11 // pred_fallthru
          _
        // Predicated region
        $region37: #{tpu_custom_call.1} parent=11 // pred_check
          %p444 = pneg %p218
        $region38: #{tpu_custom_call.1} parent=11 // pred_check_branch
          %446 = sbr.rel (%p444) target = $region40
        $region39: #{tpu_custom_call.1} parent=11 // pred_region
          %s448 = ssub.s32 256, 256
          %449 = vsyncadd [#allocation18], %s448
          %s450 = sshll.u32 [#allocation17], 4
          %s451 = int_to_ptr.vmem [resolvable:$true] %s450
          %456 = dma.hbm_to_vmem [thread:$0]  %s7, 256, %s451, [#allocation18], 64, 64, 4
        $region40: #{tpu_custom_call.1} parent=11 // pred_fallthru
          _
        // Predicated region
        $region41: #{tpu_custom_call.1} parent=11 // pred_check
          %p457 = pneg %p239
        $region42: #{tpu_custom_call.1} parent=11 // pred_check_branch
          %459 = sbr.rel (%p457) target = $region44
        $region43: #{tpu_custom_call.1} parent=11 // pred_region
          %s461 = ssub.s32 1024, 1024
          %462 = vsyncadd [#allocation18], %s461
          %s463 = sshll.u32 [#allocation19], 4
          %s464 = int_to_ptr.vmem [resolvable:$true] %s463
          %469 = dma.hbm_to_vmem [thread:$0]  %s8, 1024, %s464, [#allocation18], 64, 64, 4
        $region44: #{tpu_custom_call.1} parent=11 // pred_fallthru
          _
        // Predicated region
        $region45: #{tpu_custom_call.1} parent=11 // pred_check
          %p470 = pneg %p260
        $region46: #{tpu_custom_call.1} parent=11 // pred_check_branch
          %472 = sbr.rel (%p470) target = $region48
        $region47: #{tpu_custom_call.1} parent=11 // pred_region
          %s474 = ssub.s32 32, 32
          %475 = vsyncadd [#allocation21], %s474
          %s476 = sshll.u32 [#allocation20], 4
          %s477 = int_to_ptr.vmem [resolvable:$true] %s476
          %482 = dma.hbm_to_vmem [thread:$0]  %s9, 32, %s477, [#allocation21], 16, 16, 1
        $region48: #{tpu_custom_call.1} parent=11 // pred_fallthru
          _
        // Predicated region
        $region49: #{tpu_custom_call.1} parent=11 // pred_check
          %p483 = pneg %p281
        $region50: #{tpu_custom_call.1} parent=11 // pred_check_branch
          %485 = sbr.rel (%p483) target = $region52
        $region51: #{tpu_custom_call.1} parent=11 // pred_region
          %s487 = ssub.s32 512, 512
          %488 = vsyncadd [#allocation21], %s487
          %s489 = sshll.u32 [#allocation22], 4
          %s490 = int_to_ptr.vmem [resolvable:$true] %s489
          %495 = dma.hbm_to_vmem [thread:$0]  %s10, 512, %s490, [#allocation21], 128, 128, 8
        $region52: #{tpu_custom_call.1} parent=11 // pred_fallthru
          _
        // Predicated region
        $region53: #{tpu_custom_call.1} parent=11 // pred_check
          %p496 = pneg %p302
        $region54: #{tpu_custom_call.1} parent=11 // pred_check_branch
          %498 = sbr.rel (%p496) target = $region56
        $region55: #{tpu_custom_call.1} parent=11 // pred_region
          %s500 = ssub.s32 32, 32
          %501 = vsyncadd [#allocation24], %s500
          %s502 = sshll.u32 [#allocation23], 4
          %s503 = int_to_ptr.vmem [resolvable:$true] %s502
          %508 = dma.hbm_to_vmem [thread:$0]  %s11, 32, %s503, [#allocation24], 16, 16, 1
        $region56: #{tpu_custom_call.1} parent=11 // pred_fallthru
          _
        // Predicated region
        $region57: #{tpu_custom_call.1} parent=11 // pred_check
          %p509 = pneg %p323
        $region58: #{tpu_custom_call.1} parent=11 // pred_check_branch
          %511 = sbr.rel (%p509) target = $region60
        $region59: #{tpu_custom_call.1} parent=11 // pred_region
          %s513 = ssub.s32 256, 256
          %514 = vsyncadd [#allocation24], %s513
          %s515 = sshll.u32 [#allocation25], 4
          %s516 = int_to_ptr.vmem [resolvable:$true] %s515
          %521 = dma.hbm_to_vmem [thread:$0]  %s12, 256, %s516, [#allocation24], 64, 64, 4
        $region60: #{tpu_custom_call.1} parent=11 // pred_fallthru
          _
      $region12: #{tpu_custom_call.1} parent=5 // pred_fallthru
        _
      %p522 = scmp.lt.s32.totalorder %s31, 4
      // Predicated region
      $region61: #{tpu_custom_call.1} parent=5 // pred_check
        %p523 = pneg %p522
      $region62: #{tpu_custom_call.1} parent=5 // pred_check_branch
        %525 = sbr.rel (%p523) target = $region64
      $region63: #{tpu_custom_call.1} parent=5 // pred_region
        // Predicated region
        $region65: #{tpu_custom_call.1} parent=63 // pred_check
          %p526 = pneg %p65
        $region66: #{tpu_custom_call.1} parent=63 // pred_check_branch
          %528 = sbr.rel (%p526) target = $region68
        $region67: #{tpu_custom_call.1} parent=63 // pred_region
          %s529 = sand.u32 %s55, 1
          %s530 = scalar_lea.sflag [#allocation6], %s529
          %s531 = sand.u32 %s55, 1
          %s532 = smul.addr %s531, 8
          %s533 = scalar_lea.vmem [#allocation5], %s532
          %s534 = smul.u32 2, %s39
          %s536 = ssub.s32 128, 128
          %537 = vsyncadd %s530, %s536
          %s538 = smul.addr %s38, 4
          %s539 = sadd.s32 %s534, %s538
          %s540 = smul.addr %s539, 64
          %s541 = scalar_lea.hbm %s0, %s540
          %s542 = sshll.u32 %s533, 4
          %s543 = int_to_ptr.vmem [resolvable:$true] %s542
          %548 = dma.hbm_to_vmem [thread:$0]  %s541, 128, %s543, %s530, 64, 64, 4
        $region68: #{tpu_custom_call.1} parent=63 // pred_fallthru
          _
      $region64: #{tpu_custom_call.1} parent=5 // pred_fallthru
        _
      %p549 = scmp.le.s32.totalorder 1, %s31
      %p550 = scmp.lt.s32.totalorder %s31, 5
      %p551 = pnand %p549, %p550
      %p552 = pneg %p551
      // Predicated region
      $region69: #{tpu_custom_call.1} parent=5 // pred_check
        _
      $region70: #{tpu_custom_call.1} parent=5 // pred_check_branch
        %554 = sbr.rel (%p551) target = $region72
      $region71: #{tpu_custom_call.1} parent=5 // pred_region
        %s555 = ssub.s32 %s31, 1
        %s556 = sand.u32 %s58, 1
        %s557 = scalar_lea.sflag [#allocation6], %s556
        %s558 = sand.u32 %s58, 1
        %s559 = smul.addr %s558, 8
        %s560 = scalar_lea.vmem [#allocation5], %s559
        // Predicated region
        $region73: #{tpu_custom_call.1} parent=71 // pred_check
          %p561 = pneg %p71
        $region74: #{tpu_custom_call.1} parent=71 // pred_check_branch
          %563 = sbr.rel (%p561) target = $region76
        $region75: #{tpu_custom_call.1} parent=71 // pred_region
          %564 = dma.done %s557, 128
        $region76: #{tpu_custom_call.1} parent=71 // pred_fallthru
          _
        // Predicated region
        $region77: #{tpu_custom_call.1} parent=71 // pred_check
          %p565 = pneg %p92
        $region78: #{tpu_custom_call.1} parent=71 // pred_check_branch
          %567 = sbr.rel (%p565) target = $region80
        $region79: #{tpu_custom_call.1} parent=71 // pred_region
          %568 = dma.done [#allocation9], 1024
        $region80: #{tpu_custom_call.1} parent=71 // pred_fallthru
          _
        // Predicated region
        $region81: #{tpu_custom_call.1} parent=71 // pred_check
          %p569 = pneg %p113
        $region82: #{tpu_custom_call.1} parent=71 // pred_check_branch
          %571 = sbr.rel (%p569) target = $region84
        $region83: #{tpu_custom_call.1} parent=71 // pred_region
          %572 = dma.done [#allocation9], 1024
        $region84: #{tpu_custom_call.1} parent=71 // pred_fallthru
          _
        // Predicated region
        $region85: #{tpu_custom_call.1} parent=71 // pred_check
          %p573 = pneg %p134
        $region86: #{tpu_custom_call.1} parent=71 // pred_check_branch
          %575 = sbr.rel (%p573) target = $region88
        $region87: #{tpu_custom_call.1} parent=71 // pred_region
          %576 = dma.done [#allocation12], 128
        $region88: #{tpu_custom_call.1} parent=71 // pred_fallthru
          _
        // Predicated region
        $region89: #{tpu_custom_call.1} parent=71 // pred_check
          %p577 = pneg %p155
        $region90: #{tpu_custom_call.1} parent=71 // pred_check_branch
          %579 = sbr.rel (%p577) target = $region92
        $region91: #{tpu_custom_call.1} parent=71 // pred_region
          %580 = dma.done [#allocation12], 32
        $region92: #{tpu_custom_call.1} parent=71 // pred_fallthru
          _
        // Predicated region
        $region93: #{tpu_custom_call.1} parent=71 // pred_check
          %p581 = pneg %p176
        $region94: #{tpu_custom_call.1} parent=71 // pred_check_branch
          %583 = sbr.rel (%p581) target = $region96
        $region95: #{tpu_custom_call.1} parent=71 // pred_region
          %584 = dma.done [#allocation15], 32
        $region96: #{tpu_custom_call.1} parent=71 // pred_fallthru
          _
        // Predicated region
        $region97: #{tpu_custom_call.1} parent=71 // pred_check
          %p585 = pneg %p197
        $region98: #{tpu_custom_call.1} parent=71 // pred_check_branch
          %587 = sbr.rel (%p585) target = $region100
        $region99: #{tpu_custom_call.1} parent=71 // pred_region
          %588 = dma.done [#allocation15], 256
        $region100: #{tpu_custom_call.1} parent=71 // pred_fallthru
          _
        // Predicated region
        $region101: #{tpu_custom_call.1} parent=71 // pred_check
          %p589 = pneg %p218
        $region102: #{tpu_custom_call.1} parent=71 // pred_check_branch
          %591 = sbr.rel (%p589) target = $region104
        $region103: #{tpu_custom_call.1} parent=71 // pred_region
          %592 = dma.done [#allocation18], 256
        $region104: #{tpu_custom_call.1} parent=71 // pred_fallthru
          _
        // Predicated region
        $region105: #{tpu_custom_call.1} parent=71 // pred_check
          %p593 = pneg %p239
        $region106: #{tpu_custom_call.1} parent=71 // pred_check_branch
          %595 = sbr.rel (%p593) target = $region108
        $region107: #{tpu_custom_call.1} parent=71 // pred_region
          %596 = dma.done [#allocation18], 1024
        $region108: #{tpu_custom_call.1} parent=71 // pred_fallthru
          _
        // Predicated region
        $region109: #{tpu_custom_call.1} parent=71 // pred_check
          %p597 = pneg %p260
        $region110: #{tpu_custom_call.1} parent=71 // pred_check_branch
          %599 = sbr.rel (%p597) target = $region112
        $region111: #{tpu_custom_call.1} parent=71 // pred_region
          %600 = dma.done [#allocation21], 32
        $region112: #{tpu_custom_call.1} parent=71 // pred_fallthru
          _
        // Predicated region
        $region113: #{tpu_custom_call.1} parent=71 // pred_check
          %p601 = pneg %p281
        $region114: #{tpu_custom_call.1} parent=71 // pred_check_branch
          %603 = sbr.rel (%p601) target = $region116
        $region115: #{tpu_custom_call.1} parent=71 // pred_region
          %604 = dma.done [#allocation21], 512
        $region116: #{tpu_custom_call.1} parent=71 // pred_fallthru
          _
        // Predicated region
        $region117: #{tpu_custom_call.1} parent=71 // pred_check
          %p605 = pneg %p302
        $region118: #{tpu_custom_call.1} parent=71 // pred_check_branch
          %607 = sbr.rel (%p605) target = $region120
        $region119: #{tpu_custom_call.1} parent=71 // pred_region
          %608 = dma.done [#allocation24], 32
        $region120: #{tpu_custom_call.1} parent=71 // pred_fallthru
          _
        // Predicated region
        $region121: #{tpu_custom_call.1} parent=71 // pred_check
          %p609 = pneg %p323
        $region122: #{tpu_custom_call.1} parent=71 // pred_check_branch
          %611 = sbr.rel (%p609) target = $region124
        $region123: #{tpu_custom_call.1} parent=71 // pred_region
          %612 = dma.done [#allocation24], 256
        $region124: #{tpu_custom_call.1} parent=71 // pred_fallthru
          _
        %s613 = sand.u32 %s58, 1
        %s614 = scalar_lea.sflag [#allocation6], %s613
        %s615 = sand.u32 %s58, 1
        %s616 = smul.addr %s615, 8
        %s617 = scalar_lea.vmem [#allocation5], %s616
        %p618 = pneg %p71
        %p619 = pneg %p68
        %p620 = pneg %p92
        %p621 = pneg %p89
        %p622 = pneg %p113
        %p623 = pneg %p110
        %p624 = pneg %p134
        %p625 = pneg %p131
        %p626 = pneg %p155
        %p627 = pneg %p152
        %p628 = pneg %p176
        %p629 = pneg %p173
        %p630 = pneg %p197
        %p631 = pneg %p194
        %p632 = pneg %p218
        %p633 = pneg %p215
        %p634 = pneg %p239
        %p635 = pneg %p236
        %p636 = pneg %p260
        %p637 = pneg %p257
        %p638 = pneg %p281
        %p639 = pneg %p278
        %p640 = pneg %p302
        %p641 = pneg %p299
        %p642 = pneg %p323
        %p643 = pneg %p320
        %p644 = pneg %p351
        %p645 = pneg %p348
        %s646 = sand.u32 %s338, 1
        %s647 = scalar_lea.sflag [#allocation7], %s646
        %s648 = sand.u32 %s338, 1
        %s649 = smul.addr %s648, 16
        %s650 = scalar_lea.vmem [#allocation26], %s649
        %s651 = smul.u32 2, %s41
        %s652 = smul.u32 2, %s41
        %p654 = scmp.eq.s32.totalorder %s41, 0
        // Predicated region
        $region125: #{tpu_custom_call.1} parent=71 // pred_check
          %p655 = pneg %p654
        $region126: #{tpu_custom_call.1} parent=71 // pred_check_branch
          %657 = sbr.rel (%p655) target = $region128
        $region127: #{tpu_custom_call.1} parent=71 // pred_region
          %vm658 = vcmask 523264
          %659 = vst.msk [vmem:[#allocation3] sm:$0xff] %vm658, 0.0
          %660 = vst.msk [vmem:[#allocation3 + $0x8] sm:$0xff] %vm658, 0.0
          %661 = vst.msk [vmem:[#allocation3 + $0x10] sm:$0xff] %vm658, 0.0
          %662 = vst.msk [vmem:[#allocation3 + $0x18] sm:$0xff] %vm658, 0.0
          %663 = vst.msk [vmem:[#allocation4] sm:$0xff] %vm658, 0.0
          %664 = vst.msk [vmem:[#allocation4 + $0x8] sm:$0xff] %vm658, 0.0
        $region128: #{tpu_custom_call.1} parent=71 // pred_fallthru
          _
        %v665 = vld [vmem:[%s560] sm:$0xf]
        %v666 = vld [vmem:[%s560 + $0x4] sm:$0xf]
        %v667 = vld [vmem:[#allocation8] sm:$0xf]
        %v668 = vld [vmem:[#allocation8 + $0x4] sm:$0xf]
        %v669 = vld [vmem:[#allocation8 + $0x8] sm:$0xf]
        %v670 = vld [vmem:[#allocation8 + $0xc] sm:$0xf]
        %v671 = vld [vmem:[#allocation8 + $0x10] sm:$0xf]
        %v672 = vld [vmem:[#allocation8 + $0x14] sm:$0xf]
        %v673 = vld [vmem:[#allocation8 + $0x18] sm:$0xf]
        %v674 = vld [vmem:[#allocation8 + $0x1c] sm:$0xf]
        %v677 = vunpack.c.l.b16 %v665
        %v678 = vunpack.c.l.b16 %v666
        %v679 = vpack.c.b16 %v678, %v677
        %v688 = vunpack.c.l.b16 %v667
        %v689 = vunpack.c.l.b16 %v668
        %v690 = vunpack.c.l.b16 %v669
        %v691 = vunpack.c.l.b16 %v670
        %v692 = vunpack.c.l.b16 %v671
        %v693 = vunpack.c.l.b16 %v672
        %v694 = vunpack.c.l.b16 %v673
        %v695 = vunpack.c.l.b16 %v674
        %v696 = vpack.c.b16 %v689, %v688
        %v697 = vpack.c.b16 %v691, %v690
        %v698 = vpack.c.b16 %v693, %v692
        %v699 = vpack.c.b16 %v695, %v694
        %vm700 = vcmask 261120
        %v702 = vsel %vm700, %v679, 0
        %v705 = vsel %vm700, %v696, 0
        %v708 = vsel %vm700, %v697, 0
        %v711 = vsel %vm700, %v698, 0
        %v714 = vsel %vm700, %v699, 0
        %716 = vmatprep.subr.bf16.mxu0 0
        %717 = vmatpush1.bf16.xpose.msra.mxu0 %v705
        %718 = vmatprep.subr.bf16.mxu0 0
        %719 = vmatpush1.bf16.xpose.msra.mxu0 %v708
        %720 = vmatprep.subr.bf16.mxu0 0
        %721 = vmatpush1.bf16.xpose.msra.mxu0 %v711
        %722 = vmatprep.subr.bf16.mxu0 0
        %723 = vmatpush1.bf16.xpose.msra.mxu0 %v714
        %724 = vmatprep.subr.bf16.mxu0 0
        %725 = vmatpush1.bf16.xpose.msra.mxu0 0
        %726 = vmatprep.subr.bf16.mxu0 0
        %727 = vmatpush1.bf16.xpose.msra.mxu0 0
        %728 = vmatprep.subr.bf16.mxu0 0
        %729 = vmatpush1.bf16.xpose.msra.mxu0 0
        %730 = vmatprep.subr.bf16.mxu0 0
        %731 = vmatpush1.bf16.xpose.msra.mxu0 0
        %732 = vmatprep.subr.bf16.mxu0 0
        %733 = vmatpush1.bf16.xpose.msra.mxu0 0
        %734 = vmatprep.subr.bf16.mxu0 0
        %735 = vmatpush1.bf16.xpose.msra.mxu0 0
        %736 = vmatprep.subr.bf16.mxu0 0
        %737 = vmatpush1.bf16.xpose.msra.mxu0 0
        %738 = vmatprep.subr.bf16.mxu0 0
        %739 = vmatpush1.bf16.xpose.msra.mxu0 0
        %740 = vmatprep.subr.bf16.mxu0 0
        %741 = vmatpush1.bf16.xpose.msra.mxu0 0
        %742 = vmatprep.subr.bf16.mxu0 0
        %743 = vmatpush1.bf16.xpose.msra.mxu0 0
        %744 = vmatprep.subr.bf16.mxu0 0
        %745 = vmatpush1.bf16.xpose.msra.mxu0 0
        %746 = vmatprep.subr.bf16.mxu0 0
        %747 = vmatpush1.bf16.xpose.msra.mxu0 0
        %748 = vmatprep.mubr.bf16.mxu0 0
        %749 = vmatmul.mubr.bf16.gmra.mrb[0].mxu0 %v702
        %v750 = vpop.f32.mrb[0].mxu0
        %v751 = vadd.f32 0.0, %v750
        %v752 = vpop.f32.mrb[0].mxu0
        %v753 = vpop.f32.mrb[0].mxu0
        %v754 = vadd.f32 0.0, %v753
        %v755 = vpop.f32.mrb[0].mxu0
        %756 = vdwg.mxu0
        %v757 = vld [vmem:[#allocation10] sm:$0xf]
        %v758 = vld [vmem:[#allocation10 + $0x4] sm:$0xf]
        %v759 = vld [vmem:[#allocation10 + $0x8] sm:$0xf]
        %v760 = vld [vmem:[#allocation10 + $0xc] sm:$0xf]
        %v761 = vld [vmem:[#allocation10 + $0x10] sm:$0xf]
        %v762 = vld [vmem:[#allocation10 + $0x14] sm:$0xf]
        %v763 = vld [vmem:[#allocation10 + $0x18] sm:$0xf]
        %v764 = vld [vmem:[#allocation10 + $0x1c] sm:$0xf]
        %v773 = vunpack.c.l.b16 %v757
        %v774 = vunpack.c.l.b16 %v758
        %v775 = vunpack.c.l.b16 %v759
        %v776 = vunpack.c.l.b16 %v760
        %v777 = vunpack.c.l.b16 %v761
        %v778 = vunpack.c.l.b16 %v762
        %v779 = vunpack.c.l.b16 %v763
        %v780 = vunpack.c.l.b16 %v764
        %v781 = vpack.c.b16 %v774, %v773
        %v782 = vpack.c.b16 %v776, %v775
        %v783 = vpack.c.b16 %v778, %v777
        %v784 = vpack.c.b16 %v780, %v779
        %v786 = vsel %vm700, %v781, 0
        %v789 = vsel %vm700, %v782, 0
        %v792 = vsel %vm700, %v783, 0
        %v795 = vsel %vm700, %v784, 0
        %797 = vmatprep.subr.bf16.mxu0 0
        %798 = vmatpush1.bf16.xpose.msra.mxu0 %v786
        %799 = vmatprep.subr.bf16.mxu0 0
        %800 = vmatpush1.bf16.xpose.msra.mxu0 %v789
        %801 = vmatprep.subr.bf16.mxu0 0
        %802 = vmatpush1.bf16.xpose.msra.mxu0 %v792
        %803 = vmatprep.subr.bf16.mxu0 0
        %804 = vmatpush1.bf16.xpose.msra.mxu0 %v795
        %805 = vmatprep.subr.bf16.mxu0 0
        %806 = vmatpush1.bf16.xpose.msra.mxu0 0
        %807 = vmatprep.subr.bf16.mxu0 0
        %808 = vmatpush1.bf16.xpose.msra.mxu0 0
        %809 = vmatprep.subr.bf16.mxu0 0
        %810 = vmatpush1.bf16.xpose.msra.mxu0 0
        %811 = vmatprep.subr.bf16.mxu0 0
        %812 = vmatpush1.bf16.xpose.msra.mxu0 0
        %813 = vmatprep.subr.bf16.mxu0 0
        %814 = vmatpush1.bf16.xpose.msra.mxu0 0
        %815 = vmatprep.subr.bf16.mxu0 0
        %816 = vmatpush1.bf16.xpose.msra.mxu0 0
        %817 = vmatprep.subr.bf16.mxu0 0
        %818 = vmatpush1.bf16.xpose.msra.mxu0 0
        %819 = vmatprep.subr.bf16.mxu0 0
        %820 = vmatpush1.bf16.xpose.msra.mxu0 0
        %821 = vmatprep.subr.bf16.mxu0 0
        %822 = vmatpush1.bf16.xpose.msra.mxu0 0
        %823 = vmatprep.subr.bf16.mxu0 0
        %824 = vmatpush1.bf16.xpose.msra.mxu0 0
        %825 = vmatprep.subr.bf16.mxu0 0
        %826 = vmatpush1.bf16.xpose.msra.mxu0 0
        %827 = vmatprep.subr.bf16.mxu0 0
        %828 = vmatpush1.bf16.xpose.msra.mxu0 0
        %829 = vmatprep.mubr.bf16.mxu0 0
        %830 = vmatmul.mubr.bf16.gmra.mrb[0].mxu0 %v702
        %v831 = vpop.f32.mrb[0].mxu0
        %v832 = vadd.f32 0.0, %v831
        %v833 = vpop.f32.mrb[0].mxu0
        %v834 = vpop.f32.mrb[0].mxu0
        %v835 = vadd.f32 0.0, %v834
        %v836 = vpop.f32.mrb[0].mxu0
        %837 = vdwg.mxu0
        %v838 = vld [vmem:[#allocation4] sm:$0xff]
        %vm839 = vcmask 523264
        %840 = vst.msk [vmem:[#allocation2] sm:$0xff] %vm839, %v838
        %841 = vst.msk [vmem:[#allocation2 + $0x8] sm:$0xff] %vm839, %v751
        %842 = vst.msk [vmem:[#allocation2 + $0x10] sm:$0xff] %vm839, %v754
        %843 = vst.msk [vmem:[#allocation4] sm:$0xff] %vm839, %v754
        %v844 = vld [vmem:[#allocation11] sm:$0xf]
        %v845 = vld [vmem:[#allocation2 + $0x5] sm:$0xff]
        %v846 = vld [vmem:[#allocation2 + $0xd] sm:$0xff]
        %v847 = vlaneseq
        %v848 = vshrl.u32 %v847, 7
        %v849 = vsub.s32 0, %v848
        %v850 = vrot.slane %v844, %v849
        %v851 = vmul.f32 %v845, %v850
        %v852 = vmul.f32 %v846, %v850
        %v853 = vld [vmem:[#allocation2 + $0x6] sm:$0xff]
        %v854 = vld [vmem:[#allocation2 + $0xe] sm:$0xff]
        %v855 = vlaneseq
        %v856 = vshrl.u32 %v855, 7
        %v857 = vsub.s32 1, %v856
        %v858 = vrot.slane %v844, %v857
        %v859 = vmul.f32 %v853, %v858
        %v860 = vmul.f32 %v854, %v858
        %v861 = vadd.f32 %v851, %v859
        %v862 = vadd.f32 %v852, %v860
        %v863 = vld [vmem:[#allocation2 + $0x7] sm:$0xff]
        %v864 = vld [vmem:[#allocation2 + $0xf] sm:$0xff]
        %v865 = vlaneseq
        %v866 = vshrl.u32 %v865, 7
        %v867 = vsub.s32 2, %v866
        %v868 = vrot.slane %v844, %v867
        %v869 = vmul.f32 %v863, %v868
        %v870 = vmul.f32 %v864, %v868
        %v871 = vadd.f32 %v861, %v869
        %v872 = vadd.f32 %v862, %v870
        %v873 = vld [vmem:[#allocation2 + $0x8] sm:$0xff]
        %v874 = vld [vmem:[#allocation2 + $0x10] sm:$0xff]
        %v875 = vlaneseq
        %v876 = vshrl.u32 %v875, 7
        %v877 = vsub.s32 3, %v876
        %v878 = vrot.slane %v844, %v877
        %v879 = vmul.f32 %v873, %v878
        %v880 = vmul.f32 %v874, %v878
        %v881 = vadd.f32 %v871, %v879
        %v882 = vadd.f32 %v872, %v880
        %v883 = vld [vmem:[#allocation13] sm:$0x1]
        %v885 = vlaneseq
        %v886 = vshrl.u32 %v885, 7
        %v887 = vsub.s32 0, %v886
        %v888 = vrot.slane %v883, %v887
        %v890 = vadd.f32 %v881, %v888
        %v891 = vadd.f32 %v882, %v888
        %v892 = vsub.f32 0.0, %v890
        %v893 = vsub.f32 0.0, %v891
        %v894 = vmul.f32 %v892, 1.442695
        %v895 = vpow.pop %v894
        %v896 = vmul.f32 %v893, 1.442695
        %v897 = vpow.pop %v896
        %v898 = vadd.f32 %v895, 1.0
        %v899 = vadd.f32 %v897, 1.0
        %v900 = vrcp.pop %v898
        %v901 = vmul.f32 1.0, %v900
        %v902 = vrcp.pop %v899
        %v903 = vmul.f32 1.0, %v902
        %v904 = vmul.f32 %v890, %v901
        %v905 = vmul.f32 %v891, %v903
        %v906 = vpack.c.bf16 %v905, %v904
        %v907 = vld [vmem:[#allocation14] sm:$0x1]
        %v909 = vsel %vm839, %v906, 0
        %v912 = vsel %vm839, %v907, 0
        %914 = vmatprep.subr.bf16.mxu0 0
        %915 = vmatpush1.bf16.xpose.msra.mxu0 %v912
        %916 = vmatprep.subr.bf16.mxu0 0
        %917 = vmatpush1.bf16.xpose.msra.mxu0 0
        %918 = vmatprep.subr.bf16.mxu0 0
        %919 = vmatpush1.bf16.xpose.msra.mxu0 0
        %920 = vmatprep.subr.bf16.mxu0 0
        %921 = vmatpush1.bf16.xpose.msra.mxu0 0
        %922 = vmatprep.subr.bf16.mxu0 0
        %923 = vmatpush1.bf16.xpose.msra.mxu0 0
        %924 = vmatprep.subr.bf16.mxu0 0
        %925 = vmatpush1.bf16.xpose.msra.mxu0 0
        %926 = vmatprep.subr.bf16.mxu0 0
        %927 = vmatpush1.bf16.xpose.msra.mxu0 0
        %928 = vmatprep.subr.bf16.mxu0 0
        %929 = vmatpush1.bf16.xpose.msra.mxu0 0
        %930 = vmatprep.subr.bf16.mxu0 0
        %931 = vmatpush1.bf16.xpose.msra.mxu0 0
        %932 = vmatprep.subr.bf16.mxu0 0
        %933 = vmatpush1.bf16.xpose.msra.mxu0 0
        %934 = vmatprep.subr.bf16.mxu0 0
        %935 = vmatpush1.bf16.xpose.msra.mxu0 0
        %936 = vmatprep.subr.bf16.mxu0 0
        %937 = vmatpush1.bf16.xpose.msra.mxu0 0
        %938 = vmatprep.subr.bf16.mxu0 0
        %939 = vmatpush1.bf16.xpose.msra.mxu0 0
        %940 = vmatprep.subr.bf16.mxu0 0
        %941 = vmatpush1.bf16.xpose.msra.mxu0 0
        %942 = vmatprep.subr.bf16.mxu0 0
        %943 = vmatpush1.bf16.xpose.msra.mxu0 0
        %944 = vmatprep.subr.bf16.mxu0 0
        %945 = vmatpush1.bf16.xpose.msra.mxu0 0
        %946 = vmatprep.mubr.bf16.mxu0 0
        %947 = vmatmul.mubr.bf16.gmra.mrb[0].mxu0 %v909
        %v948 = vpop.f32.mrb[0].mxu0
        %v949 = vadd.f32 0.0, %v948
        %v950 = vpop.f32.mrb[0].mxu0
        %v951 = vpop.f32.mrb[0].mxu0
        %v952 = vadd.f32 0.0, %v951
        %v953 = vpop.f32.mrb[0].mxu0
        %954 = vdwg.mxu0
        %v955 = vld [vmem:[#allocation16] sm:$0xf]
        %v956 = vld [vmem:[#allocation16 + $0x4] sm:$0xf]
        %v959 = vunpack.c.l.b16 %v955
        %v960 = vunpack.c.l.b16 %v956
        %v961 = vpack.c.b16 %v960, %v959
        %v963 = vsel %vm839, %v961, 0
        %965 = vmatprep.subr.bf16.mxu0 0
        %966 = vmatpush1.bf16.xpose.msra.mxu0 %v963
        %967 = vmatprep.subr.bf16.mxu0 0
        %968 = vmatpush1.bf16.xpose.msra.mxu0 0
        %969 = vmatprep.subr.bf16.mxu0 0
        %970 = vmatpush1.bf16.xpose.msra.mxu0 0
        %971 = vmatprep.subr.bf16.mxu0 0
        %972 = vmatpush1.bf16.xpose.msra.mxu0 0
        %973 = vmatprep.subr.bf16.mxu0 0
        %974 = vmatpush1.bf16.xpose.msra.mxu0 0
        %975 = vmatprep.subr.bf16.mxu0 0
        %976 = vmatpush1.bf16.xpose.msra.mxu0 0
        %977 = vmatprep.subr.bf16.mxu0 0
        %978 = vmatpush1.bf16.xpose.msra.mxu0 0
        %979 = vmatprep.subr.bf16.mxu0 0
        %980 = vmatpush1.bf16.xpose.msra.mxu0 0
        %981 = vmatprep.subr.bf16.mxu0 0
        %982 = vmatpush1.bf16.xpose.msra.mxu0 0
        %983 = vmatprep.subr.bf16.mxu0 0
        %984 = vmatpush1.bf16.xpose.msra.mxu0 0
        %985 = vmatprep.subr.bf16.mxu0 0
        %986 = vmatpush1.bf16.xpose.msra.mxu0 0
        %987 = vmatprep.subr.bf16.mxu0 0
        %988 = vmatpush1.bf16.xpose.msra.mxu0 0
        %989 = vmatprep.subr.bf16.mxu0 0
        %990 = vmatpush1.bf16.xpose.msra.mxu0 0
        %991 = vmatprep.subr.bf16.mxu0 0
        %992 = vmatpush1.bf16.xpose.msra.mxu0 0
        %993 = vmatprep.subr.bf16.mxu0 0
        %994 = vmatpush1.bf16.xpose.msra.mxu0 0
        %995 = vmatprep.subr.bf16.mxu0 0
        %996 = vmatpush1.bf16.xpose.msra.mxu0 0
        %997 = vmatprep.mubr.bf16.mxu0 0
        %998 = vmatmul.mubr.bf16.gmra.mrb[0].mxu0 %v909
        %v999 = vpop.f32.mrb[0].mxu0
        %v1000 = vadd.f32 0.0, %v999
        %v1001 = vpop.f32.mrb[0].mxu0
        %v1002 = vpop.f32.mrb[0].mxu0
        %v1003 = vadd.f32 0.0, %v1002
        %v1004 = vpop.f32.mrb[0].mxu0
        %1005 = vdwg.mxu0
        %v1006 = vld [vmem:[#allocation17] sm:$0xf]
        %v1007 = vld [vmem:[#allocation17 + $0x4] sm:$0xf]
        %v1010 = vunpack.c.l.b16 %v1006
        %v1011 = vunpack.c.l.b16 %v1007
        %v1012 = vpack.c.b16 %v1011, %v1010
        %v1014 = vsel %vm839, %v1012, 0
        %1016 = vmatprep.subr.bf16.mxu0 0
        %1017 = vmatpush1.bf16.xpose.msra.mxu0 %v1014
        %1018 = vmatprep.subr.bf16.mxu0 0
        %1019 = vmatpush1.bf16.xpose.msra.mxu0 0
        %1020 = vmatprep.subr.bf16.mxu0 0
        %1021 = vmatpush1.bf16.xpose.msra.mxu0 0
        %1022 = vmatprep.subr.bf16.mxu0 0
        %1023 = vmatpush1.bf16.xpose.msra.mxu0 0
        %1024 = vmatprep.subr.bf16.mxu0 0
        %1025 = vmatpush1.bf16.xpose.msra.mxu0 0
        %1026 = vmatprep.subr.bf16.mxu0 0
        %1027 = vmatpush1.bf16.xpose.msra.mxu0 0
        %1028 = vmatprep.subr.bf16.mxu0 0
        %1029 = vmatpush1.bf16.xpose.msra.mxu0 0
        %1030 = vmatprep.subr.bf16.mxu0 0
        %1031 = vmatpush1.bf16.xpose.msra.mxu0 0
        %1032 = vmatprep.subr.bf16.mxu0 0
        %1033 = vmatpush1.bf16.xpose.msra.mxu0 0
        %1034 = vmatprep.subr.bf16.mxu0 0
        %1035 = vmatpush1.bf16.xpose.msra.mxu0 0
        %1036 = vmatprep.subr.bf16.mxu0 0
        %1037 = vmatpush1.bf16.xpose.msra.mxu0 0
        %1038 = vmatprep.subr.bf16.mxu0 0
        %1039 = vmatpush1.bf16.xpose.msra.mxu0 0
        %1040 = vmatprep.subr.bf16.mxu0 0
        %1041 = vmatpush1.bf16.xpose.msra.mxu0 0
        %1042 = vmatprep.subr.bf16.mxu0 0
        %1043 = vmatpush1.bf16.xpose.msra.mxu0 0
        %1044 = vmatprep.subr.bf16.mxu0 0
        %1045 = vmatpush1.bf16.xpose.msra.mxu0 0
        %1046 = vmatprep.subr.bf16.mxu0 0
        %1047 = vmatpush1.bf16.xpose.msra.mxu0 0
        %1048 = vmatprep.mubr.bf16.mxu0 0
        %1049 = vmatmul.mubr.bf16.gmra.mrb[0].mxu0 %v909
        %v1050 = vpop.f32.mrb[0].mxu0
        %v1051 = vadd.f32 0.0, %v1050
        %v1052 = vpop.f32.mrb[0].mxu0
        %v1053 = vpop.f32.mrb[0].mxu0
        %v1054 = vadd.f32 0.0, %v1053
        %v1055 = vpop.f32.mrb[0].mxu0
        %1056 = vdwg.mxu0
        %v1057 = vpack.c.bf16 %v952, %v949
        %v1058 = vld [vmem:[#allocation19] sm:$0xf]
        %v1059 = vld [vmem:[#allocation19 + $0x4] sm:$0xf]
        %v1060 = vld [vmem:[#allocation19 + $0x8] sm:$0xf]
        %v1061 = vld [vmem:[#allocation19 + $0xc] sm:$0xf]
        %v1062 = vld [vmem:[#allocation19 + $0x10] sm:$0xf]
        %v1063 = vld [vmem:[#allocation19 + $0x14] sm:$0xf]
        %v1064 = vld [vmem:[#allocation19 + $0x18] sm:$0xf]
        %v1065 = vld [vmem:[#allocation19 + $0x1c] sm:$0xf]
        %v1066 = vld [vmem:[#allocation20] sm:$0x1]
        %v1068 = vlaneseq
        %v1069 = vshrl.u32 %v1068, 7
        %v1070 = vsub.s32 0, %v1069
        %v1071 = vrot.slane %v1066, %v1070
        %v1081 = vunpack.c.l.b16 %v1058
        %v1082 = vunpack.c.l.b16 %v1059
        %v1083 = vunpack.c.l.b16 %v1060
        %v1084 = vunpack.c.l.b16 %v1061
        %v1085 = vunpack.c.l.b16 %v1062
        %v1086 = vunpack.c.l.b16 %v1063
        %v1087 = vunpack.c.l.b16 %v1064
        %v1088 = vunpack.c.l.b16 %v1065
        %v1089 = vpack.c.b16 %v1082, %v1081
        %v1090 = vpack.c.b16 %v1084, %v1083
        %v1091 = vpack.c.b16 %v1086, %v1085
        %v1092 = vpack.c.b16 %v1088, %v1087
        %vm1093 = vcmask 15360
        %v1095 = vsel %vm1093, %v1057, 0
        %v1098 = vsel %vm1093, %v1089, 0
        %v1101 = vsel %vm1093, %v1090, 0
        %v1104 = vsel %vm1093, %v1091, 0
        %v1107 = vsel %vm1093, %v1092, 0
        %1109 = vmatprep.subr.bf16.mxu0 0
        %1110 = vmatpush1.bf16.xpose.msra.mxu0 %v1098
        %1111 = vmatprep.subr.bf16.mxu0 0
        %1112 = vmatpush1.bf16.xpose.msra.mxu0 %v1101
        %1113 = vmatprep.subr.bf16.mxu0 0
        %1114 = vmatpush1.bf16.xpose.msra.mxu0 %v1104
        %1115 = vmatprep.subr.bf16.mxu0 0
        %1116 = vmatpush1.bf16.xpose.msra.mxu0 %v1107
        %1117 = vmatprep.subr.bf16.mxu0 0
        %1118 = vmatpush1.bf16.xpose.msra.mxu0 0
        %1119 = vmatprep.subr.bf16.mxu0 0
        %1120 = vmatpush1.bf16.xpose.msra.mxu0 0
        %1121 = vmatprep.subr.bf16.mxu0 0
        %1122 = vmatpush1.bf16.xpose.msra.mxu0 0
        %1123 = vmatprep.subr.bf16.mxu0 0
        %1124 = vmatpush1.bf16.xpose.msra.mxu0 0
        %1125 = vmatprep.subr.bf16.mxu0 0
        %1126 = vmatpush1.bf16.xpose.msra.mxu0 0
        %1127 = vmatprep.subr.bf16.mxu0 0
        %1128 = vmatpush1.bf16.xpose.msra.mxu0 0
        %1129 = vmatprep.subr.bf16.mxu0 0
        %1130 = vmatpush1.bf16.xpose.msra.mxu0 0
        %1131 = vmatprep.subr.bf16.mxu0 0
        %1132 = vmatpush1.bf16.xpose.msra.mxu0 0
        %1133 = vmatprep.subr.bf16.mxu0 0
        %1134 = vmatpush1.bf16.xpose.msra.mxu0 0
        %1135 = vmatprep.subr.bf16.mxu0 0
        %1136 = vmatpush1.bf16.xpose.msra.mxu0 0
        %1137 = vmatprep.subr.bf16.mxu0 0
        %1138 = vmatpush1.bf16.xpose.msra.mxu0 0
        %1139 = vmatprep.subr.bf16.mxu0 0
        %1140 = vmatpush1.bf16.xpose.msra.mxu0 0
        %1141 = vmatprep.mubr.bf16.mxu0 0
        %1142 = vmatmul.mubr.bf16.gmra.mrb[0].mxu0 %v1095
        %v1143 = vpop.f32.mrb[0].mxu0
        %v1144 = vadd.f32 %v1071, %v1143
        %v1145 = vpop.f32.mrb[0].mxu0
        %v1146 = vpop.f32.mrb[0].mxu0
        %v1147 = vadd.f32 %v1071, %v1146
        %v1148 = vpop.f32.mrb[0].mxu0
        %1149 = vdwg.mxu0
        %v1150 = vmax.f32 %v1144, 0.0
        %v1151 = vmax.f32 %v1147, 0.0
        %v1152 = vand.u32 2147483647, %v1144
        %v1153 = vand.u32 2147483647, %v1147
        %v1154 = vsub.f32 0.0, %v1152
        %v1155 = vsub.f32 0.0, %v1153
        %v1156 = vmul.f32 %v1154, 1.442695
        %v1157 = vpow.pop %v1156
        %v1158 = vmul.f32 %v1155, 1.442695
        %v1159 = vpow.pop %v1158
        %v1160 = vadd.f32 %v1157, 1.0
        %v1161 = vlog2.pop %v1160
        %v1162 = vmul.f32 %v1161, 0.6931472
        %v1163 = vmul.f32 -0.5, %v1157
        %v1164 = vadd.f32 %v1163, 1.0
        %v1165 = vmul.f32 %v1164, %v1157
        %v1166 = vand.u32 2147483647, %v1157
        %vm1167 = vcmp.lt.f32.partialorder %v1166, 0.0004427343
        %v1168 = vsel %vm1167, %v1165, %v1162
        %v1169 = vadd.f32 %v1159, 1.0
        %v1170 = vlog2.pop %v1169
        %v1171 = vmul.f32 %v1170, 0.6931472
        %v1172 = vmul.f32 -0.5, %v1159
        %v1173 = vadd.f32 %v1172, 1.0
        %v1174 = vmul.f32 %v1173, %v1159
        %v1175 = vand.u32 2147483647, %v1159
        %vm1176 = vcmp.lt.f32.partialorder %v1175, 0.0004427343
        %v1177 = vsel %vm1176, %v1174, %v1171
        %v1178 = vadd.f32 %v1150, %v1168
        %v1179 = vadd.f32 %v1151, %v1177
        %v1180 = vmul.f32 %v1178, %v904
        %v1181 = vmul.f32 %v1179, %v905
        %v1182 = vld [vmem:[#allocation22] sm:$0xff]
        %v1183 = vld [vmem:[#allocation22 + $0x8] sm:$0xff]
        %v1184 = vld [vmem:[#allocation3] sm:$0xff]
        %v1185 = vld [vmem:[#allocation3 + $0x8] sm:$0xff]
        %v1187 = vcombine.high %v1178, %v1178
        %v1189 = vunpack.c.l.s4 1966171168
        %v1190 = vunpack.c.0.s8 %v1189
        %v1191 = vlaneseq
        %v1192 = vshrl.u32 %v1191, 7
        %v1193 = vsub.s32 %v1190, %v1192
        %v1194 = vrot.slane %v1178, %v1193
        %v1196 = vunpack.c.l.s4 1966171168
        %v1197 = vunpack.c.0.s8 %v1196
        %v1198 = vlaneseq
        %v1199 = vshrl.u32 %v1198, 7
        %v1200 = vsub.s32 %v1197, %v1199
        %v1201 = vrot.slane %v1187, %v1200
        %v1202 = vcombine.high %v1194, %v1194
        %v1203 = vcombine.high %v1201, %v1201
        %v1205 = vunpack.c.l.s4 1966171168
        %v1206 = vunpack.c.0.s8 %v1205
        %v1207 = vlaneseq
        %v1208 = vshrl.u32 %v1207, 7
        %v1209 = vsub.s32 %v1206, %v1208
        %v1210 = vrot.slane %v1194, %v1209
        %v1212 = vunpack.c.l.s4 1966171168
        %v1213 = vunpack.c.0.s8 %v1212
        %v1214 = vlaneseq
        %v1215 = vshrl.u32 %v1214, 7
        %v1216 = vsub.s32 %v1213, %v1215
        %v1217 = vrot.slane %v1201, %v1216
        %v1219 = vunpack.c.l.s4 1966171168
        %v1220 = vunpack.c.0.s8 %v1219
        %v1221 = vlaneseq
        %v1222 = vshrl.u32 %v1221, 7
        %v1223 = vsub.s32 %v1220, %v1222
        %v1224 = vrot.slane %v1202, %v1223
        %v1226 = vunpack.c.l.s4 1966171168
        %v1227 = vunpack.c.0.s8 %v1226
        %v1228 = vlaneseq
        %v1229 = vshrl.u32 %v1228, 7
        %v1230 = vsub.s32 %v1227, %v1229
        %v1231 = vrot.slane %v1203, %v1230
        %v1232 = vcombine.high %v1210, %v1210
        %v1233 = vcombine.high %v1217, %v1217
        %v1234 = vcombine.high %v1224, %v1224
        %v1235 = vcombine.high %v1231, %v1231
        %v1236 = vlaneseq
        %v1237 = vshrl.u32 %v1236, 7
        %v1238 = vsub.s32 0, %v1237
        %v1239 = vrot.slane %v1210, %v1238
        %v1240 = vlaneseq
        %v1241 = vshrl.u32 %v1240, 7
        %v1242 = vsub.s32 0, %v1241
        %v1243 = vrot.slane %v1224, %v1242
        %v1244 = vlaneseq
        %v1245 = vshrl.u32 %v1244, 7
        %v1246 = vsub.s32 0, %v1245
        %v1247 = vrot.slane %v1232, %v1246
        %v1248 = vlaneseq
        %v1249 = vshrl.u32 %v1248, 7
        %v1250 = vsub.s32 0, %v1249
        %v1251 = vrot.slane %v1234, %v1250
        %v1252 = vlaneseq
        %v1253 = vshrl.u32 %v1252, 7
        %v1254 = vsub.s32 0, %v1253
        %v1255 = vrot.slane %v1217, %v1254
        %v1256 = vlaneseq
        %v1257 = vshrl.u32 %v1256, 7
        %v1258 = vsub.s32 0, %v1257
        %v1259 = vrot.slane %v1231, %v1258
        %v1260 = vlaneseq
        %v1261 = vshrl.u32 %v1260, 7
        %v1262 = vsub.s32 0, %v1261
        %v1263 = vrot.slane %v1233, %v1262
        %v1264 = vlaneseq
        %v1265 = vshrl.u32 %v1264, 7
        %v1266 = vsub.s32 0, %v1265
        %v1267 = vrot.slane %v1235, %v1266
        %v1276 = vmul.f32 %v1239, %v1182
        %v1277 = vmul.f32 %v1239, %v1183
        %v1278 = vmul.f32 %v1243, %v1182
        %v1279 = vmul.f32 %v1243, %v1183
        %v1280 = vmul.f32 %v1247, %v1182
        %v1281 = vmul.f32 %v1247, %v1183
        %v1282 = vmul.f32 %v1251, %v1182
        %v1283 = vmul.f32 %v1251, %v1183
        %v1284 = vmul.f32 %v1255, %v1182
        %v1285 = vmul.f32 %v1255, %v1183
        %v1286 = vmul.f32 %v1259, %v1182
        %v1287 = vmul.f32 %v1259, %v1183
        %v1288 = vmul.f32 %v1263, %v1182
        %v1289 = vmul.f32 %v1263, %v1183
        %v1290 = vmul.f32 %v1267, %v1182
        %v1291 = vmul.f32 %v1267, %v1183
        %v1292 = vmul.f32 %v1276, 1.442695
        %v1293 = vpow.pop %v1292
        %v1294 = vmul.f32 %v1277, 1.442695
        %v1295 = vpow.pop %v1294
        %v1296 = vmul.f32 %v1278, 1.442695
        %v1297 = vpow.pop %v1296
        %v1298 = vmul.f32 %v1279, 1.442695
        %v1299 = vpow.pop %v1298
        %v1300 = vmul.f32 %v1280, 1.442695
        %v1301 = vpow.pop %v1300
        %v1302 = vmul.f32 %v1281, 1.442695
        %v1303 = vpow.pop %v1302
        %v1304 = vmul.f32 %v1282, 1.442695
        %v1305 = vpow.pop %v1304
        %v1306 = vmul.f32 %v1283, 1.442695
        %v1307 = vpow.pop %v1306
        %v1308 = vmul.f32 %v1284, 1.442695
        %v1309 = vpow.pop %v1308
        %v1310 = vmul.f32 %v1285, 1.442695
        %v1311 = vpow.pop %v1310
        %v1312 = vmul.f32 %v1286, 1.442695
        %v1313 = vpow.pop %v1312
        %v1314 = vmul.f32 %v1287, 1.442695
        %v1315 = vpow.pop %v1314
        %v1316 = vmul.f32 %v1288, 1.442695
        %v1317 = vpow.pop %v1316
        %v1318 = vmul.f32 %v1289, 1.442695
        %v1319 = vpow.pop %v1318
        %v1320 = vmul.f32 %v1290, 1.442695
        %v1321 = vpow.pop %v1320
        %v1322 = vmul.f32 %v1291, 1.442695
        %v1323 = vpow.pop %v1322
        %v1325 = vcombine.high %v1180, %v1180
        %v1327 = vunpack.c.l.s4 1966171168
        %v1328 = vunpack.c.0.s8 %v1327
        %v1329 = vlaneseq
        %v1330 = vshrl.u32 %v1329, 7
        %v1331 = vsub.s32 %v1328, %v1330
        %v1332 = vrot.slane %v1180, %v1331
        %v1334 = vunpack.c.l.s4 1966171168
        %v1335 = vunpack.c.0.s8 %v1334
        %v1336 = vlaneseq
        %v1337 = vshrl.u32 %v1336, 7
        %v1338 = vsub.s32 %v1335, %v1337
        %v1339 = vrot.slane %v1325, %v1338
        %v1340 = vcombine.high %v1332, %v1332
        %v1341 = vcombine.high %v1339, %v1339
        %v1343 = vunpack.c.l.s4 1966171168
        %v1344 = vunpack.c.0.s8 %v1343
        %v1345 = vlaneseq
        %v1346 = vshrl.u32 %v1345, 7
        %v1347 = vsub.s32 %v1344, %v1346
        %v1348 = vrot.slane %v1332, %v1347
        %v1350 = vunpack.c.l.s4 1966171168
        %v1351 = vunpack.c.0.s8 %v1350
        %v1352 = vlaneseq
        %v1353 = vshrl.u32 %v1352, 7
        %v1354 = vsub.s32 %v1351, %v1353
        %v1355 = vrot.slane %v1339, %v1354
        %v1357 = vunpack.c.l.s4 1966171168
        %v1358 = vunpack.c.0.s8 %v1357
        %v1359 = vlaneseq
        %v1360 = vshrl.u32 %v1359, 7
        %v1361 = vsub.s32 %v1358, %v1360
        %v1362 = vrot.slane %v1340, %v1361
        %v1364 = vunpack.c.l.s4 1966171168
        %v1365 = vunpack.c.0.s8 %v1364
        %v1366 = vlaneseq
        %v1367 = vshrl.u32 %v1366, 7
        %v1368 = vsub.s32 %v1365, %v1367
        %v1369 = vrot.slane %v1341, %v1368
        %v1370 = vcombine.high %v1348, %v1348
        %v1371 = vcombine.high %v1355, %v1355
        %v1372 = vcombine.high %v1362, %v1362
        %v1373 = vcombine.high %v1369, %v1369
        %v1374 = vlaneseq
        %v1375 = vshrl.u32 %v1374, 7
        %v1376 = vsub.s32 0, %v1375
        %v1377 = vrot.slane %v1000, %v1376
        %1379 = vbcast.lane.b32.xlu0 %v1377, 256
        %v1380 = vpop.permute.xlu0 %1379
        %s1382 = sor.u32 256, 8
        %1383 = vbcast.lane.b32.xlu0 %v1377, %s1382
        %v1384 = vpop.permute.xlu0 %1383
        %v1385 = vlaneseq
        %v1386 = vshrl.u32 %v1385, 7
        %v1387 = vsub.s32 1, %v1386
        %v1388 = vrot.slane %v1000, %v1387
        %1390 = vbcast.lane.b32.xlu0 %v1388, 256
        %v1391 = vpop.permute.xlu0 %1390
        %s1393 = sor.u32 256, 8
        %1394 = vbcast.lane.b32.xlu0 %v1388, %s1393
        %v1395 = vpop.permute.xlu0 %1394
        %v1396 = vlaneseq
        %v1397 = vshrl.u32 %v1396, 7
        %v1398 = vsub.s32 2, %v1397
        %v1399 = vrot.slane %v1000, %v1398
        %1401 = vbcast.lane.b32.xlu0 %v1399, 256
        %v1402 = vpop.permute.xlu0 %1401
        %s1404 = sor.u32 256, 8
        %1405 = vbcast.lane.b32.xlu0 %v1399, %s1404
        %v1406 = vpop.permute.xlu0 %1405
        %v1407 = vlaneseq
        %v1408 = vshrl.u32 %v1407, 7
        %v1409 = vsub.s32 3, %v1408
        %v1410 = vrot.slane %v1000, %v1409
        %1412 = vbcast.lane.b32.xlu0 %v1410, 256
        %v1413 = vpop.permute.xlu0 %1412
        %s1415 = sor.u32 256, 8
        %1416 = vbcast.lane.b32.xlu0 %v1410, %s1415
        %v1417 = vpop.permute.xlu0 %1416
        %v1418 = vlaneseq
        %v1419 = vshrl.u32 %v1418, 7
        %v1420 = vsub.s32 4, %v1419
        %v1421 = vrot.slane %v1000, %v1420
        %1423 = vbcast.lane.b32.xlu0 %v1421, 256
        %v1424 = vpop.permute.xlu0 %1423
        %s1426 = sor.u32 256, 8
        %1427 = vbcast.lane.b32.xlu0 %v1421, %s1426
        %v1428 = vpop.permute.xlu0 %1427
        %v1429 = vlaneseq
        %v1430 = vshrl.u32 %v1429, 7
        %v1431 = vsub.s32 5, %v1430
        %v1432 = vrot.slane %v1000, %v1431
        %1434 = vbcast.lane.b32.xlu0 %v1432, 256
        %v1435 = vpop.permute.xlu0 %1434
        %s1437 = sor.u32 256, 8
        %1438 = vbcast.lane.b32.xlu0 %v1432, %s1437
        %v1439 = vpop.permute.xlu0 %1438
        %v1440 = vlaneseq
        %v1441 = vshrl.u32 %v1440, 7
        %v1442 = vsub.s32 6, %v1441
        %v1443 = vrot.slane %v1000, %v1442
        %1445 = vbcast.lane.b32.xlu0 %v1443, 256
        %v1446 = vpop.permute.xlu0 %1445
        %s1448 = sor.u32 256, 8
        %1449 = vbcast.lane.b32.xlu0 %v1443, %s1448
        %v1450 = vpop.permute.xlu0 %1449
        %v1451 = vlaneseq
        %v1452 = vshrl.u32 %v1451, 7
        %v1453 = vsub.s32 7, %v1452
        %v1454 = vrot.slane %v1000, %v1453
        %1456 = vbcast.lane.b32.xlu0 %v1454, 256
        %v1457 = vpop.permute.xlu0 %1456
        %s1459 = sor.u32 256, 8
        %1460 = vbcast.lane.b32.xlu0 %v1454, %s1459
        %v1461 = vpop.permute.xlu0 %1460
        %v1462 = vlaneseq
        %v1463 = vshrl.u32 %v1462, 7
        %v1464 = vsub.s32 0, %v1463
        %v1465 = vrot.slane %v1348, %v1464
        %v1466 = vlaneseq
        %v1467 = vshrl.u32 %v1466, 7
        %v1468 = vsub.s32 0, %v1467
        %v1469 = vrot.slane %v1362, %v1468
        %v1470 = vlaneseq
        %v1471 = vshrl.u32 %v1470, 7
        %v1472 = vsub.s32 0, %v1471
        %v1473 = vrot.slane %v1370, %v1472
        %v1474 = vlaneseq
        %v1475 = vshrl.u32 %v1474, 7
        %v1476 = vsub.s32 0, %v1475
        %v1477 = vrot.slane %v1372, %v1476
        %v1478 = vlaneseq
        %v1479 = vshrl.u32 %v1478, 7
        %v1480 = vsub.s32 0, %v1479
        %v1481 = vrot.slane %v1355, %v1480
        %v1482 = vlaneseq
        %v1483 = vshrl.u32 %v1482, 7
        %v1484 = vsub.s32 0, %v1483
        %v1485 = vrot.slane %v1369, %v1484
        %v1486 = vlaneseq
        %v1487 = vshrl.u32 %v1486, 7
        %v1488 = vsub.s32 0, %v1487
        %v1489 = vrot.slane %v1371, %v1488
        %v1490 = vlaneseq
        %v1491 = vshrl.u32 %v1490, 7
        %v1492 = vsub.s32 0, %v1491
        %v1493 = vrot.slane %v1373, %v1492
        %v1502 = vmul.f32 %v1465, %v1380
        %v1503 = vmul.f32 %v1465, %v1384
        %v1504 = vmul.f32 %v1469, %v1391
        %v1505 = vmul.f32 %v1469, %v1395
        %v1506 = vmul.f32 %v1473, %v1402
        %v1507 = vmul.f32 %v1473, %v1406
        %v1508 = vmul.f32 %v1477, %v1413
        %v1509 = vmul.f32 %v1477, %v1417
        %v1510 = vmul.f32 %v1481, %v1424
        %v1511 = vmul.f32 %v1481, %v1428
        %v1512 = vmul.f32 %v1485, %v1435
        %v1513 = vmul.f32 %v1485, %v1439
        %v1514 = vmul.f32 %v1489, %v1446
        %v1515 = vmul.f32 %v1489, %v1450
        %v1516 = vmul.f32 %v1493, %v1457
        %v1517 = vmul.f32 %v1493, %v1461
        %v1518 = vmul.f32 %v1293, %v1184
        %v1519 = vmul.f32 %v1295, %v1185
        %v1520 = vadd.f32 %v1518, %v1502
        %v1521 = vadd.f32 %v1519, %v1503
        %v1522 = vmul.f32 %v1297, %v1520
        %v1523 = vmul.f32 %v1299, %v1521
        %v1524 = vadd.f32 %v1522, %v1504
        %v1525 = vadd.f32 %v1523, %v1505
        %v1526 = vmul.f32 %v1301, %v1524
        %v1527 = vmul.f32 %v1303, %v1525
        %v1528 = vadd.f32 %v1526, %v1506
        %v1529 = vadd.f32 %v1527, %v1507
        %v1530 = vmul.f32 %v1305, %v1528
        %v1531 = vmul.f32 %v1307, %v1529
        %v1532 = vadd.f32 %v1530, %v1508
        %v1533 = vadd.f32 %v1531, %v1509
        %v1534 = vmul.f32 %v1309, %v1532
        %v1535 = vmul.f32 %v1311, %v1533
        %v1536 = vadd.f32 %v1534, %v1510
        %v1537 = vadd.f32 %v1535, %v1511
        %v1538 = vmul.f32 %v1313, %v1536
        %v1539 = vmul.f32 %v1315, %v1537
        %v1540 = vadd.f32 %v1538, %v1512
        %v1541 = vadd.f32 %v1539, %v1513
        %v1542 = vmul.f32 %v1317, %v1540
        %v1543 = vmul.f32 %v1319, %v1541
        %v1544 = vadd.f32 %v1542, %v1514
        %v1545 = vadd.f32 %v1543, %v1515
        %v1546 = vmul.f32 %v1321, %v1544
        %v1547 = vmul.f32 %v1323, %v1545
        %v1548 = vadd.f32 %v1546, %v1516
        %v1549 = vadd.f32 %v1547, %v1517
        %v1550 = vlaneseq
        %v1551 = vshrl.u32 %v1550, 7
        %v1552 = vsub.s32 0, %v1551
        %v1553 = vrot.slane %v1051, %v1552
        %1555 = vbcast.lane.b32.xlu0 %v1553, 256
        %v1556 = vpop.permute.xlu0 %1555
        %s1558 = sor.u32 256, 8
        %1559 = vbcast.lane.b32.xlu0 %v1553, %s1558
        %v1560 = vpop.permute.xlu0 %1559
        %v1561 = vlaneseq
        %v1562 = vshrl.u32 %v1561, 7
        %v1563 = vsub.s32 1, %v1562
        %v1564 = vrot.slane %v1051, %v1563
        %1566 = vbcast.lane.b32.xlu0 %v1564, 256
        %v1567 = vpop.permute.xlu0 %1566
        %s1569 = sor.u32 256, 8
        %1570 = vbcast.lane.b32.xlu0 %v1564, %s1569
        %v1571 = vpop.permute.xlu0 %1570
        %v1572 = vlaneseq
        %v1573 = vshrl.u32 %v1572, 7
        %v1574 = vsub.s32 2, %v1573
        %v1575 = vrot.slane %v1051, %v1574
        %1577 = vbcast.lane.b32.xlu0 %v1575, 256
        %v1578 = vpop.permute.xlu0 %1577
        %s1580 = sor.u32 256, 8
        %1581 = vbcast.lane.b32.xlu0 %v1575, %s1580
        %v1582 = vpop.permute.xlu0 %1581
        %v1583 = vlaneseq
        %v1584 = vshrl.u32 %v1583, 7
        %v1585 = vsub.s32 3, %v1584
        %v1586 = vrot.slane %v1051, %v1585
        %1588 = vbcast.lane.b32.xlu0 %v1586, 256
        %v1589 = vpop.permute.xlu0 %1588
        %s1591 = sor.u32 256, 8
        %1592 = vbcast.lane.b32.xlu0 %v1586, %s1591
        %v1593 = vpop.permute.xlu0 %1592
        %v1594 = vlaneseq
        %v1595 = vshrl.u32 %v1594, 7
        %v1596 = vsub.s32 4, %v1595
        %v1597 = vrot.slane %v1051, %v1596
        %1599 = vbcast.lane.b32.xlu0 %v1597, 256
        %v1600 = vpop.permute.xlu0 %1599
        %s1602 = sor.u32 256, 8
        %1603 = vbcast.lane.b32.xlu0 %v1597, %s1602
        %v1604 = vpop.permute.xlu0 %1603
        %v1605 = vlaneseq
        %v1606 = vshrl.u32 %v1605, 7
        %v1607 = vsub.s32 5, %v1606
        %v1608 = vrot.slane %v1051, %v1607
        %1610 = vbcast.lane.b32.xlu0 %v1608, 256
        %v1611 = vpop.permute.xlu0 %1610
        %s1613 = sor.u32 256, 8
        %1614 = vbcast.lane.b32.xlu0 %v1608, %s1613
        %v1615 = vpop.permute.xlu0 %1614
        %v1616 = vlaneseq
        %v1617 = vshrl.u32 %v1616, 7
        %v1618 = vsub.s32 6, %v1617
        %v1619 = vrot.slane %v1051, %v1618
        %1621 = vbcast.lane.b32.xlu0 %v1619, 256
        %v1622 = vpop.permute.xlu0 %1621
        %s1624 = sor.u32 256, 8
        %1625 = vbcast.lane.b32.xlu0 %v1619, %s1624
        %v1626 = vpop.permute.xlu0 %1625
        %v1627 = vlaneseq
        %v1628 = vshrl.u32 %v1627, 7
        %v1629 = vsub.s32 7, %v1628
        %v1630 = vrot.slane %v1051, %v1629
        %1632 = vbcast.lane.b32.xlu0 %v1630, 256
        %v1633 = vpop.permute.xlu0 %1632
        %s1635 = sor.u32 256, 8
        %1636 = vbcast.lane.b32.xlu0 %v1630, %s1635
        %v1637 = vpop.permute.xlu0 %1636
        %v1638 = vmul.f32 %v1520, %v1556
        %v1639 = vmul.f32 %v1521, %v1560
        %v1640 = vmul.f32 %v1524, %v1567
        %v1641 = vmul.f32 %v1525, %v1571
        %v1642 = vmul.f32 %v1528, %v1578
        %v1643 = vmul.f32 %v1529, %v1582
        %v1644 = vmul.f32 %v1532, %v1589
        %v1645 = vmul.f32 %v1533, %v1593
        %v1646 = vmul.f32 %v1536, %v1600
        %v1647 = vmul.f32 %v1537, %v1604
        %v1648 = vmul.f32 %v1540, %v1611
        %v1649 = vmul.f32 %v1541, %v1615
        %v1650 = vmul.f32 %v1544, %v1622
        %v1651 = vmul.f32 %v1545, %v1626
        %v1652 = vmul.f32 %v1548, %v1633
        %v1653 = vmul.f32 %v1549, %v1637
        %v1654 = vsel %vm839, %v1638, 0.0
        %v1655 = vsel %vm839, %v1639, 0.0
        %v1656 = vadd.f32 %v1654, %v1655
        %v1657 = vrot.slane %v1656, 4
        %v1658 = vadd.f32 %v1656, %v1657
        %v1659 = vrot.slane %v1658, 2
        %v1660 = vadd.f32 %v1658, %v1659
        %v1661 = vrot.slane %v1660, 1
        %v1662 = vadd.f32 %v1660, %v1661
        %v1663 = vsel %vm839, %v1640, 0.0
        %v1664 = vsel %vm839, %v1641, 0.0
        %v1665 = vadd.f32 %v1663, %v1664
        %v1666 = vrot.slane %v1665, 4
        %v1667 = vadd.f32 %v1665, %v1666
        %v1668 = vrot.slane %v1667, 2
        %v1669 = vadd.f32 %v1667, %v1668
        %v1670 = vrot.slane %v1669, 1
        %v1671 = vadd.f32 %v1669, %v1670
        %v1672 = vsel %vm839, %v1642, 0.0
        %v1673 = vsel %vm839, %v1643, 0.0
        %v1674 = vadd.f32 %v1672, %v1673
        %v1675 = vrot.slane %v1674, 4
        %v1676 = vadd.f32 %v1674, %v1675
        %v1677 = vrot.slane %v1676, 2
        %v1678 = vadd.f32 %v1676, %v1677
        %v1679 = vrot.slane %v1678, 1
        %v1680 = vadd.f32 %v1678, %v1679
        %v1681 = vsel %vm839, %v1644, 0.0
        %v1682 = vsel %vm839, %v1645, 0.0
        %v1683 = vadd.f32 %v1681, %v1682
        %v1684 = vrot.slane %v1683, 4
        %v1685 = vadd.f32 %v1683, %v1684
        %v1686 = vrot.slane %v1685, 2
        %v1687 = vadd.f32 %v1685, %v1686
        %v1688 = vrot.slane %v1687, 1
        %v1689 = vadd.f32 %v1687, %v1688
        %v1690 = vsel %vm839, %v1646, 0.0
        %v1691 = vsel %vm839, %v1647, 0.0
        %v1692 = vadd.f32 %v1690, %v1691
        %v1693 = vrot.slane %v1692, 4
        %v1694 = vadd.f32 %v1692, %v1693
        %v1695 = vrot.slane %v1694, 2
        %v1696 = vadd.f32 %v1694, %v1695
        %v1697 = vrot.slane %v1696, 1
        %v1698 = vadd.f32 %v1696, %v1697
        %v1699 = vsel %vm839, %v1648, 0.0
        %v1700 = vsel %vm839, %v1649, 0.0
        %v1701 = vadd.f32 %v1699, %v1700
        %v1702 = vrot.slane %v1701, 4
        %v1703 = vadd.f32 %v1701, %v1702
        %v1704 = vrot.slane %v1703, 2
        %v1705 = vadd.f32 %v1703, %v1704
        %v1706 = vrot.slane %v1705, 1
        %v1707 = vadd.f32 %v1705, %v1706
        %v1708 = vsel %vm839, %v1650, 0.0
        %v1709 = vsel %vm839, %v1651, 0.0
        %v1710 = vadd.f32 %v1708, %v1709
        %v1711 = vrot.slane %v1710, 4
        %v1712 = vadd.f32 %v1710, %v1711
        %v1713 = vrot.slane %v1712, 2
        %v1714 = vadd.f32 %v1712, %v1713
        %v1715 = vrot.slane %v1714, 1
        %v1716 = vadd.f32 %v1714, %v1715
        %v1717 = vsel %vm839, %v1652, 0.0
        %v1718 = vsel %vm839, %v1653, 0.0
        %v1719 = vadd.f32 %v1717, %v1718
        %v1720 = vrot.slane %v1719, 4
        %v1721 = vadd.f32 %v1719, %v1720
        %v1722 = vrot.slane %v1721, 2
        %v1723 = vadd.f32 %v1721, %v1722
        %v1724 = vrot.slane %v1723, 1
        %v1725 = vadd.f32 %v1723, %v1724
        %v1727 = vcombine.high %v1179, %v1179
        %v1729 = vunpack.c.l.s4 1966171168
        %v1730 = vunpack.c.0.s8 %v1729
        %v1731 = vlaneseq
        %v1732 = vshrl.u32 %v1731, 7
        %v1733 = vsub.s32 %v1730, %v1732
        %v1734 = vrot.slane %v1179, %v1733
        %v1736 = vunpack.c.l.s4 1966171168
        %v1737 = vunpack.c.0.s8 %v1736
        %v1738 = vlaneseq
        %v1739 = vshrl.u32 %v1738, 7
        %v1740 = vsub.s32 %v1737, %v1739
        %v1741 = vrot.slane %v1727, %v1740
        %v1742 = vcombine.high %v1734, %v1734
        %v1743 = vcombine.high %v1741, %v1741
        %v1745 = vunpack.c.l.s4 1966171168
        %v1746 = vunpack.c.0.s8 %v1745
        %v1747 = vlaneseq
        %v1748 = vshrl.u32 %v1747, 7
        %v1749 = vsub.s32 %v1746, %v1748
        %v1750 = vrot.slane %v1734, %v1749
        %v1752 = vunpack.c.l.s4 1966171168
        %v1753 = vunpack.c.0.s8 %v1752
        %v1754 = vlaneseq
        %v1755 = vshrl.u32 %v1754, 7
        %v1756 = vsub.s32 %v1753, %v1755
        %v1757 = vrot.slane %v1741, %v1756
        %v1759 = vunpack.c.l.s4 1966171168
        %v1760 = vunpack.c.0.s8 %v1759
        %v1761 = vlaneseq
        %v1762 = vshrl.u32 %v1761, 7
        %v1763 = vsub.s32 %v1760, %v1762
        %v1764 = vrot.slane %v1742, %v1763
        %v1766 = vunpack.c.l.s4 1966171168
        %v1767 = vunpack.c.0.s8 %v1766
        %v1768 = vlaneseq
        %v1769 = vshrl.u32 %v1768, 7
        %v1770 = vsub.s32 %v1767, %v1769
        %v1771 = vrot.slane %v1743, %v1770
        %v1772 = vcombine.high %v1750, %v1750
        %v1773 = vcombine.high %v1757, %v1757
        %v1774 = vcombine.high %v1764, %v1764
        %v1775 = vcombine.high %v1771, %v1771
        %v1776 = vlaneseq
        %v1777 = vshrl.u32 %v1776, 7
        %v1778 = vsub.s32 0, %v1777
        %v1779 = vrot.slane %v1750, %v1778
        %v1780 = vlaneseq
        %v1781 = vshrl.u32 %v1780, 7
        %v1782 = vsub.s32 0, %v1781
        %v1783 = vrot.slane %v1764, %v1782
        %v1784 = vlaneseq
        %v1785 = vshrl.u32 %v1784, 7
        %v1786 = vsub.s32 0, %v1785
        %v1787 = vrot.slane %v1772, %v1786
        %v1788 = vlaneseq
        %v1789 = vshrl.u32 %v1788, 7
        %v1790 = vsub.s32 0, %v1789
        %v1791 = vrot.slane %v1774, %v1790
        %v1792 = vlaneseq
        %v1793 = vshrl.u32 %v1792, 7
        %v1794 = vsub.s32 0, %v1793
        %v1795 = vrot.slane %v1757, %v1794
        %v1796 = vlaneseq
        %v1797 = vshrl.u32 %v1796, 7
        %v1798 = vsub.s32 0, %v1797
        %v1799 = vrot.slane %v1771, %v1798
        %v1800 = vlaneseq
        %v1801 = vshrl.u32 %v1800, 7
        %v1802 = vsub.s32 0, %v1801
        %v1803 = vrot.slane %v1773, %v1802
        %v1804 = vlaneseq
        %v1805 = vshrl.u32 %v1804, 7
        %v1806 = vsub.s32 0, %v1805
        %v1807 = vrot.slane %v1775, %v1806
        %v1816 = vmul.f32 %v1779, %v1182
        %v1817 = vmul.f32 %v1779, %v1183
        %v1818 = vmul.f32 %v1783, %v1182
        %v1819 = vmul.f32 %v1783, %v1183
        %v1820 = vmul.f32 %v1787, %v1182
        %v1821 = vmul.f32 %v1787, %v1183
        %v1822 = vmul.f32 %v1791, %v1182
        %v1823 = vmul.f32 %v1791, %v1183
        %v1824 = vmul.f32 %v1795, %v1182
        %v1825 = vmul.f32 %v1795, %v1183
        %v1826 = vmul.f32 %v1799, %v1182
        %v1827 = vmul.f32 %v1799, %v1183
        %v1828 = vmul.f32 %v1803, %v1182
        %v1829 = vmul.f32 %v1803, %v1183
        %v1830 = vmul.f32 %v1807, %v1182
        %v1831 = vmul.f32 %v1807, %v1183
        %v1832 = vmul.f32 %v1816, 1.442695
        %v1833 = vpow.pop %v1832
        %v1834 = vmul.f32 %v1817, 1.442695
        %v1835 = vpow.pop %v1834
        %v1836 = vmul.f32 %v1818, 1.442695
        %v1837 = vpow.pop %v1836
        %v1838 = vmul.f32 %v1819, 1.442695
        %v1839 = vpow.pop %v1838
        %v1840 = vmul.f32 %v1820, 1.442695
        %v1841 = vpow.pop %v1840
        %v1842 = vmul.f32 %v1821, 1.442695
        %v1843 = vpow.pop %v1842
        %v1844 = vmul.f32 %v1822, 1.442695
        %v1845 = vpow.pop %v1844
        %v1846 = vmul.f32 %v1823, 1.442695
        %v1847 = vpow.pop %v1846
        %v1848 = vmul.f32 %v1824, 1.442695
        %v1849 = vpow.pop %v1848
        %v1850 = vmul.f32 %v1825, 1.442695
        %v1851 = vpow.pop %v1850
        %v1852 = vmul.f32 %v1826, 1.442695
        %v1853 = vpow.pop %v1852
        %v1854 = vmul.f32 %v1827, 1.442695
        %v1855 = vpow.pop %v1854
        %v1856 = vmul.f32 %v1828, 1.442695
        %v1857 = vpow.pop %v1856
        %v1858 = vmul.f32 %v1829, 1.442695
        %v1859 = vpow.pop %v1858
        %v1860 = vmul.f32 %v1830, 1.442695
        %v1861 = vpow.pop %v1860
        %v1862 = vmul.f32 %v1831, 1.442695
        %v1863 = vpow.pop %v1862
        %v1865 = vcombine.high %v1181, %v1181
        %v1867 = vunpack.c.l.s4 1966171168
        %v1868 = vunpack.c.0.s8 %v1867
        %v1869 = vlaneseq
        %v1870 = vshrl.u32 %v1869, 7
        %v1871 = vsub.s32 %v1868, %v1870
        %v1872 = vrot.slane %v1181, %v1871
        %v1874 = vunpack.c.l.s4 1966171168
        %v1875 = vunpack.c.0.s8 %v1874
        %v1876 = vlaneseq
        %v1877 = vshrl.u32 %v1876, 7
        %v1878 = vsub.s32 %v1875, %v1877
        %v1879 = vrot.slane %v1865, %v1878
        %v1880 = vcombine.high %v1872, %v1872
        %v1881 = vcombine.high %v1879, %v1879
        %v1883 = vunpack.c.l.s4 1966171168
        %v1884 = vunpack.c.0.s8 %v1883
        %v1885 = vlaneseq
        %v1886 = vshrl.u32 %v1885, 7
        %v1887 = vsub.s32 %v1884, %v1886
        %v1888 = vrot.slane %v1872, %v1887
        %v1890 = vunpack.c.l.s4 1966171168
        %v1891 = vunpack.c.0.s8 %v1890
        %v1892 = vlaneseq
        %v1893 = vshrl.u32 %v1892, 7
        %v1894 = vsub.s32 %v1891, %v1893
        %v1895 = vrot.slane %v1879, %v1894
        %v1897 = vunpack.c.l.s4 1966171168
        %v1898 = vunpack.c.0.s8 %v1897
        %v1899 = vlaneseq
        %v1900 = vshrl.u32 %v1899, 7
        %v1901 = vsub.s32 %v1898, %v1900
        %v1902 = vrot.slane %v1880, %v1901
        %v1904 = vunpack.c.l.s4 1966171168
        %v1905 = vunpack.c.0.s8 %v1904
        %v1906 = vlaneseq
        %v1907 = vshrl.u32 %v1906, 7
        %v1908 = vsub.s32 %v1905, %v1907
        %v1909 = vrot.slane %v1881, %v1908
        %v1910 = vcombine.high %v1888, %v1888
        %v1911 = vcombine.high %v1895, %v1895
        %v1912 = vcombine.high %v1902, %v1902
        %v1913 = vcombine.high %v1909, %v1909
        %v1914 = vlaneseq
        %v1915 = vshrl.u32 %v1914, 7
        %v1916 = vsub.s32 0, %v1915
        %v1917 = vrot.slane %v1003, %v1916
        %1919 = vbcast.lane.b32.xlu0 %v1917, 256
        %v1920 = vpop.permute.xlu0 %1919
        %s1922 = sor.u32 256, 8
        %1923 = vbcast.lane.b32.xlu0 %v1917, %s1922
        %v1924 = vpop.permute.xlu0 %1923
        %v1925 = vlaneseq
        %v1926 = vshrl.u32 %v1925, 7
        %v1927 = vsub.s32 1, %v1926
        %v1928 = vrot.slane %v1003, %v1927
        %1930 = vbcast.lane.b32.xlu0 %v1928, 256
        %v1931 = vpop.permute.xlu0 %1930
        %s1933 = sor.u32 256, 8
        %1934 = vbcast.lane.b32.xlu0 %v1928, %s1933
        %v1935 = vpop.permute.xlu0 %1934
        %v1936 = vlaneseq
        %v1937 = vshrl.u32 %v1936, 7
        %v1938 = vsub.s32 2, %v1937
        %v1939 = vrot.slane %v1003, %v1938
        %1941 = vbcast.lane.b32.xlu0 %v1939, 256
        %v1942 = vpop.permute.xlu0 %1941
        %s1944 = sor.u32 256, 8
        %1945 = vbcast.lane.b32.xlu0 %v1939, %s1944
        %v1946 = vpop.permute.xlu0 %1945
        %v1947 = vlaneseq
        %v1948 = vshrl.u32 %v1947, 7
        %v1949 = vsub.s32 3, %v1948
        %v1950 = vrot.slane %v1003, %v1949
        %1952 = vbcast.lane.b32.xlu0 %v1950, 256
        %v1953 = vpop.permute.xlu0 %1952
        %s1955 = sor.u32 256, 8
        %1956 = vbcast.lane.b32.xlu0 %v1950, %s1955
        %v1957 = vpop.permute.xlu0 %1956
        %v1958 = vlaneseq
        %v1959 = vshrl.u32 %v1958, 7
        %v1960 = vsub.s32 4, %v1959
        %v1961 = vrot.slane %v1003, %v1960
        %1963 = vbcast.lane.b32.xlu0 %v1961, 256
        %v1964 = vpop.permute.xlu0 %1963
        %s1966 = sor.u32 256, 8
        %1967 = vbcast.lane.b32.xlu0 %v1961, %s1966
        %v1968 = vpop.permute.xlu0 %1967
        %v1969 = vlaneseq
        %v1970 = vshrl.u32 %v1969, 7
        %v1971 = vsub.s32 5, %v1970
        %v1972 = vrot.slane %v1003, %v1971
        %1974 = vbcast.lane.b32.xlu0 %v1972, 256
        %v1975 = vpop.permute.xlu0 %1974
        %s1977 = sor.u32 256, 8
        %1978 = vbcast.lane.b32.xlu0 %v1972, %s1977
        %v1979 = vpop.permute.xlu0 %1978
        %v1980 = vlaneseq
        %v1981 = vshrl.u32 %v1980, 7
        %v1982 = vsub.s32 6, %v1981
        %v1983 = vrot.slane %v1003, %v1982
        %1985 = vbcast.lane.b32.xlu0 %v1983, 256
        %v1986 = vpop.permute.xlu0 %1985
        %s1988 = sor.u32 256, 8
        %1989 = vbcast.lane.b32.xlu0 %v1983, %s1988
        %v1990 = vpop.permute.xlu0 %1989
        %v1991 = vlaneseq
        %v1992 = vshrl.u32 %v1991, 7
        %v1993 = vsub.s32 7, %v1992
        %v1994 = vrot.slane %v1003, %v1993
        %1996 = vbcast.lane.b32.xlu0 %v1994, 256
        %v1997 = vpop.permute.xlu0 %1996
        %s1999 = sor.u32 256, 8
        %2000 = vbcast.lane.b32.xlu0 %v1994, %s1999
        %v2001 = vpop.permute.xlu0 %2000
        %v2002 = vlaneseq
        %v2003 = vshrl.u32 %v2002, 7
        %v2004 = vsub.s32 0, %v2003
        %v2005 = vrot.slane %v1888, %v2004
        %v2006 = vlaneseq
        %v2007 = vshrl.u32 %v2006, 7
        %v2008 = vsub.s32 0, %v2007
        %v2009 = vrot.slane %v1902, %v2008
        %v2010 = vlaneseq
        %v2011 = vshrl.u32 %v2010, 7
        %v2012 = vsub.s32 0, %v2011
        %v2013 = vrot.slane %v1910, %v2012
        %v2014 = vlaneseq
        %v2015 = vshrl.u32 %v2014, 7
        %v2016 = vsub.s32 0, %v2015
        %v2017 = vrot.slane %v1912, %v2016
        %v2018 = vlaneseq
        %v2019 = vshrl.u32 %v2018, 7
        %v2020 = vsub.s32 0, %v2019
        %v2021 = vrot.slane %v1895, %v2020
        %v2022 = vlaneseq
        %v2023 = vshrl.u32 %v2022, 7
        %v2024 = vsub.s32 0, %v2023
        %v2025 = vrot.slane %v1909, %v2024
        %v2026 = vlaneseq
        %v2027 = vshrl.u32 %v2026, 7
        %v2028 = vsub.s32 0, %v2027
        %v2029 = vrot.slane %v1911, %v2028
        %v2030 = vlaneseq
        %v2031 = vshrl.u32 %v2030, 7
        %v2032 = vsub.s32 0, %v2031
        %v2033 = vrot.slane %v1913, %v2032
        %v2042 = vmul.f32 %v2005, %v1920
        %v2043 = vmul.f32 %v2005, %v1924
        %v2044 = vmul.f32 %v2009, %v1931
        %v2045 = vmul.f32 %v2009, %v1935
        %v2046 = vmul.f32 %v2013, %v1942
        %v2047 = vmul.f32 %v2013, %v1946
        %v2048 = vmul.f32 %v2017, %v1953
        %v2049 = vmul.f32 %v2017, %v1957
        %v2050 = vmul.f32 %v2021, %v1964
        %v2051 = vmul.f32 %v2021, %v1968
        %v2052 = vmul.f32 %v2025, %v1975
        %v2053 = vmul.f32 %v2025, %v1979
        %v2054 = vmul.f32 %v2029, %v1986
        %v2055 = vmul.f32 %v2029, %v1990
        %v2056 = vmul.f32 %v2033, %v1997
        %v2057 = vmul.f32 %v2033, %v2001
        %v2058 = vmul.f32 %v1833, %v1548
        %v2059 = vmul.f32 %v1835, %v1549
        %v2060 = vadd.f32 %v2058, %v2042
        %v2061 = vadd.f32 %v2059, %v2043
        %v2062 = vmul.f32 %v1837, %v2060
        %v2063 = vmul.f32 %v1839, %v2061
        %v2064 = vadd.f32 %v2062, %v2044
        %v2065 = vadd.f32 %v2063, %v2045
        %v2066 = vmul.f32 %v1841, %v2064
        %v2067 = vmul.f32 %v1843, %v2065
        %v2068 = vadd.f32 %v2066, %v2046
        %v2069 = vadd.f32 %v2067, %v2047
        %v2070 = vmul.f32 %v1845, %v2068
        %v2071 = vmul.f32 %v1847, %v2069
        %v2072 = vadd.f32 %v2070, %v2048
        %v2073 = vadd.f32 %v2071, %v2049
        %v2074 = vmul.f32 %v1849, %v2072
        %v2075 = vmul.f32 %v1851, %v2073
        %v2076 = vadd.f32 %v2074, %v2050
        %v2077 = vadd.f32 %v2075, %v2051
        %v2078 = vmul.f32 %v1853, %v2076
        %v2079 = vmul.f32 %v1855, %v2077
        %v2080 = vadd.f32 %v2078, %v2052
        %v2081 = vadd.f32 %v2079, %v2053
        %v2082 = vmul.f32 %v1857, %v2080
        %v2083 = vmul.f32 %v1859, %v2081
        %v2084 = vadd.f32 %v2082, %v2054
        %v2085 = vadd.f32 %v2083, %v2055
        %v2086 = vmul.f32 %v1861, %v2084
        %v2087 = vmul.f32 %v1863, %v2085
        %v2088 = vadd.f32 %v2086, %v2056
        %v2089 = vadd.f32 %v2087, %v2057
        %v2090 = vlaneseq
        %v2091 = vshrl.u32 %v2090, 7
        %v2092 = vsub.s32 0, %v2091
        %v2093 = vrot.slane %v1054, %v2092
        %2095 = vbcast.lane.b32.xlu0 %v2093, 256
        %v2096 = vpop.permute.xlu0 %2095
        %s2098 = sor.u32 256, 8
        %2099 = vbcast.lane.b32.xlu0 %v2093, %s2098
        %v2100 = vpop.permute.xlu0 %2099
        %v2101 = vlaneseq
        %v2102 = vshrl.u32 %v2101, 7
        %v2103 = vsub.s32 1, %v2102
        %v2104 = vrot.slane %v1054, %v2103
        %2106 = vbcast.lane.b32.xlu0 %v2104, 256
        %v2107 = vpop.permute.xlu0 %2106
        %s2109 = sor.u32 256, 8
        %2110 = vbcast.lane.b32.xlu0 %v2104, %s2109
        %v2111 = vpop.permute.xlu0 %2110
        %v2112 = vlaneseq
        %v2113 = vshrl.u32 %v2112, 7
        %v2114 = vsub.s32 2, %v2113
        %v2115 = vrot.slane %v1054, %v2114
        %2117 = vbcast.lane.b32.xlu0 %v2115, 256
        %v2118 = vpop.permute.xlu0 %2117
        %s2120 = sor.u32 256, 8
        %2121 = vbcast.lane.b32.xlu0 %v2115, %s2120
        %v2122 = vpop.permute.xlu0 %2121
        %v2123 = vlaneseq
        %v2124 = vshrl.u32 %v2123, 7
        %v2125 = vsub.s32 3, %v2124
        %v2126 = vrot.slane %v1054, %v2125
        %2128 = vbcast.lane.b32.xlu0 %v2126, 256
        %v2129 = vpop.permute.xlu0 %2128
        %s2131 = sor.u32 256, 8
        %2132 = vbcast.lane.b32.xlu0 %v2126, %s2131
        %v2133 = vpop.permute.xlu0 %2132
        %v2134 = vlaneseq
        %v2135 = vshrl.u32 %v2134, 7
        %v2136 = vsub.s32 4, %v2135
        %v2137 = vrot.slane %v1054, %v2136
        %2139 = vbcast.lane.b32.xlu0 %v2137, 256
        %v2140 = vpop.permute.xlu0 %2139
        %s2142 = sor.u32 256, 8
        %2143 = vbcast.lane.b32.xlu0 %v2137, %s2142
        %v2144 = vpop.permute.xlu0 %2143
        %v2145 = vlaneseq
        %v2146 = vshrl.u32 %v2145, 7
        %v2147 = vsub.s32 5, %v2146
        %v2148 = vrot.slane %v1054, %v2147
        %2150 = vbcast.lane.b32.xlu0 %v2148, 256
        %v2151 = vpop.permute.xlu0 %2150
        %s2153 = sor.u32 256, 8
        %2154 = vbcast.lane.b32.xlu0 %v2148, %s2153
        %v2155 = vpop.permute.xlu0 %2154
        %v2156 = vlaneseq
        %v2157 = vshrl.u32 %v2156, 7
        %v2158 = vsub.s32 6, %v2157
        %v2159 = vrot.slane %v1054, %v2158
        %2161 = vbcast.lane.b32.xlu0 %v2159, 256
        %v2162 = vpop.permute.xlu0 %2161
        %s2164 = sor.u32 256, 8
        %2165 = vbcast.lane.b32.xlu0 %v2159, %s2164
        %v2166 = vpop.permute.xlu0 %2165
        %v2167 = vlaneseq
        %v2168 = vshrl.u32 %v2167, 7
        %v2169 = vsub.s32 7, %v2168
        %v2170 = vrot.slane %v1054, %v2169
        %2172 = vbcast.lane.b32.xlu0 %v2170, 256
        %v2173 = vpop.permute.xlu0 %2172
        %s2175 = sor.u32 256, 8
        %2176 = vbcast.lane.b32.xlu0 %v2170, %s2175
        %v2177 = vpop.permute.xlu0 %2176
        %v2178 = vmul.f32 %v2060, %v2096
        %v2179 = vmul.f32 %v2061, %v2100
        %v2180 = vmul.f32 %v2064, %v2107
        %v2181 = vmul.f32 %v2065, %v2111
        %v2182 = vmul.f32 %v2068, %v2118
        %v2183 = vmul.f32 %v2069, %v2122
        %v2184 = vmul.f32 %v2072, %v2129
        %v2185 = vmul.f32 %v2073, %v2133
        %v2186 = vmul.f32 %v2076, %v2140
        %v2187 = vmul.f32 %v2077, %v2144
        %v2188 = vmul.f32 %v2080, %v2151
        %v2189 = vmul.f32 %v2081, %v2155
        %v2190 = vmul.f32 %v2084, %v2162
        %v2191 = vmul.f32 %v2085, %v2166
        %v2192 = vmul.f32 %v2088, %v2173
        %v2193 = vmul.f32 %v2089, %v2177
        %v2194 = vsel %vm839, %v2178, 0.0
        %v2195 = vsel %vm839, %v2179, 0.0
        %v2196 = vadd.f32 %v2194, %v2195
        %v2197 = vrot.slane %v2196, 4
        %v2198 = vadd.f32 %v2196, %v2197
        %v2199 = vrot.slane %v2198, 2
        %v2200 = vadd.f32 %v2198, %v2199
        %v2201 = vrot.slane %v2200, 1
        %v2202 = vadd.f32 %v2200, %v2201
        %v2203 = vsel %vm839, %v2180, 0.0
        %v2204 = vsel %vm839, %v2181, 0.0
        %v2205 = vadd.f32 %v2203, %v2204
        %v2206 = vrot.slane %v2205, 4
        %v2207 = vadd.f32 %v2205, %v2206
        %v2208 = vrot.slane %v2207, 2
        %v2209 = vadd.f32 %v2207, %v2208
        %v2210 = vrot.slane %v2209, 1
        %v2211 = vadd.f32 %v2209, %v2210
        %v2212 = vsel %vm839, %v2182, 0.0
        %v2213 = vsel %vm839, %v2183, 0.0
        %v2214 = vadd.f32 %v2212, %v2213
        %v2215 = vrot.slane %v2214, 4
        %v2216 = vadd.f32 %v2214, %v2215
        %v2217 = vrot.slane %v2216, 2
        %v2218 = vadd.f32 %v2216, %v2217
        %v2219 = vrot.slane %v2218, 1
        %v2220 = vadd.f32 %v2218, %v2219
        %v2221 = vsel %vm839, %v2184, 0.0
        %v2222 = vsel %vm839, %v2185, 0.0
        %v2223 = vadd.f32 %v2221, %v2222
        %v2224 = vrot.slane %v2223, 4
        %v2225 = vadd.f32 %v2223, %v2224
        %v2226 = vrot.slane %v2225, 2
        %v2227 = vadd.f32 %v2225, %v2226
        %v2228 = vrot.slane %v2227, 1
        %v2229 = vadd.f32 %v2227, %v2228
        %v2230 = vsel %vm839, %v2186, 0.0
        %v2231 = vsel %vm839, %v2187, 0.0
        %v2232 = vadd.f32 %v2230, %v2231
        %v2233 = vrot.slane %v2232, 4
        %v2234 = vadd.f32 %v2232, %v2233
        %v2235 = vrot.slane %v2234, 2
        %v2236 = vadd.f32 %v2234, %v2235
        %v2237 = vrot.slane %v2236, 1
        %v2238 = vadd.f32 %v2236, %v2237
        %v2239 = vsel %vm839, %v2188, 0.0
        %v2240 = vsel %vm839, %v2189, 0.0
        %v2241 = vadd.f32 %v2239, %v2240
        %v2242 = vrot.slane %v2241, 4
        %v2243 = vadd.f32 %v2241, %v2242
        %v2244 = vrot.slane %v2243, 2
        %v2245 = vadd.f32 %v2243, %v2244
        %v2246 = vrot.slane %v2245, 1
        %v2247 = vadd.f32 %v2245, %v2246
        %v2248 = vsel %vm839, %v2190, 0.0
        %v2249 = vsel %vm839, %v2191, 0.0
        %v2250 = vadd.f32 %v2248, %v2249
        %v2251 = vrot.slane %v2250, 4
        %v2252 = vadd.f32 %v2250, %v2251
        %v2253 = vrot.slane %v2252, 2
        %v2254 = vadd.f32 %v2252, %v2253
        %v2255 = vrot.slane %v2254, 1
        %v2256 = vadd.f32 %v2254, %v2255
        %v2257 = vsel %vm839, %v2192, 0.0
        %v2258 = vsel %vm839, %v2193, 0.0
        %v2259 = vadd.f32 %v2257, %v2258
        %v2260 = vrot.slane %v2259, 4
        %v2261 = vadd.f32 %v2259, %v2260
        %v2262 = vrot.slane %v2261, 2
        %v2263 = vadd.f32 %v2261, %v2262
        %v2264 = vrot.slane %v2263, 1
        %v2265 = vadd.f32 %v2263, %v2264
        %2266 = vst.msk [vmem:[#allocation3] sm:$0xff] %vm839, %v2088
        %2267 = vst.msk [vmem:[#allocation3 + $0x8] sm:$0xff] %vm839, %v2089
        %vm2276 = vcmask 1041409
        %v2277 = vsel %vm2276, %v1671, %v1662
        %vm2278 = vcmask 1042434
        %v2279 = vsel %vm2278, %v1680, %v2277
        %vm2280 = vcmask 1043459
        %v2281 = vsel %vm2280, %v1689, %v2279
        %vm2282 = vcmask 1044484
        %v2283 = vsel %vm2282, %v1698, %v2281
        %vm2284 = vcmask 1045509
        %v2285 = vsel %vm2284, %v1707, %v2283
        %vm2286 = vcmask 1046534
        %v2287 = vsel %vm2286, %v1716, %v2285
        %vm2288 = vcmask 1047559
        %v2289 = vsel %vm2288, %v1725, %v2287
        %v2299 = vsel %vm2276, %v2211, %v2202
        %v2300 = vsel %vm2278, %v2220, %v2299
        %v2301 = vsel %vm2280, %v2229, %v2300
        %v2302 = vsel %vm2282, %v2238, %v2301
        %v2303 = vsel %vm2284, %v2247, %v2302
        %v2304 = vsel %vm2286, %v2256, %v2303
        %v2305 = vsel %vm2288, %v2265, %v2304
        %v2307 = vld [vmem:[#allocation23] sm:$0x1]
        %v2309 = vlaneseq
        %v2310 = vshrl.u32 %v2309, 7
        %v2311 = vsub.s32 0, %v2310
        %v2312 = vrot.slane %v2307, %v2311
        %v2314 = vmul.f32 %v904, %v2312
        %v2315 = vmul.f32 %v905, %v2312
        %v2316 = vadd.f32 %v2289, %v2314
        %v2317 = vadd.f32 %v2305, %v2315
        %v2318 = vsub.f32 0.0, %v832
        %v2319 = vsub.f32 0.0, %v835
        %v2320 = vmul.f32 %v2318, 1.442695
        %v2321 = vpow.pop %v2320
        %v2322 = vmul.f32 %v2319, 1.442695
        %v2323 = vpow.pop %v2322
        %v2324 = vadd.f32 %v2321, 1.0
        %v2325 = vadd.f32 %v2323, 1.0
        %v2326 = vrcp.pop %v2324
        %v2327 = vmul.f32 1.0, %v2326
        %v2328 = vrcp.pop %v2325
        %v2329 = vmul.f32 1.0, %v2328
        %v2330 = vmul.f32 %v832, %v2327
        %v2331 = vmul.f32 %v835, %v2329
        %v2332 = vmul.f32 %v2316, %v2330
        %v2333 = vmul.f32 %v2317, %v2331
        %v2334 = vadd.f32 %v2332, 0.0
        %v2335 = vadd.f32 %v2333, 0.0
        %s2336 = scalar_lea.vmem [#allocation8], 32
        %v2337 = vld [vmem:[%s2336] sm:$0xf]
        %v2338 = vld [vmem:[%s2336 + $0x4] sm:$0xf]
        %v2339 = vld [vmem:[%s2336 + $0x8] sm:$0xf]
        %v2340 = vld [vmem:[%s2336 + $0xc] sm:$0xf]
        %v2341 = vld [vmem:[%s2336 + $0x10] sm:$0xf]
        %v2342 = vld [vmem:[%s2336 + $0x14] sm:$0xf]
        %v2343 = vld [vmem:[%s2336 + $0x18] sm:$0xf]
        %v2344 = vld [vmem:[%s2336 + $0x1c] sm:$0xf]
        %v2353 = vunpack.c.l.b16 %v2337
        %v2354 = vunpack.c.l.b16 %v2338
        %v2355 = vunpack.c.l.b16 %v2339
        %v2356 = vunpack.c.l.b16 %v2340
        %v2357 = vunpack.c.l.b16 %v2341
        %v2358 = vunpack.c.l.b16 %v2342
        %v2359 = vunpack.c.l.b16 %v2343
        %v2360 = vunpack.c.l.b16 %v2344
        %v2361 = vpack.c.b16 %v2354, %v2353
        %v2362 = vpack.c.b16 %v2356, %v2355
        %v2363 = vpack.c.b16 %v2358, %v2357
        %v2364 = vpack.c.b16 %v2360, %v2359
        %v2366 = vsel %vm700, %v2361, 0
        %v2369 = vsel %vm700, %v2362, 0
        %v2372 = vsel %vm700, %v2363, 0
        %v2375 = vsel %vm700, %v2364, 0
        %2377 = vmatprep.subr.bf16.mxu0 0
        %2378 = vmatpush1.bf16.xpose.msra.mxu0 %v2366
        %2379 = vmatprep.subr.bf16.mxu0 0
        %2380 = vmatpush1.bf16.xpose.msra.mxu0 %v2369
        %2381 = vmatprep.subr.bf16.mxu0 0
        %2382 = vmatpush1.bf16.xpose.msra.mxu0 %v2372
        %2383 = vmatprep.subr.bf16.mxu0 0
        %2384 = vmatpush1.bf16.xpose.msra.mxu0 %v2375
        %2385 = vmatprep.subr.bf16.mxu0 0
        %2386 = vmatpush1.bf16.xpose.msra.mxu0 0
        %2387 = vmatprep.subr.bf16.mxu0 0
        %2388 = vmatpush1.bf16.xpose.msra.mxu0 0
        %2389 = vmatprep.subr.bf16.mxu0 0
        %2390 = vmatpush1.bf16.xpose.msra.mxu0 0
        %2391 = vmatprep.subr.bf16.mxu0 0
        %2392 = vmatpush1.bf16.xpose.msra.mxu0 0
        %2393 = vmatprep.subr.bf16.mxu0 0
        %2394 = vmatpush1.bf16.xpose.msra.mxu0 0
        %2395 = vmatprep.subr.bf16.mxu0 0
        %2396 = vmatpush1.bf16.xpose.msra.mxu0 0
        %2397 = vmatprep.subr.bf16.mxu0 0
        %2398 = vmatpush1.bf16.xpose.msra.mxu0 0
        %2399 = vmatprep.subr.bf16.mxu0 0
        %2400 = vmatpush1.bf16.xpose.msra.mxu0 0
        %2401 = vmatprep.subr.bf16.mxu0 0
        %2402 = vmatpush1.bf16.xpose.msra.mxu0 0
        %2403 = vmatprep.subr.bf16.mxu0 0
        %2404 = vmatpush1.bf16.xpose.msra.mxu0 0
        %2405 = vmatprep.subr.bf16.mxu0 0
        %2406 = vmatpush1.bf16.xpose.msra.mxu0 0
        %2407 = vmatprep.subr.bf16.mxu0 0
        %2408 = vmatpush1.bf16.xpose.msra.mxu0 0
        %2409 = vmatprep.mubr.bf16.mxu0 0
        %2410 = vmatmul.mubr.bf16.gmra.mrb[0].mxu0 %v702
        %v2411 = vpop.f32.mrb[0].mxu0
        %v2412 = vadd.f32 0.0, %v2411
        %v2413 = vpop.f32.mrb[0].mxu0
        %v2414 = vpop.f32.mrb[0].mxu0
        %v2415 = vadd.f32 0.0, %v2414
        %v2416 = vpop.f32.mrb[0].mxu0
        %2417 = vdwg.mxu0
        %s2418 = scalar_lea.vmem [#allocation10], 32
        %v2419 = vld [vmem:[%s2418] sm:$0xf]
        %v2420 = vld [vmem:[%s2418 + $0x4] sm:$0xf]
        %v2421 = vld [vmem:[%s2418 + $0x8] sm:$0xf]
        %v2422 = vld [vmem:[%s2418 + $0xc] sm:$0xf]
        %v2423 = vld [vmem:[%s2418 + $0x10] sm:$0xf]
        %v2424 = vld [vmem:[%s2418 + $0x14] sm:$0xf]
        %v2425 = vld [vmem:[%s2418 + $0x18] sm:$0xf]
        %v2426 = vld [vmem:[%s2418 + $0x1c] sm:$0xf]
        %v2435 = vunpack.c.l.b16 %v2419
        %v2436 = vunpack.c.l.b16 %v2420
        %v2437 = vunpack.c.l.b16 %v2421
        %v2438 = vunpack.c.l.b16 %v2422
        %v2439 = vunpack.c.l.b16 %v2423
        %v2440 = vunpack.c.l.b16 %v2424
        %v2441 = vunpack.c.l.b16 %v2425
        %v2442 = vunpack.c.l.b16 %v2426
        %v2443 = vpack.c.b16 %v2436, %v2435
        %v2444 = vpack.c.b16 %v2438, %v2437
        %v2445 = vpack.c.b16 %v2440, %v2439
        %v2446 = vpack.c.b16 %v2442, %v2441
        %v2448 = vsel %vm700, %v2443, 0
        %v2451 = vsel %vm700, %v2444, 0
        %v2454 = vsel %vm700, %v2445, 0
        %v2457 = vsel %vm700, %v2446, 0
        %2459 = vmatprep.subr.bf16.mxu0 0
        %2460 = vmatpush1.bf16.xpose.msra.mxu0 %v2448
        %2461 = vmatprep.subr.bf16.mxu0 0
        %2462 = vmatpush1.bf16.xpose.msra.mxu0 %v2451
        %2463 = vmatprep.subr.bf16.mxu0 0
        %2464 = vmatpush1.bf16.xpose.msra.mxu0 %v2454
        %2465 = vmatprep.subr.bf16.mxu0 0
        %2466 = vmatpush1.bf16.xpose.msra.mxu0 %v2457
        %2467 = vmatprep.subr.bf16.mxu0 0
        %2468 = vmatpush1.bf16.xpose.msra.mxu0 0
        %2469 = vmatprep.subr.bf16.mxu0 0
        %2470 = vmatpush1.bf16.xpose.msra.mxu0 0
        %2471 = vmatprep.subr.bf16.mxu0 0
        %2472 = vmatpush1.bf16.xpose.msra.mxu0 0
        %2473 = vmatprep.subr.bf16.mxu0 0
        %2474 = vmatpush1.bf16.xpose.msra.mxu0 0
        %2475 = vmatprep.subr.bf16.mxu0 0
        %2476 = vmatpush1.bf16.xpose.msra.mxu0 0
        %2477 = vmatprep.subr.bf16.mxu0 0
        %2478 = vmatpush1.bf16.xpose.msra.mxu0 0
        %2479 = vmatprep.subr.bf16.mxu0 0
        %2480 = vmatpush1.bf16.xpose.msra.mxu0 0
        %2481 = vmatprep.subr.bf16.mxu0 0
        %2482 = vmatpush1.bf16.xpose.msra.mxu0 0
        %2483 = vmatprep.subr.bf16.mxu0 0
        %2484 = vmatpush1.bf16.xpose.msra.mxu0 0
        %2485 = vmatprep.subr.bf16.mxu0 0
        %2486 = vmatpush1.bf16.xpose.msra.mxu0 0
        %2487 = vmatprep.subr.bf16.mxu0 0
        %2488 = vmatpush1.bf16.xpose.msra.mxu0 0
        %2489 = vmatprep.subr.bf16.mxu0 0
        %2490 = vmatpush1.bf16.xpose.msra.mxu0 0
        %2491 = vmatprep.mubr.bf16.mxu0 0
        %2492 = vmatmul.mubr.bf16.gmra.mrb[0].mxu0 %v702
        %v2493 = vpop.f32.mrb[0].mxu0
        %v2494 = vadd.f32 0.0, %v2493
        %v2495 = vpop.f32.mrb[0].mxu0
        %v2496 = vpop.f32.mrb[0].mxu0
        %v2497 = vadd.f32 0.0, %v2496
        %v2498 = vpop.f32.mrb[0].mxu0
        %2499 = vdwg.mxu0
        %s2500 = scalar_lea.vmem [#allocation4], 8
        %v2501 = vld [vmem:[%s2500] sm:$0xff]
        %2502 = vst.msk [vmem:[#allocation2] sm:$0xff] %vm839, %v2501
        %2503 = vst.msk [vmem:[#allocation2 + $0x8] sm:$0xff] %vm839, %v2412
        %2504 = vst.msk [vmem:[#allocation2 + $0x10] sm:$0xff] %vm839, %v2415
        %2505 = vst.msk [vmem:[%s2500] sm:$0xff] %vm839, %v2415
        %s2506 = scalar_lea.vmem [#allocation11], 4
        %v2507 = vld [vmem:[%s2506] sm:$0xf]
        %v2508 = vld [vmem:[#allocation2 + $0x5] sm:$0xff]
        %v2509 = vld [vmem:[#allocation2 + $0xd] sm:$0xff]
        %v2510 = vlaneseq
        %v2511 = vshrl.u32 %v2510, 7
        %v2512 = vsub.s32 0, %v2511
        %v2513 = vrot.slane %v2507, %v2512
        %v2514 = vmul.f32 %v2508, %v2513
        %v2515 = vmul.f32 %v2509, %v2513
        %v2516 = vld [vmem:[#allocation2 + $0x6] sm:$0xff]
        %v2517 = vld [vmem:[#allocation2 + $0xe] sm:$0xff]
        %v2518 = vlaneseq
        %v2519 = vshrl.u32 %v2518, 7
        %v2520 = vsub.s32 1, %v2519
        %v2521 = vrot.slane %v2507, %v2520
        %v2522 = vmul.f32 %v2516, %v2521
        %v2523 = vmul.f32 %v2517, %v2521
        %v2524 = vadd.f32 %v2514, %v2522
        %v2525 = vadd.f32 %v2515, %v2523
        %v2526 = vld [vmem:[#allocation2 + $0x7] sm:$0xff]
        %v2527 = vld [vmem:[#allocation2 + $0xf] sm:$0xff]
        %v2528 = vlaneseq
        %v2529 = vshrl.u32 %v2528, 7
        %v2530 = vsub.s32 2, %v2529
        %v2531 = vrot.slane %v2507, %v2530
        %v2532 = vmul.f32 %v2526, %v2531
        %v2533 = vmul.f32 %v2527, %v2531
        %v2534 = vadd.f32 %v2524, %v2532
        %v2535 = vadd.f32 %v2525, %v2533
        %v2536 = vld [vmem:[#allocation2 + $0x8] sm:$0xff]
        %v2537 = vld [vmem:[#allocation2 + $0x10] sm:$0xff]
        %v2538 = vlaneseq
        %v2539 = vshrl.u32 %v2538, 7
        %v2540 = vsub.s32 3, %v2539
        %v2541 = vrot.slane %v2507, %v2540
        %v2542 = vmul.f32 %v2536, %v2541
        %v2543 = vmul.f32 %v2537, %v2541
        %v2544 = vadd.f32 %v2534, %v2542
        %v2545 = vadd.f32 %v2535, %v2543
        %s2546 = scalar_lea.vmem [#allocation13], 1
        %v2547 = vld [vmem:[%s2546] sm:$0x1]
        %v2549 = vlaneseq
        %v2550 = vshrl.u32 %v2549, 7
        %v2551 = vsub.s32 0, %v2550
        %v2552 = vrot.slane %v2547, %v2551
        %v2554 = vadd.f32 %v2544, %v2552
        %v2555 = vadd.f32 %v2545, %v2552
        %v2556 = vsub.f32 0.0, %v2554
        %v2557 = vsub.f32 0.0, %v2555
        %v2558 = vmul.f32 %v2556, 1.442695
        %v2559 = vpow.pop %v2558
        %v2560 = vmul.f32 %v2557, 1.442695
        %v2561 = vpow.pop %v2560
        %v2562 = vadd.f32 %v2559, 1.0
        %v2563 = vadd.f32 %v2561, 1.0
        %v2564 = vrcp.pop %v2562
        %v2565 = vmul.f32 1.0, %v2564
        %v2566 = vrcp.pop %v2563
        %v2567 = vmul.f32 1.0, %v2566
        %v2568 = vmul.f32 %v2554, %v2565
        %v2569 = vmul.f32 %v2555, %v2567
        %v2570 = vpack.c.bf16 %v2569, %v2568
        %s2571 = scalar_lea.vmem [#allocation14], 1
        %v2572 = vld [vmem:[%s2571] sm:$0x1]
        %v2574 = vsel %vm839, %v2570, 0
        %v2577 = vsel %vm839, %v2572, 0
        %2579 = vmatprep.subr.bf16.mxu0 0
        %2580 = vmatpush1.bf16.xpose.msra.mxu0 %v2577
        %2581 = vmatprep.subr.bf16.mxu0 0
        %2582 = vmatpush1.bf16.xpose.msra.mxu0 0
        %2583 = vmatprep.subr.bf16.mxu0 0
        %2584 = vmatpush1.bf16.xpose.msra.mxu0 0
        %2585 = vmatprep.subr.bf16.mxu0 0
        %2586 = vmatpush1.bf16.xpose.msra.mxu0 0
        %2587 = vmatprep.subr.bf16.mxu0 0
        %2588 = vmatpush1.bf16.xpose.msra.mxu0 0
        %2589 = vmatprep.subr.bf16.mxu0 0
        %2590 = vmatpush1.bf16.xpose.msra.mxu0 0
        %2591 = vmatprep.subr.bf16.mxu0 0
        %2592 = vmatpush1.bf16.xpose.msra.mxu0 0
        %2593 = vmatprep.subr.bf16.mxu0 0
        %2594 = vmatpush1.bf16.xpose.msra.mxu0 0
        %2595 = vmatprep.subr.bf16.mxu0 0
        %2596 = vmatpush1.bf16.xpose.msra.mxu0 0
        %2597 = vmatprep.subr.bf16.mxu0 0
        %2598 = vmatpush1.bf16.xpose.msra.mxu0 0
        %2599 = vmatprep.subr.bf16.mxu0 0
        %2600 = vmatpush1.bf16.xpose.msra.mxu0 0
        %2601 = vmatprep.subr.bf16.mxu0 0
        %2602 = vmatpush1.bf16.xpose.msra.mxu0 0
        %2603 = vmatprep.subr.bf16.mxu0 0
        %2604 = vmatpush1.bf16.xpose.msra.mxu0 0
        %2605 = vmatprep.subr.bf16.mxu0 0
        %2606 = vmatpush1.bf16.xpose.msra.mxu0 0
        %2607 = vmatprep.subr.bf16.mxu0 0
        %2608 = vmatpush1.bf16.xpose.msra.mxu0 0
        %2609 = vmatprep.subr.bf16.mxu0 0
        %2610 = vmatpush1.bf16.xpose.msra.mxu0 0
        %2611 = vmatprep.mubr.bf16.mxu0 0
        %2612 = vmatmul.mubr.bf16.gmra.mrb[0].mxu0 %v2574
        %v2613 = vpop.f32.mrb[0].mxu0
        %v2614 = vadd.f32 0.0, %v2613
        %v2615 = vpop.f32.mrb[0].mxu0
        %v2616 = vpop.f32.mrb[0].mxu0
        %v2617 = vadd.f32 0.0, %v2616
        %v2618 = vpop.f32.mrb[0].mxu0
        %2619 = vdwg.mxu0
        %s2620 = scalar_lea.vmem [#allocation16], 8
        %v2621 = vld [vmem:[%s2620] sm:$0xf]
        %v2622 = vld [vmem:[%s2620 + $0x4] sm:$0xf]
        %v2625 = vunpack.c.l.b16 %v2621
        %v2626 = vunpack.c.l.b16 %v2622
        %v2627 = vpack.c.b16 %v2626, %v2625
        %v2629 = vsel %vm839, %v2627, 0
        %2631 = vmatprep.subr.bf16.mxu0 0
        %2632 = vmatpush1.bf16.xpose.msra.mxu0 %v2629
        %2633 = vmatprep.subr.bf16.mxu0 0
        %2634 = vmatpush1.bf16.xpose.msra.mxu0 0
        %2635 = vmatprep.subr.bf16.mxu0 0
        %2636 = vmatpush1.bf16.xpose.msra.mxu0 0
        %2637 = vmatprep.subr.bf16.mxu0 0
        %2638 = vmatpush1.bf16.xpose.msra.mxu0 0
        %2639 = vmatprep.subr.bf16.mxu0 0
        %2640 = vmatpush1.bf16.xpose.msra.mxu0 0
        %2641 = vmatprep.subr.bf16.mxu0 0
        %2642 = vmatpush1.bf16.xpose.msra.mxu0 0
        %2643 = vmatprep.subr.bf16.mxu0 0
        %2644 = vmatpush1.bf16.xpose.msra.mxu0 0
        %2645 = vmatprep.subr.bf16.mxu0 0
        %2646 = vmatpush1.bf16.xpose.msra.mxu0 0
        %2647 = vmatprep.subr.bf16.mxu0 0
        %2648 = vmatpush1.bf16.xpose.msra.mxu0 0
        %2649 = vmatprep.subr.bf16.mxu0 0
        %2650 = vmatpush1.bf16.xpose.msra.mxu0 0
        %2651 = vmatprep.subr.bf16.mxu0 0
        %2652 = vmatpush1.bf16.xpose.msra.mxu0 0
        %2653 = vmatprep.subr.bf16.mxu0 0
        %2654 = vmatpush1.bf16.xpose.msra.mxu0 0
        %2655 = vmatprep.subr.bf16.mxu0 0
        %2656 = vmatpush1.bf16.xpose.msra.mxu0 0
        %2657 = vmatprep.subr.bf16.mxu0 0
        %2658 = vmatpush1.bf16.xpose.msra.mxu0 0
        %2659 = vmatprep.subr.bf16.mxu0 0
        %2660 = vmatpush1.bf16.xpose.msra.mxu0 0
        %2661 = vmatprep.subr.bf16.mxu0 0
        %2662 = vmatpush1.bf16.xpose.msra.mxu0 0
        %2663 = vmatprep.mubr.bf16.mxu0 0
        %2664 = vmatmul.mubr.bf16.gmra.mrb[0].mxu0 %v2574
        %v2665 = vpop.f32.mrb[0].mxu0
        %v2666 = vadd.f32 0.0, %v2665
        %v2667 = vpop.f32.mrb[0].mxu0
        %v2668 = vpop.f32.mrb[0].mxu0
        %v2669 = vadd.f32 0.0, %v2668
        %v2670 = vpop.f32.mrb[0].mxu0
        %2671 = vdwg.mxu0
        %s2672 = scalar_lea.vmem [#allocation17], 8
        %v2673 = vld [vmem:[%s2672] sm:$0xf]
        %v2674 = vld [vmem:[%s2672 + $0x4] sm:$0xf]
        %v2677 = vunpack.c.l.b16 %v2673
        %v2678 = vunpack.c.l.b16 %v2674
        %v2679 = vpack.c.b16 %v2678, %v2677
        %v2681 = vsel %vm839, %v2679, 0
        %2683 = vmatprep.subr.bf16.mxu0 0
        %2684 = vmatpush1.bf16.xpose.msra.mxu0 %v2681
        %2685 = vmatprep.subr.bf16.mxu0 0
        %2686 = vmatpush1.bf16.xpose.msra.mxu0 0
        %2687 = vmatprep.subr.bf16.mxu0 0
        %2688 = vmatpush1.bf16.xpose.msra.mxu0 0
        %2689 = vmatprep.subr.bf16.mxu0 0
        %2690 = vmatpush1.bf16.xpose.msra.mxu0 0
        %2691 = vmatprep.subr.bf16.mxu0 0
        %2692 = vmatpush1.bf16.xpose.msra.mxu0 0
        %2693 = vmatprep.subr.bf16.mxu0 0
        %2694 = vmatpush1.bf16.xpose.msra.mxu0 0
        %2695 = vmatprep.subr.bf16.mxu0 0
        %2696 = vmatpush1.bf16.xpose.msra.mxu0 0
        %2697 = vmatprep.subr.bf16.mxu0 0
        %2698 = vmatpush1.bf16.xpose.msra.mxu0 0
        %2699 = vmatprep.subr.bf16.mxu0 0
        %2700 = vmatpush1.bf16.xpose.msra.mxu0 0
        %2701 = vmatprep.subr.bf16.mxu0 0
        %2702 = vmatpush1.bf16.xpose.msra.mxu0 0
        %2703 = vmatprep.subr.bf16.mxu0 0
        %2704 = vmatpush1.bf16.xpose.msra.mxu0 0
        %2705 = vmatprep.subr.bf16.mxu0 0
        %2706 = vmatpush1.bf16.xpose.msra.mxu0 0
        %2707 = vmatprep.subr.bf16.mxu0 0
        %2708 = vmatpush1.bf16.xpose.msra.mxu0 0
        %2709 = vmatprep.subr.bf16.mxu0 0
        %2710 = vmatpush1.bf16.xpose.msra.mxu0 0
        %2711 = vmatprep.subr.bf16.mxu0 0
        %2712 = vmatpush1.bf16.xpose.msra.mxu0 0
        %2713 = vmatprep.subr.bf16.mxu0 0
        %2714 = vmatpush1.bf16.xpose.msra.mxu0 0
        %2715 = vmatprep.mubr.bf16.mxu0 0
        %2716 = vmatmul.mubr.bf16.gmra.mrb[0].mxu0 %v2574
        %v2717 = vpop.f32.mrb[0].mxu0
        %v2718 = vadd.f32 0.0, %v2717
        %v2719 = vpop.f32.mrb[0].mxu0
        %v2720 = vpop.f32.mrb[0].mxu0
        %v2721 = vadd.f32 0.0, %v2720
        %v2722 = vpop.f32.mrb[0].mxu0
        %2723 = vdwg.mxu0
        %v2724 = vpack.c.bf16 %v2617, %v2614
        %s2725 = scalar_lea.vmem [#allocation19], 32
        %v2726 = vld [vmem:[%s2725] sm:$0xf]
        %v2727 = vld [vmem:[%s2725 + $0x4] sm:$0xf]
        %v2728 = vld [vmem:[%s2725 + $0x8] sm:$0xf]
        %v2729 = vld [vmem:[%s2725 + $0xc] sm:$0xf]
        %v2730 = vld [vmem:[%s2725 + $0x10] sm:$0xf]
        %v2731 = vld [vmem:[%s2725 + $0x14] sm:$0xf]
        %v2732 = vld [vmem:[%s2725 + $0x18] sm:$0xf]
        %v2733 = vld [vmem:[%s2725 + $0x1c] sm:$0xf]
        %s2734 = scalar_lea.vmem [#allocation20], 1
        %v2735 = vld [vmem:[%s2734] sm:$0x1]
        %v2737 = vlaneseq
        %v2738 = vshrl.u32 %v2737, 7
        %v2739 = vsub.s32 0, %v2738
        %v2740 = vrot.slane %v2735, %v2739
        %v2750 = vunpack.c.l.b16 %v2726
        %v2751 = vunpack.c.l.b16 %v2727
        %v2752 = vunpack.c.l.b16 %v2728
        %v2753 = vunpack.c.l.b16 %v2729
        %v2754 = vunpack.c.l.b16 %v2730
        %v2755 = vunpack.c.l.b16 %v2731
        %v2756 = vunpack.c.l.b16 %v2732
        %v2757 = vunpack.c.l.b16 %v2733
        %v2758 = vpack.c.b16 %v2751, %v2750
        %v2759 = vpack.c.b16 %v2753, %v2752
        %v2760 = vpack.c.b16 %v2755, %v2754
        %v2761 = vpack.c.b16 %v2757, %v2756
        %v2763 = vsel %vm1093, %v2724, 0
        %v2766 = vsel %vm1093, %v2758, 0
        %v2769 = vsel %vm1093, %v2759, 0
        %v2772 = vsel %vm1093, %v2760, 0
        %v2775 = vsel %vm1093, %v2761, 0
        %2777 = vmatprep.subr.bf16.mxu0 0
        %2778 = vmatpush1.bf16.xpose.msra.mxu0 %v2766
        %2779 = vmatprep.subr.bf16.mxu0 0
        %2780 = vmatpush1.bf16.xpose.msra.mxu0 %v2769
        %2781 = vmatprep.subr.bf16.mxu0 0
        %2782 = vmatpush1.bf16.xpose.msra.mxu0 %v2772
        %2783 = vmatprep.subr.bf16.mxu0 0
        %2784 = vmatpush1.bf16.xpose.msra.mxu0 %v2775
        %2785 = vmatprep.subr.bf16.mxu0 0
        %2786 = vmatpush1.bf16.xpose.msra.mxu0 0
        %2787 = vmatprep.subr.bf16.mxu0 0
        %2788 = vmatpush1.bf16.xpose.msra.mxu0 0
        %2789 = vmatprep.subr.bf16.mxu0 0
        %2790 = vmatpush1.bf16.xpose.msra.mxu0 0
        %2791 = vmatprep.subr.bf16.mxu0 0
        %2792 = vmatpush1.bf16.xpose.msra.mxu0 0
        %2793 = vmatprep.subr.bf16.mxu0 0
        %2794 = vmatpush1.bf16.xpose.msra.mxu0 0
        %2795 = vmatprep.subr.bf16.mxu0 0
        %2796 = vmatpush1.bf16.xpose.msra.mxu0 0
        %2797 = vmatprep.subr.bf16.mxu0 0
        %2798 = vmatpush1.bf16.xpose.msra.mxu0 0
        %2799 = vmatprep.subr.bf16.mxu0 0
        %2800 = vmatpush1.bf16.xpose.msra.mxu0 0
        %2801 = vmatprep.subr.bf16.mxu0 0
        %2802 = vmatpush1.bf16.xpose.msra.mxu0 0
        %2803 = vmatprep.subr.bf16.mxu0 0
        %2804 = vmatpush1.bf16.xpose.msra.mxu0 0
        %2805 = vmatprep.subr.bf16.mxu0 0
        %2806 = vmatpush1.bf16.xpose.msra.mxu0 0
        %2807 = vmatprep.subr.bf16.mxu0 0
        %2808 = vmatpush1.bf16.xpose.msra.mxu0 0
        %2809 = vmatprep.mubr.bf16.mxu0 0
        %2810 = vmatmul.mubr.bf16.gmra.mrb[0].mxu0 %v2763
        %v2811 = vpop.f32.mrb[0].mxu0
        %v2812 = vadd.f32 %v2740, %v2811
        %v2813 = vpop.f32.mrb[0].mxu0
        %v2814 = vpop.f32.mrb[0].mxu0
        %v2815 = vadd.f32 %v2740, %v2814
        %v2816 = vpop.f32.mrb[0].mxu0
        %2817 = vdwg.mxu0
        %v2818 = vmax.f32 %v2812, 0.0
        %v2819 = vmax.f32 %v2815, 0.0
        %v2820 = vand.u32 2147483647, %v2812
        %v2821 = vand.u32 2147483647, %v2815
        %v2822 = vsub.f32 0.0, %v2820
        %v2823 = vsub.f32 0.0, %v2821
        %v2824 = vmul.f32 %v2822, 1.442695
        %v2825 = vpow.pop %v2824
        %v2826 = vmul.f32 %v2823, 1.442695
        %v2827 = vpow.pop %v2826
        %v2828 = vadd.f32 %v2825, 1.0
        %v2829 = vlog2.pop %v2828
        %v2830 = vmul.f32 %v2829, 0.6931472
        %v2831 = vmul.f32 -0.5, %v2825
        %v2832 = vadd.f32 %v2831, 1.0
        %v2833 = vmul.f32 %v2832, %v2825
        %v2834 = vand.u32 2147483647, %v2825
        %vm2835 = vcmp.lt.f32.partialorder %v2834, 0.0004427343
        %v2836 = vsel %vm2835, %v2833, %v2830
        %v2837 = vadd.f32 %v2827, 1.0
        %v2838 = vlog2.pop %v2837
        %v2839 = vmul.f32 %v2838, 0.6931472
        %v2840 = vmul.f32 -0.5, %v2827
        %v2841 = vadd.f32 %v2840, 1.0
        %v2842 = vmul.f32 %v2841, %v2827
        %v2843 = vand.u32 2147483647, %v2827
        %vm2844 = vcmp.lt.f32.partialorder %v2843, 0.0004427343
        %v2845 = vsel %vm2844, %v2842, %v2839
        %v2846 = vadd.f32 %v2818, %v2836
        %v2847 = vadd.f32 %v2819, %v2845
        %v2848 = vmul.f32 %v2846, %v2568
        %v2849 = vmul.f32 %v2847, %v2569
        %s2850 = scalar_lea.vmem [#allocation22], 16
        %v2851 = vld [vmem:[%s2850] sm:$0xff]
        %v2852 = vld [vmem:[%s2850 + $0x8] sm:$0xff]
        %s2853 = scalar_lea.vmem [#allocation3], 16
        %v2854 = vld [vmem:[%s2853] sm:$0xff]
        %v2855 = vld [vmem:[%s2853 + $0x8] sm:$0xff]
        %v2857 = vcombine.high %v2846, %v2846
        %v2859 = vunpack.c.l.s4 1966171168
        %v2860 = vunpack.c.0.s8 %v2859
        %v2861 = vlaneseq
        %v2862 = vshrl.u32 %v2861, 7
        %v2863 = vsub.s32 %v2860, %v2862
        %v2864 = vrot.slane %v2846, %v2863
        %v2866 = vunpack.c.l.s4 1966171168
        %v2867 = vunpack.c.0.s8 %v2866
        %v2868 = vlaneseq
        %v2869 = vshrl.u32 %v2868, 7
        %v2870 = vsub.s32 %v2867, %v2869
        %v2871 = vrot.slane %v2857, %v2870
        %v2872 = vcombine.high %v2864, %v2864
        %v2873 = vcombine.high %v2871, %v2871
        %v2875 = vunpack.c.l.s4 1966171168
        %v2876 = vunpack.c.0.s8 %v2875
        %v2877 = vlaneseq
        %v2878 = vshrl.u32 %v2877, 7
        %v2879 = vsub.s32 %v2876, %v2878
        %v2880 = vrot.slane %v2864, %v2879
        %v2882 = vunpack.c.l.s4 1966171168
        %v2883 = vunpack.c.0.s8 %v2882
        %v2884 = vlaneseq
        %v2885 = vshrl.u32 %v2884, 7
        %v2886 = vsub.s32 %v2883, %v2885
        %v2887 = vrot.slane %v2871, %v2886
        %v2889 = vunpack.c.l.s4 1966171168
        %v2890 = vunpack.c.0.s8 %v2889
        %v2891 = vlaneseq
        %v2892 = vshrl.u32 %v2891, 7
        %v2893 = vsub.s32 %v2890, %v2892
        %v2894 = vrot.slane %v2872, %v2893
        %v2896 = vunpack.c.l.s4 1966171168
        %v2897 = vunpack.c.0.s8 %v2896
        %v2898 = vlaneseq
        %v2899 = vshrl.u32 %v2898, 7
        %v2900 = vsub.s32 %v2897, %v2899
        %v2901 = vrot.slane %v2873, %v2900
        %v2902 = vcombine.high %v2880, %v2880
        %v2903 = vcombine.high %v2887, %v2887
        %v2904 = vcombine.high %v2894, %v2894
        %v2905 = vcombine.high %v2901, %v2901
        %v2906 = vlaneseq
        %v2907 = vshrl.u32 %v2906, 7
        %v2908 = vsub.s32 0, %v2907
        %v2909 = vrot.slane %v2880, %v2908
        %v2910 = vlaneseq
        %v2911 = vshrl.u32 %v2910, 7
        %v2912 = vsub.s32 0, %v2911
        %v2913 = vrot.slane %v2894, %v2912
        %v2914 = vlaneseq
        %v2915 = vshrl.u32 %v2914, 7
        %v2916 = vsub.s32 0, %v2915
        %v2917 = vrot.slane %v2902, %v2916
        %v2918 = vlaneseq
        %v2919 = vshrl.u32 %v2918, 7
        %v2920 = vsub.s32 0, %v2919
        %v2921 = vrot.slane %v2904, %v2920
        %v2922 = vlaneseq
        %v2923 = vshrl.u32 %v2922, 7
        %v2924 = vsub.s32 0, %v2923
        %v2925 = vrot.slane %v2887, %v2924
        %v2926 = vlaneseq
        %v2927 = vshrl.u32 %v2926, 7
        %v2928 = vsub.s32 0, %v2927
        %v2929 = vrot.slane %v2901, %v2928
        %v2930 = vlaneseq
        %v2931 = vshrl.u32 %v2930, 7
        %v2932 = vsub.s32 0, %v2931
        %v2933 = vrot.slane %v2903, %v2932
        %v2934 = vlaneseq
        %v2935 = vshrl.u32 %v2934, 7
        %v2936 = vsub.s32 0, %v2935
        %v2937 = vrot.slane %v2905, %v2936
        %v2946 = vmul.f32 %v2909, %v2851
        %v2947 = vmul.f32 %v2909, %v2852
        %v2948 = vmul.f32 %v2913, %v2851
        %v2949 = vmul.f32 %v2913, %v2852
        %v2950 = vmul.f32 %v2917, %v2851
        %v2951 = vmul.f32 %v2917, %v2852
        %v2952 = vmul.f32 %v2921, %v2851
        %v2953 = vmul.f32 %v2921, %v2852
        %v2954 = vmul.f32 %v2925, %v2851
        %v2955 = vmul.f32 %v2925, %v2852
        %v2956 = vmul.f32 %v2929, %v2851
        %v2957 = vmul.f32 %v2929, %v2852
        %v2958 = vmul.f32 %v2933, %v2851
        %v2959 = vmul.f32 %v2933, %v2852
        %v2960 = vmul.f32 %v2937, %v2851
        %v2961 = vmul.f32 %v2937, %v2852
        %v2962 = vmul.f32 %v2946, 1.442695
        %v2963 = vpow.pop %v2962
        %v2964 = vmul.f32 %v2947, 1.442695
        %v2965 = vpow.pop %v2964
        %v2966 = vmul.f32 %v2948, 1.442695
        %v2967 = vpow.pop %v2966
        %v2968 = vmul.f32 %v2949, 1.442695
        %v2969 = vpow.pop %v2968
        %v2970 = vmul.f32 %v2950, 1.442695
        %v2971 = vpow.pop %v2970
        %v2972 = vmul.f32 %v2951, 1.442695
        %v2973 = vpow.pop %v2972
        %v2974 = vmul.f32 %v2952, 1.442695
        %v2975 = vpow.pop %v2974
        %v2976 = vmul.f32 %v2953, 1.442695
        %v2977 = vpow.pop %v2976
        %v2978 = vmul.f32 %v2954, 1.442695
        %v2979 = vpow.pop %v2978
        %v2980 = vmul.f32 %v2955, 1.442695
        %v2981 = vpow.pop %v2980
        %v2982 = vmul.f32 %v2956, 1.442695
        %v2983 = vpow.pop %v2982
        %v2984 = vmul.f32 %v2957, 1.442695
        %v2985 = vpow.pop %v2984
        %v2986 = vmul.f32 %v2958, 1.442695
        %v2987 = vpow.pop %v2986
        %v2988 = vmul.f32 %v2959, 1.442695
        %v2989 = vpow.pop %v2988
        %v2990 = vmul.f32 %v2960, 1.442695
        %v2991 = vpow.pop %v2990
        %v2992 = vmul.f32 %v2961, 1.442695
        %v2993 = vpow.pop %v2992
        %v2995 = vcombine.high %v2848, %v2848
        %v2997 = vunpack.c.l.s4 1966171168
        %v2998 = vunpack.c.0.s8 %v2997
        %v2999 = vlaneseq
        %v3000 = vshrl.u32 %v2999, 7
        %v3001 = vsub.s32 %v2998, %v3000
        %v3002 = vrot.slane %v2848, %v3001
        %v3004 = vunpack.c.l.s4 1966171168
        %v3005 = vunpack.c.0.s8 %v3004
        %v3006 = vlaneseq
        %v3007 = vshrl.u32 %v3006, 7
        %v3008 = vsub.s32 %v3005, %v3007
        %v3009 = vrot.slane %v2995, %v3008
        %v3010 = vcombine.high %v3002, %v3002
        %v3011 = vcombine.high %v3009, %v3009
        %v3013 = vunpack.c.l.s4 1966171168
        %v3014 = vunpack.c.0.s8 %v3013
        %v3015 = vlaneseq
        %v3016 = vshrl.u32 %v3015, 7
        %v3017 = vsub.s32 %v3014, %v3016
        %v3018 = vrot.slane %v3002, %v3017
        %v3020 = vunpack.c.l.s4 1966171168
        %v3021 = vunpack.c.0.s8 %v3020
        %v3022 = vlaneseq
        %v3023 = vshrl.u32 %v3022, 7
        %v3024 = vsub.s32 %v3021, %v3023
        %v3025 = vrot.slane %v3009, %v3024
        %v3027 = vunpack.c.l.s4 1966171168
        %v3028 = vunpack.c.0.s8 %v3027
        %v3029 = vlaneseq
        %v3030 = vshrl.u32 %v3029, 7
        %v3031 = vsub.s32 %v3028, %v3030
        %v3032 = vrot.slane %v3010, %v3031
        %v3034 = vunpack.c.l.s4 1966171168
        %v3035 = vunpack.c.0.s8 %v3034
        %v3036 = vlaneseq
        %v3037 = vshrl.u32 %v3036, 7
        %v3038 = vsub.s32 %v3035, %v3037
        %v3039 = vrot.slane %v3011, %v3038
        %v3040 = vcombine.high %v3018, %v3018
        %v3041 = vcombine.high %v3025, %v3025
        %v3042 = vcombine.high %v3032, %v3032
        %v3043 = vcombine.high %v3039, %v3039
        %v3044 = vlaneseq
        %v3045 = vshrl.u32 %v3044, 7
        %v3046 = vsub.s32 0, %v3045
        %v3047 = vrot.slane %v2666, %v3046
        %3049 = vbcast.lane.b32.xlu0 %v3047, 256
        %v3050 = vpop.permute.xlu0 %3049
        %s3052 = sor.u32 256, 8
        %3053 = vbcast.lane.b32.xlu0 %v3047, %s3052
        %v3054 = vpop.permute.xlu0 %3053
        %v3055 = vlaneseq
        %v3056 = vshrl.u32 %v3055, 7
        %v3057 = vsub.s32 1, %v3056
        %v3058 = vrot.slane %v2666, %v3057
        %3060 = vbcast.lane.b32.xlu0 %v3058, 256
        %v3061 = vpop.permute.xlu0 %3060
        %s3063 = sor.u32 256, 8
        %3064 = vbcast.lane.b32.xlu0 %v3058, %s3063
        %v3065 = vpop.permute.xlu0 %3064
        %v3066 = vlaneseq
        %v3067 = vshrl.u32 %v3066, 7
        %v3068 = vsub.s32 2, %v3067
        %v3069 = vrot.slane %v2666, %v3068
        %3071 = vbcast.lane.b32.xlu0 %v3069, 256
        %v3072 = vpop.permute.xlu0 %3071
        %s3074 = sor.u32 256, 8
        %3075 = vbcast.lane.b32.xlu0 %v3069, %s3074
        %v3076 = vpop.permute.xlu0 %3075
        %v3077 = vlaneseq
        %v3078 = vshrl.u32 %v3077, 7
        %v3079 = vsub.s32 3, %v3078
        %v3080 = vrot.slane %v2666, %v3079
        %3082 = vbcast.lane.b32.xlu0 %v3080, 256
        %v3083 = vpop.permute.xlu0 %3082
        %s3085 = sor.u32 256, 8
        %3086 = vbcast.lane.b32.xlu0 %v3080, %s3085
        %v3087 = vpop.permute.xlu0 %3086
        %v3088 = vlaneseq
        %v3089 = vshrl.u32 %v3088, 7
        %v3090 = vsub.s32 4, %v3089
        %v3091 = vrot.slane %v2666, %v3090
        %3093 = vbcast.lane.b32.xlu0 %v3091, 256
        %v3094 = vpop.permute.xlu0 %3093
        %s3096 = sor.u32 256, 8
        %3097 = vbcast.lane.b32.xlu0 %v3091, %s3096
        %v3098 = vpop.permute.xlu0 %3097
        %v3099 = vlaneseq
        %v3100 = vshrl.u32 %v3099, 7
        %v3101 = vsub.s32 5, %v3100
        %v3102 = vrot.slane %v2666, %v3101
        %3104 = vbcast.lane.b32.xlu0 %v3102, 256
        %v3105 = vpop.permute.xlu0 %3104
        %s3107 = sor.u32 256, 8
        %3108 = vbcast.lane.b32.xlu0 %v3102, %s3107
        %v3109 = vpop.permute.xlu0 %3108
        %v3110 = vlaneseq
        %v3111 = vshrl.u32 %v3110, 7
        %v3112 = vsub.s32 6, %v3111
        %v3113 = vrot.slane %v2666, %v3112
        %3115 = vbcast.lane.b32.xlu0 %v3113, 256
        %v3116 = vpop.permute.xlu0 %3115
        %s3118 = sor.u32 256, 8
        %3119 = vbcast.lane.b32.xlu0 %v3113, %s3118
        %v3120 = vpop.permute.xlu0 %3119
        %v3121 = vlaneseq
        %v3122 = vshrl.u32 %v3121, 7
        %v3123 = vsub.s32 7, %v3122
        %v3124 = vrot.slane %v2666, %v3123
        %3126 = vbcast.lane.b32.xlu0 %v3124, 256
        %v3127 = vpop.permute.xlu0 %3126
        %s3129 = sor.u32 256, 8
        %3130 = vbcast.lane.b32.xlu0 %v3124, %s3129
        %v3131 = vpop.permute.xlu0 %3130
        %v3132 = vlaneseq
        %v3133 = vshrl.u32 %v3132, 7
        %v3134 = vsub.s32 0, %v3133
        %v3135 = vrot.slane %v3018, %v3134
        %v3136 = vlaneseq
        %v3137 = vshrl.u32 %v3136, 7
        %v3138 = vsub.s32 0, %v3137
        %v3139 = vrot.slane %v3032, %v3138
        %v3140 = vlaneseq
        %v3141 = vshrl.u32 %v3140, 7
        %v3142 = vsub.s32 0, %v3141
        %v3143 = vrot.slane %v3040, %v3142
        %v3144 = vlaneseq
        %v3145 = vshrl.u32 %v3144, 7
        %v3146 = vsub.s32 0, %v3145
        %v3147 = vrot.slane %v3042, %v3146
        %v3148 = vlaneseq
        %v3149 = vshrl.u32 %v3148, 7
        %v3150 = vsub.s32 0, %v3149
        %v3151 = vrot.slane %v3025, %v3150
        %v3152 = vlaneseq
        %v3153 = vshrl.u32 %v3152, 7
        %v3154 = vsub.s32 0, %v3153
        %v3155 = vrot.slane %v3039, %v3154
        %v3156 = vlaneseq
        %v3157 = vshrl.u32 %v3156, 7
        %v3158 = vsub.s32 0, %v3157
        %v3159 = vrot.slane %v3041, %v3158
        %v3160 = vlaneseq
        %v3161 = vshrl.u32 %v3160, 7
        %v3162 = vsub.s32 0, %v3161
        %v3163 = vrot.slane %v3043, %v3162
        %v3172 = vmul.f32 %v3135, %v3050
        %v3173 = vmul.f32 %v3135, %v3054
        %v3174 = vmul.f32 %v3139, %v3061
        %v3175 = vmul.f32 %v3139, %v3065
        %v3176 = vmul.f32 %v3143, %v3072
        %v3177 = vmul.f32 %v3143, %v3076
        %v3178 = vmul.f32 %v3147, %v3083
        %v3179 = vmul.f32 %v3147, %v3087
        %v3180 = vmul.f32 %v3151, %v3094
        %v3181 = vmul.f32 %v3151, %v3098
        %v3182 = vmul.f32 %v3155, %v3105
        %v3183 = vmul.f32 %v3155, %v3109
        %v3184 = vmul.f32 %v3159, %v3116
        %v3185 = vmul.f32 %v3159, %v3120
        %v3186 = vmul.f32 %v3163, %v3127
        %v3187 = vmul.f32 %v3163, %v3131
        %v3188 = vmul.f32 %v2963, %v2854
        %v3189 = vmul.f32 %v2965, %v2855
        %v3190 = vadd.f32 %v3188, %v3172
        %v3191 = vadd.f32 %v3189, %v3173
        %v3192 = vmul.f32 %v2967, %v3190
        %v3193 = vmul.f32 %v2969, %v3191
        %v3194 = vadd.f32 %v3192, %v3174
        %v3195 = vadd.f32 %v3193, %v3175
        %v3196 = vmul.f32 %v2971, %v3194
        %v3197 = vmul.f32 %v2973, %v3195
        %v3198 = vadd.f32 %v3196, %v3176
        %v3199 = vadd.f32 %v3197, %v3177
        %v3200 = vmul.f32 %v2975, %v3198
        %v3201 = vmul.f32 %v2977, %v3199
        %v3202 = vadd.f32 %v3200, %v3178
        %v3203 = vadd.f32 %v3201, %v3179
        %v3204 = vmul.f32 %v2979, %v3202
        %v3205 = vmul.f32 %v2981, %v3203
        %v3206 = vadd.f32 %v3204, %v3180
        %v3207 = vadd.f32 %v3205, %v3181
        %v3208 = vmul.f32 %v2983, %v3206
        %v3209 = vmul.f32 %v2985, %v3207
        %v3210 = vadd.f32 %v3208, %v3182
        %v3211 = vadd.f32 %v3209, %v3183
        %v3212 = vmul.f32 %v2987, %v3210
        %v3213 = vmul.f32 %v2989, %v3211
        %v3214 = vadd.f32 %v3212, %v3184
        %v3215 = vadd.f32 %v3213, %v3185
        %v3216 = vmul.f32 %v2991, %v3214
        %v3217 = vmul.f32 %v2993, %v3215
        %v3218 = vadd.f32 %v3216, %v3186
        %v3219 = vadd.f32 %v3217, %v3187
        %v3220 = vlaneseq
        %v3221 = vshrl.u32 %v3220, 7
        %v3222 = vsub.s32 0, %v3221
        %v3223 = vrot.slane %v2718, %v3222
        %3225 = vbcast.lane.b32.xlu0 %v3223, 256
        %v3226 = vpop.permute.xlu0 %3225
        %s3228 = sor.u32 256, 8
        %3229 = vbcast.lane.b32.xlu0 %v3223, %s3228
        %v3230 = vpop.permute.xlu0 %3229
        %v3231 = vlaneseq
        %v3232 = vshrl.u32 %v3231, 7
        %v3233 = vsub.s32 1, %v3232
        %v3234 = vrot.slane %v2718, %v3233
        %3236 = vbcast.lane.b32.xlu0 %v3234, 256
        %v3237 = vpop.permute.xlu0 %3236
        %s3239 = sor.u32 256, 8
        %3240 = vbcast.lane.b32.xlu0 %v3234, %s3239
        %v3241 = vpop.permute.xlu0 %3240
        %v3242 = vlaneseq
        %v3243 = vshrl.u32 %v3242, 7
        %v3244 = vsub.s32 2, %v3243
        %v3245 = vrot.slane %v2718, %v3244
        %3247 = vbcast.lane.b32.xlu0 %v3245, 256
        %v3248 = vpop.permute.xlu0 %3247
        %s3250 = sor.u32 256, 8
        %3251 = vbcast.lane.b32.xlu0 %v3245, %s3250
        %v3252 = vpop.permute.xlu0 %3251
        %v3253 = vlaneseq
        %v3254 = vshrl.u32 %v3253, 7
        %v3255 = vsub.s32 3, %v3254
        %v3256 = vrot.slane %v2718, %v3255
        %3258 = vbcast.lane.b32.xlu0 %v3256, 256
        %v3259 = vpop.permute.xlu0 %3258
        %s3261 = sor.u32 256, 8
        %3262 = vbcast.lane.b32.xlu0 %v3256, %s3261
        %v3263 = vpop.permute.xlu0 %3262
        %v3264 = vlaneseq
        %v3265 = vshrl.u32 %v3264, 7
        %v3266 = vsub.s32 4, %v3265
        %v3267 = vrot.slane %v2718, %v3266
        %3269 = vbcast.lane.b32.xlu0 %v3267, 256
        %v3270 = vpop.permute.xlu0 %3269
        %s3272 = sor.u32 256, 8
        %3273 = vbcast.lane.b32.xlu0 %v3267, %s3272
        %v3274 = vpop.permute.xlu0 %3273
        %v3275 = vlaneseq
        %v3276 = vshrl.u32 %v3275, 7
        %v3277 = vsub.s32 5, %v3276
        %v3278 = vrot.slane %v2718, %v3277
        %3280 = vbcast.lane.b32.xlu0 %v3278, 256
        %v3281 = vpop.permute.xlu0 %3280
        %s3283 = sor.u32 256, 8
        %3284 = vbcast.lane.b32.xlu0 %v3278, %s3283
        %v3285 = vpop.permute.xlu0 %3284
        %v3286 = vlaneseq
        %v3287 = vshrl.u32 %v3286, 7
        %v3288 = vsub.s32 6, %v3287
        %v3289 = vrot.slane %v2718, %v3288
        %3291 = vbcast.lane.b32.xlu0 %v3289, 256
        %v3292 = vpop.permute.xlu0 %3291
        %s3294 = sor.u32 256, 8
        %3295 = vbcast.lane.b32.xlu0 %v3289, %s3294
        %v3296 = vpop.permute.xlu0 %3295
        %v3297 = vlaneseq
        %v3298 = vshrl.u32 %v3297, 7
        %v3299 = vsub.s32 7, %v3298
        %v3300 = vrot.slane %v2718, %v3299
        %3302 = vbcast.lane.b32.xlu0 %v3300, 256
        %v3303 = vpop.permute.xlu0 %3302
        %s3305 = sor.u32 256, 8
        %3306 = vbcast.lane.b32.xlu0 %v3300, %s3305
        %v3307 = vpop.permute.xlu0 %3306
        %v3308 = vmul.f32 %v3190, %v3226
        %v3309 = vmul.f32 %v3191, %v3230
        %v3310 = vmul.f32 %v3194, %v3237
        %v3311 = vmul.f32 %v3195, %v3241
        %v3312 = vmul.f32 %v3198, %v3248
        %v3313 = vmul.f32 %v3199, %v3252
        %v3314 = vmul.f32 %v3202, %v3259
        %v3315 = vmul.f32 %v3203, %v3263
        %v3316 = vmul.f32 %v3206, %v3270
        %v3317 = vmul.f32 %v3207, %v3274
        %v3318 = vmul.f32 %v3210, %v3281
        %v3319 = vmul.f32 %v3211, %v3285
        %v3320 = vmul.f32 %v3214, %v3292
        %v3321 = vmul.f32 %v3215, %v3296
        %v3322 = vmul.f32 %v3218, %v3303
        %v3323 = vmul.f32 %v3219, %v3307
        %v3324 = vsel %vm839, %v3308, 0.0
        %v3325 = vsel %vm839, %v3309, 0.0
        %v3326 = vadd.f32 %v3324, %v3325
        %v3327 = vrot.slane %v3326, 4
        %v3328 = vadd.f32 %v3326, %v3327
        %v3329 = vrot.slane %v3328, 2
        %v3330 = vadd.f32 %v3328, %v3329
        %v3331 = vrot.slane %v3330, 1
        %v3332 = vadd.f32 %v3330, %v3331
        %v3333 = vsel %vm839, %v3310, 0.0
        %v3334 = vsel %vm839, %v3311, 0.0
        %v3335 = vadd.f32 %v3333, %v3334
        %v3336 = vrot.slane %v3335, 4
        %v3337 = vadd.f32 %v3335, %v3336
        %v3338 = vrot.slane %v3337, 2
        %v3339 = vadd.f32 %v3337, %v3338
        %v3340 = vrot.slane %v3339, 1
        %v3341 = vadd.f32 %v3339, %v3340
        %v3342 = vsel %vm839, %v3312, 0.0
        %v3343 = vsel %vm839, %v3313, 0.0
        %v3344 = vadd.f32 %v3342, %v3343
        %v3345 = vrot.slane %v3344, 4
        %v3346 = vadd.f32 %v3344, %v3345
        %v3347 = vrot.slane %v3346, 2
        %v3348 = vadd.f32 %v3346, %v3347
        %v3349 = vrot.slane %v3348, 1
        %v3350 = vadd.f32 %v3348, %v3349
        %v3351 = vsel %vm839, %v3314, 0.0
        %v3352 = vsel %vm839, %v3315, 0.0
        %v3353 = vadd.f32 %v3351, %v3352
        %v3354 = vrot.slane %v3353, 4
        %v3355 = vadd.f32 %v3353, %v3354
        %v3356 = vrot.slane %v3355, 2
        %v3357 = vadd.f32 %v3355, %v3356
        %v3358 = vrot.slane %v3357, 1
        %v3359 = vadd.f32 %v3357, %v3358
        %v3360 = vsel %vm839, %v3316, 0.0
        %v3361 = vsel %vm839, %v3317, 0.0
        %v3362 = vadd.f32 %v3360, %v3361
        %v3363 = vrot.slane %v3362, 4
        %v3364 = vadd.f32 %v3362, %v3363
        %v3365 = vrot.slane %v3364, 2
        %v3366 = vadd.f32 %v3364, %v3365
        %v3367 = vrot.slane %v3366, 1
        %v3368 = vadd.f32 %v3366, %v3367
        %v3369 = vsel %vm839, %v3318, 0.0
        %v3370 = vsel %vm839, %v3319, 0.0
        %v3371 = vadd.f32 %v3369, %v3370
        %v3372 = vrot.slane %v3371, 4
        %v3373 = vadd.f32 %v3371, %v3372
        %v3374 = vrot.slane %v3373, 2
        %v3375 = vadd.f32 %v3373, %v3374
        %v3376 = vrot.slane %v3375, 1
        %v3377 = vadd.f32 %v3375, %v3376
        %v3378 = vsel %vm839, %v3320, 0.0
        %v3379 = vsel %vm839, %v3321, 0.0
        %v3380 = vadd.f32 %v3378, %v3379
        %v3381 = vrot.slane %v3380, 4
        %v3382 = vadd.f32 %v3380, %v3381
        %v3383 = vrot.slane %v3382, 2
        %v3384 = vadd.f32 %v3382, %v3383
        %v3385 = vrot.slane %v3384, 1
        %v3386 = vadd.f32 %v3384, %v3385
        %v3387 = vsel %vm839, %v3322, 0.0
        %v3388 = vsel %vm839, %v3323, 0.0
        %v3389 = vadd.f32 %v3387, %v3388
        %v3390 = vrot.slane %v3389, 4
        %v3391 = vadd.f32 %v3389, %v3390
        %v3392 = vrot.slane %v3391, 2
        %v3393 = vadd.f32 %v3391, %v3392
        %v3394 = vrot.slane %v3393, 1
        %v3395 = vadd.f32 %v3393, %v3394
        %v3397 = vcombine.high %v2847, %v2847
        %v3399 = vunpack.c.l.s4 1966171168
        %v3400 = vunpack.c.0.s8 %v3399
        %v3401 = vlaneseq
        %v3402 = vshrl.u32 %v3401, 7
        %v3403 = vsub.s32 %v3400, %v3402
        %v3404 = vrot.slane %v2847, %v3403
        %v3406 = vunpack.c.l.s4 1966171168
        %v3407 = vunpack.c.0.s8 %v3406
        %v3408 = vlaneseq
        %v3409 = vshrl.u32 %v3408, 7
        %v3410 = vsub.s32 %v3407, %v3409
        %v3411 = vrot.slane %v3397, %v3410
        %v3412 = vcombine.high %v3404, %v3404
        %v3413 = vcombine.high %v3411, %v3411
        %v3415 = vunpack.c.l.s4 1966171168
        %v3416 = vunpack.c.0.s8 %v3415
        %v3417 = vlaneseq
        %v3418 = vshrl.u32 %v3417, 7
        %v3419 = vsub.s32 %v3416, %v3418
        %v3420 = vrot.slane %v3404, %v3419
        %v3422 = vunpack.c.l.s4 1966171168
        %v3423 = vunpack.c.0.s8 %v3422
        %v3424 = vlaneseq
        %v3425 = vshrl.u32 %v3424, 7
        %v3426 = vsub.s32 %v3423, %v3425
        %v3427 = vrot.slane %v3411, %v3426
        %v3429 = vunpack.c.l.s4 1966171168
        %v3430 = vunpack.c.0.s8 %v3429
        %v3431 = vlaneseq
        %v3432 = vshrl.u32 %v3431, 7
        %v3433 = vsub.s32 %v3430, %v3432
        %v3434 = vrot.slane %v3412, %v3433
        %v3436 = vunpack.c.l.s4 1966171168
        %v3437 = vunpack.c.0.s8 %v3436
        %v3438 = vlaneseq
        %v3439 = vshrl.u32 %v3438, 7
        %v3440 = vsub.s32 %v3437, %v3439
        %v3441 = vrot.slane %v3413, %v3440
        %v3442 = vcombine.high %v3420, %v3420
        %v3443 = vcombine.high %v3427, %v3427
        %v3444 = vcombine.high %v3434, %v3434
        %v3445 = vcombine.high %v3441, %v3441
        %v3446 = vlaneseq
        %v3447 = vshrl.u32 %v3446, 7
        %v3448 = vsub.s32 0, %v3447
        %v3449 = vrot.slane %v3420, %v3448
        %v3450 = vlaneseq
        %v3451 = vshrl.u32 %v3450, 7
        %v3452 = vsub.s32 0, %v3451
        %v3453 = vrot.slane %v3434, %v3452
        %v3454 = vlaneseq
        %v3455 = vshrl.u32 %v3454, 7
        %v3456 = vsub.s32 0, %v3455
        %v3457 = vrot.slane %v3442, %v3456
        %v3458 = vlaneseq
        %v3459 = vshrl.u32 %v3458, 7
        %v3460 = vsub.s32 0, %v3459
        %v3461 = vrot.slane %v3444, %v3460
        %v3462 = vlaneseq
        %v3463 = vshrl.u32 %v3462, 7
        %v3464 = vsub.s32 0, %v3463
        %v3465 = vrot.slane %v3427, %v3464
        %v3466 = vlaneseq
        %v3467 = vshrl.u32 %v3466, 7
        %v3468 = vsub.s32 0, %v3467
        %v3469 = vrot.slane %v3441, %v3468
        %v3470 = vlaneseq
        %v3471 = vshrl.u32 %v3470, 7
        %v3472 = vsub.s32 0, %v3471
        %v3473 = vrot.slane %v3443, %v3472
        %v3474 = vlaneseq
        %v3475 = vshrl.u32 %v3474, 7
        %v3476 = vsub.s32 0, %v3475
        %v3477 = vrot.slane %v3445, %v3476
        %v3486 = vmul.f32 %v3449, %v2851
        %v3487 = vmul.f32 %v3449, %v2852
        %v3488 = vmul.f32 %v3453, %v2851
        %v3489 = vmul.f32 %v3453, %v2852
        %v3490 = vmul.f32 %v3457, %v2851
        %v3491 = vmul.f32 %v3457, %v2852
        %v3492 = vmul.f32 %v3461, %v2851
        %v3493 = vmul.f32 %v3461, %v2852
        %v3494 = vmul.f32 %v3465, %v2851
        %v3495 = vmul.f32 %v3465, %v2852
        %v3496 = vmul.f32 %v3469, %v2851
        %v3497 = vmul.f32 %v3469, %v2852
        %v3498 = vmul.f32 %v3473, %v2851
        %v3499 = vmul.f32 %v3473, %v2852
        %v3500 = vmul.f32 %v3477, %v2851
        %v3501 = vmul.f32 %v3477, %v2852
        %v3502 = vmul.f32 %v3486, 1.442695
        %v3503 = vpow.pop %v3502
        %v3504 = vmul.f32 %v3487, 1.442695
        %v3505 = vpow.pop %v3504
        %v3506 = vmul.f32 %v3488, 1.442695
        %v3507 = vpow.pop %v3506
        %v3508 = vmul.f32 %v3489, 1.442695
        %v3509 = vpow.pop %v3508
        %v3510 = vmul.f32 %v3490, 1.442695
        %v3511 = vpow.pop %v3510
        %v3512 = vmul.f32 %v3491, 1.442695
        %v3513 = vpow.pop %v3512
        %v3514 = vmul.f32 %v3492, 1.442695
        %v3515 = vpow.pop %v3514
        %v3516 = vmul.f32 %v3493, 1.442695
        %v3517 = vpow.pop %v3516
        %v3518 = vmul.f32 %v3494, 1.442695
        %v3519 = vpow.pop %v3518
        %v3520 = vmul.f32 %v3495, 1.442695
        %v3521 = vpow.pop %v3520
        %v3522 = vmul.f32 %v3496, 1.442695
        %v3523 = vpow.pop %v3522
        %v3524 = vmul.f32 %v3497, 1.442695
        %v3525 = vpow.pop %v3524
        %v3526 = vmul.f32 %v3498, 1.442695
        %v3527 = vpow.pop %v3526
        %v3528 = vmul.f32 %v3499, 1.442695
        %v3529 = vpow.pop %v3528
        %v3530 = vmul.f32 %v3500, 1.442695
        %v3531 = vpow.pop %v3530
        %v3532 = vmul.f32 %v3501, 1.442695
        %v3533 = vpow.pop %v3532
        %v3535 = vcombine.high %v2849, %v2849
        %v3537 = vunpack.c.l.s4 1966171168
        %v3538 = vunpack.c.0.s8 %v3537
        %v3539 = vlaneseq
        %v3540 = vshrl.u32 %v3539, 7
        %v3541 = vsub.s32 %v3538, %v3540
        %v3542 = vrot.slane %v2849, %v3541
        %v3544 = vunpack.c.l.s4 1966171168
        %v3545 = vunpack.c.0.s8 %v3544
        %v3546 = vlaneseq
        %v3547 = vshrl.u32 %v3546, 7
        %v3548 = vsub.s32 %v3545, %v3547
        %v3549 = vrot.slane %v3535, %v3548
        %v3550 = vcombine.high %v3542, %v3542
        %v3551 = vcombine.high %v3549, %v3549
        %v3553 = vunpack.c.l.s4 1966171168
        %v3554 = vunpack.c.0.s8 %v3553
        %v3555 = vlaneseq
        %v3556 = vshrl.u32 %v3555, 7
        %v3557 = vsub.s32 %v3554, %v3556
        %v3558 = vrot.slane %v3542, %v3557
        %v3560 = vunpack.c.l.s4 1966171168
        %v3561 = vunpack.c.0.s8 %v3560
        %v3562 = vlaneseq
        %v3563 = vshrl.u32 %v3562, 7
        %v3564 = vsub.s32 %v3561, %v3563
        %v3565 = vrot.slane %v3549, %v3564
        %v3567 = vunpack.c.l.s4 1966171168
        %v3568 = vunpack.c.0.s8 %v3567
        %v3569 = vlaneseq
        %v3570 = vshrl.u32 %v3569, 7
        %v3571 = vsub.s32 %v3568, %v3570
        %v3572 = vrot.slane %v3550, %v3571
        %v3574 = vunpack.c.l.s4 1966171168
        %v3575 = vunpack.c.0.s8 %v3574
        %v3576 = vlaneseq
        %v3577 = vshrl.u32 %v3576, 7
        %v3578 = vsub.s32 %v3575, %v3577
        %v3579 = vrot.slane %v3551, %v3578
        %v3580 = vcombine.high %v3558, %v3558
        %v3581 = vcombine.high %v3565, %v3565
        %v3582 = vcombine.high %v3572, %v3572
        %v3583 = vcombine.high %v3579, %v3579
        %v3584 = vlaneseq
        %v3585 = vshrl.u32 %v3584, 7
        %v3586 = vsub.s32 0, %v3585
        %v3587 = vrot.slane %v2669, %v3586
        %3589 = vbcast.lane.b32.xlu0 %v3587, 256
        %v3590 = vpop.permute.xlu0 %3589
        %s3592 = sor.u32 256, 8
        %3593 = vbcast.lane.b32.xlu0 %v3587, %s3592
        %v3594 = vpop.permute.xlu0 %3593
        %v3595 = vlaneseq
        %v3596 = vshrl.u32 %v3595, 7
        %v3597 = vsub.s32 1, %v3596
        %v3598 = vrot.slane %v2669, %v3597
        %3600 = vbcast.lane.b32.xlu0 %v3598, 256
        %v3601 = vpop.permute.xlu0 %3600
        %s3603 = sor.u32 256, 8
        %3604 = vbcast.lane.b32.xlu0 %v3598, %s3603
        %v3605 = vpop.permute.xlu0 %3604
        %v3606 = vlaneseq
        %v3607 = vshrl.u32 %v3606, 7
        %v3608 = vsub.s32 2, %v3607
        %v3609 = vrot.slane %v2669, %v3608
        %3611 = vbcast.lane.b32.xlu0 %v3609, 256
        %v3612 = vpop.permute.xlu0 %3611
        %s3614 = sor.u32 256, 8
        %3615 = vbcast.lane.b32.xlu0 %v3609, %s3614
        %v3616 = vpop.permute.xlu0 %3615
        %v3617 = vlaneseq
        %v3618 = vshrl.u32 %v3617, 7
        %v3619 = vsub.s32 3, %v3618
        %v3620 = vrot.slane %v2669, %v3619
        %3622 = vbcast.lane.b32.xlu0 %v3620, 256
        %v3623 = vpop.permute.xlu0 %3622
        %s3625 = sor.u32 256, 8
        %3626 = vbcast.lane.b32.xlu0 %v3620, %s3625
        %v3627 = vpop.permute.xlu0 %3626
        %v3628 = vlaneseq
        %v3629 = vshrl.u32 %v3628, 7
        %v3630 = vsub.s32 4, %v3629
        %v3631 = vrot.slane %v2669, %v3630
        %3633 = vbcast.lane.b32.xlu0 %v3631, 256
        %v3634 = vpop.permute.xlu0 %3633
        %s3636 = sor.u32 256, 8
        %3637 = vbcast.lane.b32.xlu0 %v3631, %s3636
        %v3638 = vpop.permute.xlu0 %3637
        %v3639 = vlaneseq
        %v3640 = vshrl.u32 %v3639, 7
        %v3641 = vsub.s32 5, %v3640
        %v3642 = vrot.slane %v2669, %v3641
        %3644 = vbcast.lane.b32.xlu0 %v3642, 256
        %v3645 = vpop.permute.xlu0 %3644
        %s3647 = sor.u32 256, 8
        %3648 = vbcast.lane.b32.xlu0 %v3642, %s3647
        %v3649 = vpop.permute.xlu0 %3648
        %v3650 = vlaneseq
        %v3651 = vshrl.u32 %v3650, 7
        %v3652 = vsub.s32 6, %v3651
        %v3653 = vrot.slane %v2669, %v3652
        %3655 = vbcast.lane.b32.xlu0 %v3653, 256
        %v3656 = vpop.permute.xlu0 %3655
        %s3658 = sor.u32 256, 8
        %3659 = vbcast.lane.b32.xlu0 %v3653, %s3658
        %v3660 = vpop.permute.xlu0 %3659
        %v3661 = vlaneseq
        %v3662 = vshrl.u32 %v3661, 7
        %v3663 = vsub.s32 7, %v3662
        %v3664 = vrot.slane %v2669, %v3663
        %3666 = vbcast.lane.b32.xlu0 %v3664, 256
        %v3667 = vpop.permute.xlu0 %3666
        %s3669 = sor.u32 256, 8
        %3670 = vbcast.lane.b32.xlu0 %v3664, %s3669
        %v3671 = vpop.permute.xlu0 %3670
        %v3672 = vlaneseq
        %v3673 = vshrl.u32 %v3672, 7
        %v3674 = vsub.s32 0, %v3673
        %v3675 = vrot.slane %v3558, %v3674
        %v3676 = vlaneseq
        %v3677 = vshrl.u32 %v3676, 7
        %v3678 = vsub.s32 0, %v3677
        %v3679 = vrot.slane %v3572, %v3678
        %v3680 = vlaneseq
        %v3681 = vshrl.u32 %v3680, 7
        %v3682 = vsub.s32 0, %v3681
        %v3683 = vrot.slane %v3580, %v3682
        %v3684 = vlaneseq
        %v3685 = vshrl.u32 %v3684, 7
        %v3686 = vsub.s32 0, %v3685
        %v3687 = vrot.slane %v3582, %v3686
        %v3688 = vlaneseq
        %v3689 = vshrl.u32 %v3688, 7
        %v3690 = vsub.s32 0, %v3689
        %v3691 = vrot.slane %v3565, %v3690
        %v3692 = vlaneseq
        %v3693 = vshrl.u32 %v3692, 7
        %v3694 = vsub.s32 0, %v3693
        %v3695 = vrot.slane %v3579, %v3694
        %v3696 = vlaneseq
        %v3697 = vshrl.u32 %v3696, 7
        %v3698 = vsub.s32 0, %v3697
        %v3699 = vrot.slane %v3581, %v3698
        %v3700 = vlaneseq
        %v3701 = vshrl.u32 %v3700, 7
        %v3702 = vsub.s32 0, %v3701
        %v3703 = vrot.slane %v3583, %v3702
        %v3712 = vmul.f32 %v3675, %v3590
        %v3713 = vmul.f32 %v3675, %v3594
        %v3714 = vmul.f32 %v3679, %v3601
        %v3715 = vmul.f32 %v3679, %v3605
        %v3716 = vmul.f32 %v3683, %v3612
        %v3717 = vmul.f32 %v3683, %v3616
        %v3718 = vmul.f32 %v3687, %v3623
        %v3719 = vmul.f32 %v3687, %v3627
        %v3720 = vmul.f32 %v3691, %v3634
        %v3721 = vmul.f32 %v3691, %v3638
        %v3722 = vmul.f32 %v3695, %v3645
        %v3723 = vmul.f32 %v3695, %v3649
        %v3724 = vmul.f32 %v3699, %v3656
        %v3725 = vmul.f32 %v3699, %v3660
        %v3726 = vmul.f32 %v3703, %v3667
        %v3727 = vmul.f32 %v3703, %v3671
        %v3728 = vmul.f32 %v3503, %v3218
        %v3729 = vmul.f32 %v3505, %v3219
        %v3730 = vadd.f32 %v3728, %v3712
        %v3731 = vadd.f32 %v3729, %v3713
        %v3732 = vmul.f32 %v3507, %v3730
        %v3733 = vmul.f32 %v3509, %v3731
        %v3734 = vadd.f32 %v3732, %v3714
        %v3735 = vadd.f32 %v3733, %v3715
        %v3736 = vmul.f32 %v3511, %v3734
        %v3737 = vmul.f32 %v3513, %v3735
        %v3738 = vadd.f32 %v3736, %v3716
        %v3739 = vadd.f32 %v3737, %v3717
        %v3740 = vmul.f32 %v3515, %v3738
        %v3741 = vmul.f32 %v3517, %v3739
        %v3742 = vadd.f32 %v3740, %v3718
        %v3743 = vadd.f32 %v3741, %v3719
        %v3744 = vmul.f32 %v3519, %v3742
        %v3745 = vmul.f32 %v3521, %v3743
        %v3746 = vadd.f32 %v3744, %v3720
        %v3747 = vadd.f32 %v3745, %v3721
        %v3748 = vmul.f32 %v3523, %v3746
        %v3749 = vmul.f32 %v3525, %v3747
        %v3750 = vadd.f32 %v3748, %v3722
        %v3751 = vadd.f32 %v3749, %v3723
        %v3752 = vmul.f32 %v3527, %v3750
        %v3753 = vmul.f32 %v3529, %v3751
        %v3754 = vadd.f32 %v3752, %v3724
        %v3755 = vadd.f32 %v3753, %v3725
        %v3756 = vmul.f32 %v3531, %v3754
        %v3757 = vmul.f32 %v3533, %v3755
        %v3758 = vadd.f32 %v3756, %v3726
        %v3759 = vadd.f32 %v3757, %v3727
        %v3760 = vlaneseq
        %v3761 = vshrl.u32 %v3760, 7
        %v3762 = vsub.s32 0, %v3761
        %v3763 = vrot.slane %v2721, %v3762
        %3765 = vbcast.lane.b32.xlu0 %v3763, 256
        %v3766 = vpop.permute.xlu0 %3765
        %s3768 = sor.u32 256, 8
        %3769 = vbcast.lane.b32.xlu0 %v3763, %s3768
        %v3770 = vpop.permute.xlu0 %3769
        %v3771 = vlaneseq
        %v3772 = vshrl.u32 %v3771, 7
        %v3773 = vsub.s32 1, %v3772
        %v3774 = vrot.slane %v2721, %v3773
        %3776 = vbcast.lane.b32.xlu0 %v3774, 256
        %v3777 = vpop.permute.xlu0 %3776
        %s3779 = sor.u32 256, 8
        %3780 = vbcast.lane.b32.xlu0 %v3774, %s3779
        %v3781 = vpop.permute.xlu0 %3780
        %v3782 = vlaneseq
        %v3783 = vshrl.u32 %v3782, 7
        %v3784 = vsub.s32 2, %v3783
        %v3785 = vrot.slane %v2721, %v3784
        %3787 = vbcast.lane.b32.xlu0 %v3785, 256
        %v3788 = vpop.permute.xlu0 %3787
        %s3790 = sor.u32 256, 8
        %3791 = vbcast.lane.b32.xlu0 %v3785, %s3790
        %v3792 = vpop.permute.xlu0 %3791
        %v3793 = vlaneseq
        %v3794 = vshrl.u32 %v3793, 7
        %v3795 = vsub.s32 3, %v3794
        %v3796 = vrot.slane %v2721, %v3795
        %3798 = vbcast.lane.b32.xlu0 %v3796, 256
        %v3799 = vpop.permute.xlu0 %3798
        %s3801 = sor.u32 256, 8
        %3802 = vbcast.lane.b32.xlu0 %v3796, %s3801
        %v3803 = vpop.permute.xlu0 %3802
        %v3804 = vlaneseq
        %v3805 = vshrl.u32 %v3804, 7
        %v3806 = vsub.s32 4, %v3805
        %v3807 = vrot.slane %v2721, %v3806
        %3809 = vbcast.lane.b32.xlu0 %v3807, 256
        %v3810 = vpop.permute.xlu0 %3809
        %s3812 = sor.u32 256, 8
        %3813 = vbcast.lane.b32.xlu0 %v3807, %s3812
        %v3814 = vpop.permute.xlu0 %3813
        %v3815 = vlaneseq
        %v3816 = vshrl.u32 %v3815, 7
        %v3817 = vsub.s32 5, %v3816
        %v3818 = vrot.slane %v2721, %v3817
        %3820 = vbcast.lane.b32.xlu0 %v3818, 256
        %v3821 = vpop.permute.xlu0 %3820
        %s3823 = sor.u32 256, 8
        %3824 = vbcast.lane.b32.xlu0 %v3818, %s3823
        %v3825 = vpop.permute.xlu0 %3824
        %v3826 = vlaneseq
        %v3827 = vshrl.u32 %v3826, 7
        %v3828 = vsub.s32 6, %v3827
        %v3829 = vrot.slane %v2721, %v3828
        %3831 = vbcast.lane.b32.xlu0 %v3829, 256
        %v3832 = vpop.permute.xlu0 %3831
        %s3834 = sor.u32 256, 8
        %3835 = vbcast.lane.b32.xlu0 %v3829, %s3834
        %v3836 = vpop.permute.xlu0 %3835
        %v3837 = vlaneseq
        %v3838 = vshrl.u32 %v3837, 7
        %v3839 = vsub.s32 7, %v3838
        %v3840 = vrot.slane %v2721, %v3839
        %3842 = vbcast.lane.b32.xlu0 %v3840, 256
        %v3843 = vpop.permute.xlu0 %3842
        %s3845 = sor.u32 256, 8
        %3846 = vbcast.lane.b32.xlu0 %v3840, %s3845
        %v3847 = vpop.permute.xlu0 %3846
        %v3848 = vmul.f32 %v3730, %v3766
        %v3849 = vmul.f32 %v3731, %v3770
        %v3850 = vmul.f32 %v3734, %v3777
        %v3851 = vmul.f32 %v3735, %v3781
        %v3852 = vmul.f32 %v3738, %v3788
        %v3853 = vmul.f32 %v3739, %v3792
        %v3854 = vmul.f32 %v3742, %v3799
        %v3855 = vmul.f32 %v3743, %v3803
        %v3856 = vmul.f32 %v3746, %v3810
        %v3857 = vmul.f32 %v3747, %v3814
        %v3858 = vmul.f32 %v3750, %v3821
        %v3859 = vmul.f32 %v3751, %v3825
        %v3860 = vmul.f32 %v3754, %v3832
        %v3861 = vmul.f32 %v3755, %v3836
        %v3862 = vmul.f32 %v3758, %v3843
        %v3863 = vmul.f32 %v3759, %v3847
        %v3864 = vsel %vm839, %v3848, 0.0
        %v3865 = vsel %vm839, %v3849, 0.0
        %v3866 = vadd.f32 %v3864, %v3865
        %v3867 = vrot.slane %v3866, 4
        %v3868 = vadd.f32 %v3866, %v3867
        %v3869 = vrot.slane %v3868, 2
        %v3870 = vadd.f32 %v3868, %v3869
        %v3871 = vrot.slane %v3870, 1
        %v3872 = vadd.f32 %v3870, %v3871
        %v3873 = vsel %vm839, %v3850, 0.0
        %v3874 = vsel %vm839, %v3851, 0.0
        %v3875 = vadd.f32 %v3873, %v3874
        %v3876 = vrot.slane %v3875, 4
        %v3877 = vadd.f32 %v3875, %v3876
        %v3878 = vrot.slane %v3877, 2
        %v3879 = vadd.f32 %v3877, %v3878
        %v3880 = vrot.slane %v3879, 1
        %v3881 = vadd.f32 %v3879, %v3880
        %v3882 = vsel %vm839, %v3852, 0.0
        %v3883 = vsel %vm839, %v3853, 0.0
        %v3884 = vadd.f32 %v3882, %v3883
        %v3885 = vrot.slane %v3884, 4
        %v3886 = vadd.f32 %v3884, %v3885
        %v3887 = vrot.slane %v3886, 2
        %v3888 = vadd.f32 %v3886, %v3887
        %v3889 = vrot.slane %v3888, 1
        %v3890 = vadd.f32 %v3888, %v3889
        %v3891 = vsel %vm839, %v3854, 0.0
        %v3892 = vsel %vm839, %v3855, 0.0
        %v3893 = vadd.f32 %v3891, %v3892
        %v3894 = vrot.slane %v3893, 4
        %v3895 = vadd.f32 %v3893, %v3894
        %v3896 = vrot.slane %v3895, 2
        %v3897 = vadd.f32 %v3895, %v3896
        %v3898 = vrot.slane %v3897, 1
        %v3899 = vadd.f32 %v3897, %v3898
        %v3900 = vsel %vm839, %v3856, 0.0
        %v3901 = vsel %vm839, %v3857, 0.0
        %v3902 = vadd.f32 %v3900, %v3901
        %v3903 = vrot.slane %v3902, 4
        %v3904 = vadd.f32 %v3902, %v3903
        %v3905 = vrot.slane %v3904, 2
        %v3906 = vadd.f32 %v3904, %v3905
        %v3907 = vrot.slane %v3906, 1
        %v3908 = vadd.f32 %v3906, %v3907
        %v3909 = vsel %vm839, %v3858, 0.0
        %v3910 = vsel %vm839, %v3859, 0.0
        %v3911 = vadd.f32 %v3909, %v3910
        %v3912 = vrot.slane %v3911, 4
        %v3913 = vadd.f32 %v3911, %v3912
        %v3914 = vrot.slane %v3913, 2
        %v3915 = vadd.f32 %v3913, %v3914
        %v3916 = vrot.slane %v3915, 1
        %v3917 = vadd.f32 %v3915, %v3916
        %v3918 = vsel %vm839, %v3860, 0.0
        %v3919 = vsel %vm839, %v3861, 0.0
        %v3920 = vadd.f32 %v3918, %v3919
        %v3921 = vrot.slane %v3920, 4
        %v3922 = vadd.f32 %v3920, %v3921
        %v3923 = vrot.slane %v3922, 2
        %v3924 = vadd.f32 %v3922, %v3923
        %v3925 = vrot.slane %v3924, 1
        %v3926 = vadd.f32 %v3924, %v3925
        %v3927 = vsel %vm839, %v3862, 0.0
        %v3928 = vsel %vm839, %v3863, 0.0
        %v3929 = vadd.f32 %v3927, %v3928
        %v3930 = vrot.slane %v3929, 4
        %v3931 = vadd.f32 %v3929, %v3930
        %v3932 = vrot.slane %v3931, 2
        %v3933 = vadd.f32 %v3931, %v3932
        %v3934 = vrot.slane %v3933, 1
        %v3935 = vadd.f32 %v3933, %v3934
        %3936 = vst.msk [vmem:[%s2853] sm:$0xff] %vm839, %v3758
        %3937 = vst.msk [vmem:[%s2853 + $0x8] sm:$0xff] %vm839, %v3759
        %v3946 = vsel %vm2276, %v3341, %v3332
        %v3947 = vsel %vm2278, %v3350, %v3946
        %v3948 = vsel %vm2280, %v3359, %v3947
        %v3949 = vsel %vm2282, %v3368, %v3948
        %v3950 = vsel %vm2284, %v3377, %v3949
        %v3951 = vsel %vm2286, %v3386, %v3950
        %v3952 = vsel %vm2288, %v3395, %v3951
        %v3962 = vsel %vm2276, %v3881, %v3872
        %v3963 = vsel %vm2278, %v3890, %v3962
        %v3964 = vsel %vm2280, %v3899, %v3963
        %v3965 = vsel %vm2282, %v3908, %v3964
        %v3966 = vsel %vm2284, %v3917, %v3965
        %v3967 = vsel %vm2286, %v3926, %v3966
        %v3968 = vsel %vm2288, %v3935, %v3967
        %s3970 = scalar_lea.vmem [#allocation23], 1
        %v3971 = vld [vmem:[%s3970] sm:$0x1]
        %v3973 = vlaneseq
        %v3974 = vshrl.u32 %v3973, 7
        %v3975 = vsub.s32 0, %v3974
        %v3976 = vrot.slane %v3971, %v3975
        %v3978 = vmul.f32 %v2568, %v3976
        %v3979 = vmul.f32 %v2569, %v3976
        %v3980 = vadd.f32 %v3952, %v3978
        %v3981 = vadd.f32 %v3968, %v3979
        %v3982 = vsub.f32 0.0, %v2494
        %v3983 = vsub.f32 0.0, %v2497
        %v3984 = vmul.f32 %v3982, 1.442695
        %v3985 = vpow.pop %v3984
        %v3986 = vmul.f32 %v3983, 1.442695
        %v3987 = vpow.pop %v3986
        %v3988 = vadd.f32 %v3985, 1.0
        %v3989 = vadd.f32 %v3987, 1.0
        %v3990 = vrcp.pop %v3988
        %v3991 = vmul.f32 1.0, %v3990
        %v3992 = vrcp.pop %v3989
        %v3993 = vmul.f32 1.0, %v3992
        %v3994 = vmul.f32 %v2494, %v3991
        %v3995 = vmul.f32 %v2497, %v3993
        %v3996 = vmul.f32 %v3980, %v3994
        %v3997 = vmul.f32 %v3981, %v3995
        %v3998 = vadd.f32 %v2334, %v3996
        %v3999 = vadd.f32 %v2335, %v3997
        %v4000 = vpack.c.bf16 %v3999, %v3998
        %v4001 = vld [vmem:[#allocation25] sm:$0xf]
        %v4002 = vld [vmem:[#allocation25 + $0x4] sm:$0xf]
        %v4003 = vld [vmem:[#allocation25 + $0x8] sm:$0xf]
        %v4004 = vld [vmem:[#allocation25 + $0xc] sm:$0xf]
        %v4009 = vunpack.c.l.b16 %v4001
        %v4010 = vunpack.c.l.b16 %v4002
        %v4011 = vunpack.c.l.b16 %v4003
        %v4012 = vunpack.c.l.b16 %v4004
        %v4013 = vpack.c.b16 %v4010, %v4009
        %v4014 = vpack.c.b16 %v4012, %v4011
        %v4016 = vsel %vm839, %v4000, 0
        %v4019 = vsel %vm839, %v4013, 0
        %v4022 = vsel %vm839, %v4014, 0
        %4024 = vmatprep.subr.bf16.mxu0 0
        %4025 = vmatpush1.bf16.xpose.msra.mxu0 %v4019
        %4026 = vmatprep.subr.bf16.mxu0 0
        %4027 = vmatpush1.bf16.xpose.msra.mxu0 %v4022
        %4028 = vmatprep.subr.bf16.mxu0 0
        %4029 = vmatpush1.bf16.xpose.msra.mxu0 0
        %4030 = vmatprep.subr.bf16.mxu0 0
        %4031 = vmatpush1.bf16.xpose.msra.mxu0 0
        %4032 = vmatprep.subr.bf16.mxu0 0
        %4033 = vmatpush1.bf16.xpose.msra.mxu0 0
        %4034 = vmatprep.subr.bf16.mxu0 0
        %4035 = vmatpush1.bf16.xpose.msra.mxu0 0
        %4036 = vmatprep.subr.bf16.mxu0 0
        %4037 = vmatpush1.bf16.xpose.msra.mxu0 0
        %4038 = vmatprep.subr.bf16.mxu0 0
        %4039 = vmatpush1.bf16.xpose.msra.mxu0 0
        %4040 = vmatprep.subr.bf16.mxu0 0
        %4041 = vmatpush1.bf16.xpose.msra.mxu0 0
        %4042 = vmatprep.subr.bf16.mxu0 0
        %4043 = vmatpush1.bf16.xpose.msra.mxu0 0
        %4044 = vmatprep.subr.bf16.mxu0 0
        %4045 = vmatpush1.bf16.xpose.msra.mxu0 0
        %4046 = vmatprep.subr.bf16.mxu0 0
        %4047 = vmatpush1.bf16.xpose.msra.mxu0 0
        %4048 = vmatprep.subr.bf16.mxu0 0
        %4049 = vmatpush1.bf16.xpose.msra.mxu0 0
        %4050 = vmatprep.subr.bf16.mxu0 0
        %4051 = vmatpush1.bf16.xpose.msra.mxu0 0
        %4052 = vmatprep.subr.bf16.mxu0 0
        %4053 = vmatpush1.bf16.xpose.msra.mxu0 0
        %4054 = vmatprep.subr.bf16.mxu0 0
        %4055 = vmatpush1.bf16.xpose.msra.mxu0 0
        %4056 = vmatprep.mubr.bf16.mxu0 0
        %4057 = vmatmul.mubr.bf16.gmra.mrb[0].mxu0 %v4016
        %v4058 = vpop.f32.mrb[0].mxu0
        %v4059 = vadd.f32 0.0, %v4058
        %v4060 = vpop.f32.mrb[0].mxu0
        %v4061 = vpop.f32.mrb[0].mxu0
        %v4062 = vadd.f32 0.0, %v4061
        %v4063 = vpop.f32.mrb[0].mxu0
        %4064 = vdwg.mxu0
        %4065 = vst.msk [vmem:[%s650] sm:$0xff] %vm700, %v4059
        %4066 = vst.msk [vmem:[%s650 + $0x8] sm:$0xff] %vm700, %v4062
        %s4067 = sand.u32 %s338, 1
        %s4068 = scalar_lea.sflag [#allocation7], %s4067
        %s4069 = sand.u32 %s338, 1
        %s4070 = smul.addr %s4069, 16
        %s4071 = scalar_lea.vmem [#allocation26], %s4070
        // Predicated region
        $region129: #{tpu_custom_call.1} parent=71 // pred_check
          %p4072 = pneg %p348
        $region130: #{tpu_custom_call.1} parent=71 // pred_check_branch
          %4074 = sbr.rel (%p4072) target = $region132
        $region131: #{tpu_custom_call.1} parent=71 // pred_region
          %s4075 = smul.u32 2, %s41
          %s4077 = ssub.s32 256, 256
          %4078 = vsyncadd %s4068, %s4077
          %s4079 = smul.addr %s40, 4
          %s4080 = sadd.s32 %s4075, %s4079
          %s4081 = smul.addr %s4080, 128
          %s4082 = scalar_lea.hbm %s13, %s4081
          %s4083 = sshll.u32 %s4071, 4
          %s4084 = int_to_ptr.vmem [resolvable:$true] %s4083
          %4089 = dma.vmem_to_hbm [thread:$0]  %s4084, 256, %s4082, %s4068, 128, 128, 8
        $region132: #{tpu_custom_call.1} parent=71 // pred_fallthru
          _
      $region72: #{tpu_custom_call.1} parent=5 // pred_fallthru
        _
      %p4090 = scmp.le.s32.totalorder 2, %s31
      // Predicated region
      $region133: #{tpu_custom_call.1} parent=5 // pred_check
        %p4091 = pneg %p4090
      $region134: #{tpu_custom_call.1} parent=5 // pred_check_branch
        %4093 = sbr.rel (%p4091) target = $region136
      $region135: #{tpu_custom_call.1} parent=5 // pred_region
        %s4094 = ssub.s32 %s31, 2
        // Predicated region
        $region137: #{tpu_custom_call.1} parent=135 // pred_check
          %p4095 = pneg %p354
        $region138: #{tpu_custom_call.1} parent=135 // pred_check_branch
          %4097 = sbr.rel (%p4095) target = $region140
        $region139: #{tpu_custom_call.1} parent=135 // pred_region
          %s4098 = sand.u32 %s339, 1
          %s4099 = scalar_lea.sflag [#allocation7], %s4098
          %s4100 = sand.u32 %s339, 1
          %s4101 = smul.addr %s4100, 16
          %s4102 = scalar_lea.vmem [#allocation26], %s4101
          %4103 = dma.done %s4099, 256
        $region140: #{tpu_custom_call.1} parent=135 // pred_fallthru
          _
      $region136: #{tpu_custom_call.1} parent=5 // pred_fallthru
        _
    $region6: #{tpu_custom_call.1} parent=1 // loop_footer
      %s35 = sadd.s32 1, %s31
    $region7: #{tpu_custom_call.1} parent=1 // loop_footer_branch
      %30 = sbr.rel target = $region3
    $region8: #{tpu_custom_call.1} parent=1 // loop_exit
      _
    %4104 = vsyncpa [#allocation6], 1
    %s4105 = scalar_lea.sflag [#allocation6], 1
    %4106 = vsyncpa %s4105, 1
    %4107 = vsyncpa [#allocation9], 1
    %4108 = vsyncpa [#allocation12], 1
    %4109 = vsyncpa [#allocation15], 1
    %4110 = vsyncpa [#allocation18], 1
    %4111 = vsyncpa [#allocation21], 1
    %4112 = vsyncpa [#allocation24], 1
    %4113 = vsyncpa [#allocation7], 1
    %s4114 = scalar_lea.sflag [#allocation7], 1
    %4115 = vsyncpa %s4114, 1

</llo_original>
